<compile_context>
chip_gen: v5e
topology: v5e:2x2
jax: 0.10.0
libtpu: 0.0.40
codegen_flags: <defaults>
</compile_context>

<pallas_src>
import functools

import jax
import jax.numpy as jnp
from jax import lax
from jax.experimental import pallas as pl
from jax.experimental.pallas import tpu as pltpu

LEAKY_SLOPE = 0.01
BN_SCALE = (1.0 + 1e-5) ** -0.5

# "args" hyper-parameters (small, deterministic)
H_A, D_A, H_K, H_C, H_S = 32, 16, 16, 16, 32
N_MASK, R_MASK = 4, 0.5
D_EMB = 32
D_RESHAPE = 50                      # 50*1*1 after conv5/pool/conv5/pool on 16x16 inputs

F32 = jnp.float32
_VMEM = functools.partial(pl.BlockSpec, memory_space=pltpu.MemorySpace.VMEM)


def _act(y, act):
    if act == "leaky":
        return jnp.where(y >= 0, y, LEAKY_SLOPE * y)
    if act == "relu":
        return jnp.maximum(y, 0.0)
    if act == "tanh":
        return jnp.tanh(y)
    return y


def _mm(a, b):                       # a @ b
    return jnp.dot(a, b, preferred_element_type=F32)


def _mm_t(a, b):                     # a^T @ b  (contract dim 0 with dim 0)
    return lax.dot_general(a, b, (((0,), (0,)), ((), ())), preferred_element_type=F32)


def _mm_rt(a, b):                    # a @ b^T  (contract dim 1 with dim 1)
    return lax.dot_general(a, b, (((1,), (1,)), ((), ())), preferred_element_type=F32)


# ------------------------------------------------------------------ conv path --
def _conv_pool_kernel(p0, p1, p2, p3, w_ref, b_ref, o_ref, *, act):
    # conv (as patch matmul) + activation + 2x2 max-pool, all in VMEM.
    w = w_ref[...]
    b = b_ref[...]
    y0 = _act(_mm(p0[...], w) + b, act)
    y1 = _act(_mm(p1[...], w) + b, act)
    y2 = _act(_mm(p2[...], w) + b, act)
    y3 = _act(_mm(p3[...], w) + b, act)
    o_ref[...] = jnp.maximum(jnp.maximum(y0, y1), jnp.maximum(y2, y3))


def _conv_pool_emb_kernel(p0, p1, p2, p3, w_ref, b_ref, we_ref, be_ref, o_ref, *, act):
    # conv + activation + 2x2 max-pool + Linear(d_reshape, d_emb) + LeakyReLU fused.
    w = w_ref[...]
    b = b_ref[...]
    y0 = _act(_mm(p0[...], w) + b, act)
    y1 = _act(_mm(p1[...], w) + b, act)
    y2 = _act(_mm(p2[...], w) + b, act)
    y3 = _act(_mm(p3[...], w) + b, act)
    pooled = jnp.maximum(jnp.maximum(y0, y1), jnp.maximum(y2, y3))
    o_ref[...] = _act(_mm(pooled, we_ref[...]) + be_ref[...], "leaky")


def _im2col_nhwc(x, k):
    # (n, H, W, C) -> (n, Ho, Wo, C*k*k) with torch's (Cin, ky, kx) feature ordering.
    # TODO(synk): patch extraction stays as XLA data-movement glue; doing it inside the
    # kernel would require lane<->sublane relayouts with no benefit at these sizes.
    n, h, w, c = x.shape
    ho, wo = h - k + 1, w - k + 1
    wins = [x[:, ky:ky + ho, kx:kx + wo, :] for ky in range(k) for kx in range(k)]
    p = jnp.stack(wins, axis=-1)                     # (n, Ho, Wo, C, k*k)
    return p.reshape(n, ho, wo, c * k * k)


def _pool_split(pat):
    # patches (n, Ho, Wo, K) -> four (n*hp*wp, K) matrices, one per 2x2 pool offset,
    # so the max-pool becomes an elementwise max of 4 matmul results inside the kernel.
    n, ho, wo, kdim = pat.shape
    hp, wp = ho // 2, wo // 2
    outs = [pat[:, dy::2, dx::2, :].reshape(n * hp * wp, kdim)
            for dy in range(2) for dx in range(2)]
    return outs, hp, wp


def data_transform(x_nchw, p):
    """Conv2d(C,20,5)+LeakyReLU+MaxPool2 -> Conv2d(20,50,5)+ReLU+MaxPool2
    -> reshape(-1, d_reshape) -> Linear(d_reshape, d_emb)+LeakyReLU  (Dropout = id)."""
    n = x_nchw.shape[0]
    x = jnp.transpose(x_nchw, (0, 2, 3, 1))                      # NHWC
    pat1 = _im2col_nhwc(x, 5)                                    # (n, 12, 12, C*25)
    p1, hp1, wp1 = _pool_split(pat1)
    pooled1 = pl.pallas_call(
        functools.partial(_conv_pool_kernel, act="leaky"),
        out_shape=jax.ShapeDtypeStruct((n * hp1 * wp1, p["conv1_w"].shape[1]), F32),
        in_specs=[_VMEM()] * 6,
        out_specs=_VMEM(),
    )(*p1, p["conv1_w"], p["conv1_b"])                           # (n*36, 20)
    pooled1 = pooled1.reshape(n, hp1, wp1, -1)                   # NHWC (n, 6, 6, 20)

    pat2 = _im2col_nhwc(pooled1, 5)                              # (n, 2, 2, 500)
    p2, hp2, wp2 = _pool_split(pat2)                             # four (n, 500)
    return pl.pallas_call(
        functools.partial(_conv_pool_emb_kernel, act="relu"),
        out_shape=jax.ShapeDtypeStruct((n * hp2 * wp2, p["emb_w"].shape[1]), F32),
        in_specs=[_VMEM()] * 8,
        out_specs=_VMEM(),
    )(*p2, p["conv2_w"], p["conv2_b"], p["emb_w"], p["emb_b"])   # (n, D_EMB)


# ---------------------------------------------------------------- fused head ---
def _skip_body(x, w1, b1, w2, b2, w3, b3):
    # SkipConnectBlock: 1x1 Conv1d == Linear; LeakyReLU then eval-BatchNorm scale
    # (exact Sequential order); softmax over dim=1 of the (1, L, L) scores == axis 0.
    x1 = _act(_mm(x, w1) + b1, "leaky") * BN_SCALE
    x2 = _act(_mm(x, w2) + b2, "leaky") * BN_SCALE
    x3 = _act(_mm(x, w3) + b3, "leaky") * BN_SCALE
    feat = _mm_rt(x1, x2)                                        # (L, L)
    m = jnp.max(feat, axis=0, keepdims=True)
    e = jnp.exp(feat - m)
    sm = e * pl.reciprocal(jnp.sum(e, axis=0, keepdims=True), approx=True)
    return _mm(sm, x3) + x


def _att_core(h, wv, bv, wu, bu, ww, bw):
    # gated attention pooling over instances -> (pooled (1, Ha), weights (N, 1)).
    v = _act(_mm(h, wv) + bv, "tanh")
    u = _act(_mm(h, wu) + bu, "leaky")
    s = _act(_mm(v * u, ww) + bw, "leaky")                       # (N, 1)
    m = jnp.max(s, axis=0, keepdims=True)
    e = jnp.exp(s - m)
    a = e * pl.reciprocal(jnp.sum(e, axis=0, keepdims=True), approx=True)
    return _mm_t(a, h), a


def _head_kernel(*refs, n_sample):
    (x_ref, kb_ref,
     s1w1, s1b1, s1w2, s1b2, s1w3, s1b3,
     s2w1, s2b1, s2w2, s2b2, s2w3, s2b3,
     s3w1, s3b1, s3w2, s3b2, s3w3, s3b3,
     mw1, mb1, mw2, mb2, mw3, mb3, mw4, mb4,
     fwa, fwb, fb,
     awf, abf, awv, abv, awu, abu, aww, abw, awe, abe,
     bwfa, bwfb, bbf, bwv, bbv, bwu, bbu, bww, bbw, bwe, bbe,
     sew, seb, cw, cb,
     yprob_ref, att_ref) = refs

    x = x_ref[...]                                               # (N, D)
    kb = kb_ref[...]                                             # (n_bag, D)
    d = x.shape[1]
    n_bag = kb.shape[0]

    # --- KnowledgeBagFuseBlock --------------------------------------------------
    x_skip = _skip_body(x, s1w1[...], s1b1[...], s1w2[...], s1b2[...], s1w3[...], s1b3[...])
    kb_skip = _skip_body(kb, s2w1[...], s2b1[...], s2w2[...], s2b2[...], s2w3[...], s2b3[...])

    # pairwise euclidean distances; yy kept lane-oriented so broadcasts are pure VPU.
    xy = _mm_rt(x_skip, kb_skip)                                 # (N, n_bag)
    xx = jnp.sum(x_skip * x_skip, axis=1, keepdims=True)         # (N, 1)
    yy = _mm_rt(jnp.ones((1, d), F32), kb_skip * kb_skip)        # (1, n_bag)
    aff = jnp.sqrt(jnp.maximum(xx + yy - 2.0 * xy, 0.0))         # (N, n_bag)

    aff_skip = _skip_body(aff, s3w1[...], s3b1[...], s3w2[...], s3b2[...], s3w3[...], s3b3[...])

    # MaskBlock scores, lane-oriented (1, n_bag).  The reference softmaxes before the
    # argsort; softmax is strictly monotonic and the probabilities are never reused,
    # so the ranking is identical without it.
    m1 = _act(_mm(aff_skip, mw1[...]) + mb1[...], "leaky")       # (N, Hk)
    m2 = _act(_mm(aff_skip, mw2[...]) + mb2[...], "tanh")        # (N, Hk)
    mm_ = _mm_t(m1, m2)                                          # (Hk, Hk)
    m3 = _act(_mm(mm_, mw3[...]) + mb3[...], "leaky")            # (Hk, n_bag)
    score = _mm_t(mw4[...], m3) + mb4[...]                       # (1, n_bag)

    # top-n_sample columns in descending-score order, in-kernel: rank each bag, build a
    # one-hot selection matrix, gather with a tiny matmul (replaces argsort + take).
    row_i = lax.broadcasted_iota(jnp.int32, (n_bag, n_bag), 0)
    col_i = lax.broadcasted_iota(jnp.int32, (n_bag, n_bag), 1)
    eye = (row_i == col_i).astype(F32)
    s_col = jnp.sum(score * eye, axis=1, keepdims=True)          # (n_bag, 1): s_col[j] = score[j]
    gt = (score > s_col).astype(F32)                             # [j,k]: score[k] > score[j]
    tie = jnp.logical_and(score == s_col, col_i < row_i).astype(F32)
    rank = jnp.sum(gt + tie, axis=1, keepdims=True)              # (n_bag, 1) descending rank
    sel_pos = lax.broadcasted_iota(jnp.int32, (n_bag, n_sample), 1).astype(F32)
    sel = (rank == sel_pos).astype(F32)                          # (n_bag, n_sample) one-hot
    b_bag = _mm(aff_skip, sel)                                   # (N, n_sample) gathered columns
    bm = jnp.max(b_bag, axis=1, keepdims=True)                   # softmax over selected columns
    bexp = jnp.exp(b_bag - bm)
    b_bag = bexp * pl.reciprocal(jnp.sum(bexp, axis=1, keepdims=True), approx=True)

    # --- KnowledgeFuseBlock embedding (hstack avoided by splitting the weight) ---
    x_fuse = _act(_mm(x, fwa[...]) + _mm(b_bag, fwb[...]) + fb[...], "leaky")      # (N, D)

    # --- bag-level AttentionBlock -------------------------------------------------
    h1 = _act(_mm(x_fuse, awf[...]) + abf[...], "leaky")                           # (N, Ha)
    m_att, _ = _att_core(h1, awv[...], abv[...], awu[...], abu[...], aww[...], abw[...])
    x_fuse_att = _act(_mm(m_att, awe[...]) + abe[...], "leaky")                    # (1, D)

    # --- SelfAttentionBlock on hstack([x_fuse, tile(x_fuse_att)]) -----------------
    h2 = _act(_mm(x_fuse, bwfa[...]) + _mm(x_fuse_att, bwfb[...]) + bbf[...], "leaky")  # (N, Ha)
    m2_att, a2 = _att_core(h2, bwv[...], bbv[...], bwu[...], bbu[...], bww[...], bbw[...])
    b2 = _act(_mm(m2_att, bwe[...]) + bbe[...], "leaky")                           # (1, 2D)
    b_vec = _act(_mm(b2, sew[...]) + seb[...], "leaky")                            # (1, H_S)

    # --- classifier: numerically stable sigmoid + clamp ---------------------------
    y = _mm(b_vec, cw[...]) + cb[...]                                              # (1, 1)
    ez = jnp.exp(-jnp.abs(y))
    prob = jnp.where(y >= 0, 1.0, ez) / (1.0 + ez)
    yprob_ref[...] = jnp.clip(prob, 1e-5, 1.0 - 1e-5)
    att_ref[...] = a2


def fused_head(b_dt, kb_dt, params, n_sample):
    n, d = b_dt.shape
    sk, sk2, sk3 = params["skip"], params["skip2"], params["skip3"]
    mk, at, sat = params["mask"], params["att"], params["self_att"]
    fw, fb = params["fuse_emb"]["w"], params["fuse_emb"]["b"]
    swf = sat["wf"]
    ops = [
        b_dt, kb_dt,
        sk["w1"], sk["b1"], sk["w2"], sk["b2"], sk["w3"], sk["b3"],
        sk2["w1"], sk2["b1"], sk2["w2"], sk2["b2"], sk2["w3"], sk2["b3"],
        sk3["w1"], sk3["b1"], sk3["w2"], sk3["b2"], sk3["w3"], sk3["b3"],
        mk["w1"], mk["b1"], mk["w2"], mk["b2"], mk["w3"], mk["b3"], mk["w4"], mk["b4"],
        fw[:d], fw[d:], fb,
        at["wf"], at["bf"], at["wv"], at["bv"], at["wu"], at["bu"],
        at["ww"], at["bw"], at["we"], at["be"],
        swf[:d], swf[d:], sat["bf"], sat["wv"], sat["bv"], sat["wu"], sat["bu"],
        sat["ww"], sat["bw"], sat["we"], sat["be"],
        params["self_emb"]["w"], params["self_emb"]["b"],
        params["cls"]["w"], params["cls"]["b"],
    ]
    return pl.pallas_call(
        functools.partial(_head_kernel, n_sample=n_sample),
        out_shape=(jax.ShapeDtypeStruct((1, 1), F32),
                   jax.ShapeDtypeStruct((n, 1), F32)),
        in_specs=[_VMEM()] * len(ops),
        out_specs=(_VMEM(), _VMEM()),
    )(*ops)


# -------------------------------------------------------------------- params ---
def _xavier(key, fan_in, fan_out, shape):
    lim = (6.0 / (fan_in + fan_out)) ** 0.5
    return jax.random.uniform(key, shape, F32, -lim, lim)


def init_params(key, n_bag):
    keys = iter(jax.random.split(key, 64))

    def lin(i, o):
        return {"w": _xavier(next(keys), i, o, (i, o)), "b": jnp.zeros((1, o), F32)}

    def skip(d):
        p = {}
        for name, (i, o) in {"1": (d, H_C), "2": (d, H_C), "3": (d, d)}.items():
            p["w" + name] = _xavier(next(keys), i, o, (i, o))
            p["b" + name] = jnp.zeros((1, o), F32)
        return p

    def att(d):
        spec = {"f": (d, H_A), "v": (H_A, D_A), "u": (H_A, D_A), "w": (D_A, 1), "e": (H_A, d)}
        p = {}
        for name, (i, o) in spec.items():
            p["w" + name] = _xavier(next(keys), i, o, (i, o))
            p["b" + name] = jnp.zeros((1, o), F32)
        return p

    n_sample = max(N_MASK, int(R_MASK * n_bag))
    conv1, conv2, emb = lin(1 * 25, 20), lin(20 * 25, 50), lin(D_RESHAPE, D_EMB)

    mask = {}
    for name, (i, o) in {"1": (n_bag, H_K), "2": (n_bag, H_K),
                         "3": (H_K, n_bag), "4": (H_K, 1)}.items():
        mask["w" + name] = _xavier(next(keys), i, o, (i, o))
        mask["b" + name] = jnp.zeros((1, o), F32)

    return {
        "dt": {"conv1_w": conv1["w"], "conv1_b": conv1["b"],
               "conv2_w": conv2["w"], "conv2_b": conv2["b"],
               "emb_w": emb["w"], "emb_b": emb["b"]},
        "skip": skip(D_EMB), "skip2": skip(D_EMB), "skip3": skip(n_bag),
        "mask": mask,
        "fuse_emb": lin(D_EMB + n_sample, D_EMB),
        "att": att(D_EMB),
        "self_att": att(2 * D_EMB),
        "self_emb": lin(2 * D_EMB, H_S),
        "cls": lin(H_S, 1),
    }


# ------------------------------------------------------------------- forward ---
@jax.jit
def dkmil_forward(B, knowledge_bag, params):
    n_bag = knowledge_bag.shape[0]
    n_sample = max(N_MASK, int(R_MASK * n_bag))
    B = B[0]                                                     # B.squeeze(0): (N, C, H, W)
    n_inst = B.shape[0]

    # one CNN pass over bag instances + knowledge bag (shared 'dt' params)
    both = jnp.concatenate([B, knowledge_bag], axis=0)
    both_dt = data_transform(both, params["dt"])                 # (N + n_bag, D_EMB)
    b_dt, kb_dt = both_dt[:n_inst], both_dt[n_inst:]

    y_prob, a2 = fused_head(b_dt, kb_dt, params, n_sample)       # (1,1), (N,1)
    y_hat = (y_prob >= 0.5).astype(F32)
    return y_prob, y_hat, a2.T


if __name__ == "__main__":
    N_INST, N_BAG, C_IN, S = 8, 6, 1, 16
    key = jax.random.PRNGKey(0)
    kx, kk, kp = jax.random.split(key, 3)
    x = jax.random.normal(kx, (1, N_INST, C_IN, S, S), F32)           # bag of instances
    knowledge_bag = jax.random.normal(kk, (N_BAG, C_IN, S, S), F32)   # synthetic knowledge bag
    params = init_params(kp, N_BAG)

    y_prob, y_hat, a = dkmil_forward(x, knowledge_bag, params)
    jax.block_until_ready((y_prob, y_hat, a))
    assert y_prob.shape == (1, 1) and y_hat.shape == (1, 1) and a.shape == (1, N_INST)
    assert bool(jnp.all(jnp.isfinite(y_prob))) and bool(jnp.all(jnp.isfinite(a)))
    print("KERNEL_OK")
</pallas_src>

<mosaic_0001>
module attributes {stable_mosaic.version = 11 : i64} {
  func.func @_conv_pool_kernel(%arg0: memref<504x25xf32, #tpu.memory_space<vmem>>, %arg1: memref<504x25xf32, #tpu.memory_space<vmem>>, %arg2: memref<504x25xf32, #tpu.memory_space<vmem>>, %arg3: memref<504x25xf32, #tpu.memory_space<vmem>>, %arg4: memref<25x20xf32, #tpu.memory_space<vmem>>, %arg5: memref<1x20xf32, #tpu.memory_space<vmem>>, %arg6: memref<504x20xf32, #tpu.memory_space<vmem>>) attributes {dimension_semantics = [], scalar_prefetch = 0 : i64, scratch_operands = 0 : i64, tpu.core_type = #tpu.core_type<tc>} {
    %c0 = arith.constant 0 : index
    %c0_0 = arith.constant 0 : index
    %0 = vector.load %arg4[%c0, %c0_0] : memref<25x20xf32, #tpu.memory_space<vmem>>, vector<25x20xf32>
    %c0_1 = arith.constant 0 : index
    %c0_2 = arith.constant 0 : index
    %1 = vector.load %arg5[%c0_1, %c0_2] : memref<1x20xf32, #tpu.memory_space<vmem>>, vector<1x20xf32>
    %c0_3 = arith.constant 0 : index
    %c0_4 = arith.constant 0 : index
    %2 = vector.load %arg0[%c0_3, %c0_4] : memref<504x25xf32, #tpu.memory_space<vmem>>, vector<504x25xf32>
    %cst = arith.constant dense<0.000000e+00> : vector<504x20xf32>
    %3 = tpu.matmul %2, %0, %cst {dimension_numbers = #tpu.dot_dimension_numbers<[1], [0], [0], [1], [0, 0, 1, 1], [], []>} : vector<504x25xf32>, vector<25x20xf32>, vector<504x20xf32> -> vector<504x20xf32>
    %4 = vector.broadcast %1 : vector<1x20xf32> to vector<504x20xf32>
    %5 = arith.addf %3, %4 : vector<504x20xf32>
    %cst_5 = arith.constant 0.000000e+00 : f32
    %6 = vector.broadcast %cst_5 : f32 to vector<504x20xf32>
    %7 = arith.cmpf oge, %5, %6 : vector<504x20xf32>
    %cst_6 = arith.constant 0.00999999977 : f32
    %8 = vector.broadcast %cst_6 : f32 to vector<504x20xf32>
    %9 = arith.mulf %8, %5 : vector<504x20xf32>
    %10 = arith.select %7, %5, %9 : vector<504x20xi1>, vector<504x20xf32>
    %c0_7 = arith.constant 0 : index
    %c0_8 = arith.constant 0 : index
    %11 = vector.load %arg1[%c0_7, %c0_8] : memref<504x25xf32, #tpu.memory_space<vmem>>, vector<504x25xf32>
    %cst_9 = arith.constant dense<0.000000e+00> : vector<504x20xf32>
    %12 = tpu.matmul %11, %0, %cst_9 {dimension_numbers = #tpu.dot_dimension_numbers<[1], [0], [0], [1], [0, 0, 1, 1], [], []>} : vector<504x25xf32>, vector<25x20xf32>, vector<504x20xf32> -> vector<504x20xf32>
    %13 = vector.broadcast %1 : vector<1x20xf32> to vector<504x20xf32>
    %14 = arith.addf %12, %13 : vector<504x20xf32>
    %cst_10 = arith.constant 0.000000e+00 : f32
    %15 = vector.broadcast %cst_10 : f32 to vector<504x20xf32>
    %16 = arith.cmpf oge, %14, %15 : vector<504x20xf32>
    %cst_11 = arith.constant 0.00999999977 : f32
    %17 = vector.broadcast %cst_11 : f32 to vector<504x20xf32>
    %18 = arith.mulf %17, %14 : vector<504x20xf32>
    %19 = arith.select %16, %14, %18 : vector<504x20xi1>, vector<504x20xf32>
    %c0_12 = arith.constant 0 : index
    %c0_13 = arith.constant 0 : index
    %20 = vector.load %arg2[%c0_12, %c0_13] : memref<504x25xf32, #tpu.memory_space<vmem>>, vector<504x25xf32>
    %cst_14 = arith.constant dense<0.000000e+00> : vector<504x20xf32>
    %21 = tpu.matmul %20, %0, %cst_14 {dimension_numbers = #tpu.dot_dimension_numbers<[1], [0], [0], [1], [0, 0, 1, 1], [], []>} : vector<504x25xf32>, vector<25x20xf32>, vector<504x20xf32> -> vector<504x20xf32>
    %22 = vector.broadcast %1 : vector<1x20xf32> to vector<504x20xf32>
    %23 = arith.addf %21, %22 : vector<504x20xf32>
    %cst_15 = arith.constant 0.000000e+00 : f32
    %24 = vector.broadcast %cst_15 : f32 to vector<504x20xf32>
    %25 = arith.cmpf oge, %23, %24 : vector<504x20xf32>
    %cst_16 = arith.constant 0.00999999977 : f32
    %26 = vector.broadcast %cst_16 : f32 to vector<504x20xf32>
    %27 = arith.mulf %26, %23 : vector<504x20xf32>
    %28 = arith.select %25, %23, %27 : vector<504x20xi1>, vector<504x20xf32>
    %c0_17 = arith.constant 0 : index
    %c0_18 = arith.constant 0 : index
    %29 = vector.load %arg3[%c0_17, %c0_18] : memref<504x25xf32, #tpu.memory_space<vmem>>, vector<504x25xf32>
    %cst_19 = arith.constant dense<0.000000e+00> : vector<504x20xf32>
    %30 = tpu.matmul %29, %0, %cst_19 {dimension_numbers = #tpu.dot_dimension_numbers<[1], [0], [0], [1], [0, 0, 1, 1], [], []>} : vector<504x25xf32>, vector<25x20xf32>, vector<504x20xf32> -> vector<504x20xf32>
    %31 = vector.broadcast %1 : vector<1x20xf32> to vector<504x20xf32>
    %32 = arith.addf %30, %31 : vector<504x20xf32>
    %cst_20 = arith.constant 0.000000e+00 : f32
    %33 = vector.broadcast %cst_20 : f32 to vector<504x20xf32>
    %34 = arith.cmpf oge, %32, %33 : vector<504x20xf32>
    %cst_21 = arith.constant 0.00999999977 : f32
    %35 = vector.broadcast %cst_21 : f32 to vector<504x20xf32>
    %36 = arith.mulf %35, %32 : vector<504x20xf32>
    %37 = arith.select %34, %32, %36 : vector<504x20xi1>, vector<504x20xf32>
    %38 = arith.maximumf %10, %19 : vector<504x20xf32>
    %39 = arith.maximumf %28, %37 : vector<504x20xf32>
    %40 = arith.maximumf %38, %39 : vector<504x20xf32>
    %c0_22 = arith.constant 0 : index
    %c0_23 = arith.constant 0 : index
    %41 = vector.load %arg6[%c0_22, %c0_23] : memref<504x20xf32, #tpu.memory_space<vmem>>, vector<504x20xf32>
    tpu.vector_store %arg6[%c0_22, %c0_23], %40 {strides = array<i32>} : memref<504x20xf32, #tpu.memory_space<vmem>>, vector<504x20xf32>,
    return
  }
}

module attributes {stable_mosaic.version = 11 : i64} {
  func.func @_conv_pool_emb_kernel(%arg0: memref<14x500xf32, #tpu.memory_space<vmem>>, %arg1: memref<14x500xf32, #tpu.memory_space<vmem>>, %arg2: memref<14x500xf32, #tpu.memory_space<vmem>>, %arg3: memref<14x500xf32, #tpu.memory_space<vmem>>, %arg4: memref<500x50xf32, #tpu.memory_space<vmem>>, %arg5: memref<1x50xf32, #tpu.memory_space<vmem>>, %arg6: memref<50x32xf32, #tpu.memory_space<vmem>>, %arg7: memref<1x32xf32, #tpu.memory_space<vmem>>, %arg8: memref<14x32xf32, #tpu.memory_space<vmem>>) attributes {dimension_semantics = [], scalar_prefetch = 0 : i64, scratch_operands = 0 : i64, tpu.core_type = #tpu.core_type<tc>} {
    %c0 = arith.constant 0 : index
    %c0_0 = arith.constant 0 : index
    %0 = vector.load %arg4[%c0, %c0_0] : memref<500x50xf32, #tpu.memory_space<vmem>>, vector<500x50xf32>
    %c0_1 = arith.constant 0 : index
    %c0_2 = arith.constant 0 : index
    %1 = vector.load %arg5[%c0_1, %c0_2] : memref<1x50xf32, #tpu.memory_space<vmem>>, vector<1x50xf32>
    %c0_3 = arith.constant 0 : index
    %c0_4 = arith.constant 0 : index
    %2 = vector.load %arg0[%c0_3, %c0_4] : memref<14x500xf32, #tpu.memory_space<vmem>>, vector<14x500xf32>
    %cst = arith.constant dense<0.000000e+00> : vector<14x50xf32>
    %3 = tpu.matmul %2, %0, %cst {dimension_numbers = #tpu.dot_dimension_numbers<[1], [0], [0], [1], [0, 0, 1, 1], [], []>} : vector<14x500xf32>, vector<500x50xf32>, vector<14x50xf32> -> vector<14x50xf32>
    %4 = vector.broadcast %1 : vector<1x50xf32> to vector<14x50xf32>
    %5 = arith.addf %3, %4 : vector<14x50xf32>
    %cst_5 = arith.constant 0.000000e+00 : f32
    %6 = vector.broadcast %cst_5 : f32 to vector<14x50xf32>
    %7 = arith.maximumf %5, %6 : vector<14x50xf32>
    %c0_6 = arith.constant 0 : index
    %c0_7 = arith.constant 0 : index
    %8 = vector.load %arg1[%c0_6, %c0_7] : memref<14x500xf32, #tpu.memory_space<vmem>>, vector<14x500xf32>
    %cst_8 = arith.constant dense<0.000000e+00> : vector<14x50xf32>
    %9 = tpu.matmul %8, %0, %cst_8 {dimension_numbers = #tpu.dot_dimension_numbers<[1], [0], [0], [1], [0, 0, 1, 1], [], []>} : vector<14x500xf32>, vector<500x50xf32>, vector<14x50xf32> -> vector<14x50xf32>
    %10 = vector.broadcast %1 : vector<1x50xf32> to vector<14x50xf32>
    %11 = arith.addf %9, %10 : vector<14x50xf32>
    %cst_9 = arith.constant 0.000000e+00 : f32
    %12 = vector.broadcast %cst_9 : f32 to vector<14x50xf32>
    %13 = arith.maximumf %11, %12 : vector<14x50xf32>
    %c0_10 = arith.constant 0 : index
    %c0_11 = arith.constant 0 : index
    %14 = vector.load %arg2[%c0_10, %c0_11] : memref<14x500xf32, #tpu.memory_space<vmem>>, vector<14x500xf32>
    %cst_12 = arith.constant dense<0.000000e+00> : vector<14x50xf32>
    %15 = tpu.matmul %14, %0, %cst_12 {dimension_numbers = #tpu.dot_dimension_numbers<[1], [0], [0], [1], [0, 0, 1, 1], [], []>} : vector<14x500xf32>, vector<500x50xf32>, vector<14x50xf32> -> vector<14x50xf32>
    %16 = vector.broadcast %1 : vector<1x50xf32> to vector<14x50xf32>
    %17 = arith.addf %15, %16 : vector<14x50xf32>
    %cst_13 = arith.constant 0.000000e+00 : f32
    %18 = vector.broadcast %cst_13 : f32 to vector<14x50xf32>
    %19 = arith.maximumf %17, %18 : vector<14x50xf32>
    %c0_14 = arith.constant 0 : index
    %c0_15 = arith.constant 0 : index
    %20 = vector.load %arg3[%c0_14, %c0_15] : memref<14x500xf32, #tpu.memory_space<vmem>>, vector<14x500xf32>
    %cst_16 = arith.constant dense<0.000000e+00> : vector<14x50xf32>
    %21 = tpu.matmul %20, %0, %cst_16 {dimension_numbers = #tpu.dot_dimension_numbers<[1], [0], [0], [1], [0, 0, 1, 1], [], []>} : vector<14x500xf32>, vector<500x50xf32>, vector<14x50xf32> -> vector<14x50xf32>
    %22 = vector.broadcast %1 : vector<1x50xf32> to vector<14x50xf32>
    %23 = arith.addf %21, %22 : vector<14x50xf32>
    %cst_17 = arith.constant 0.000000e+00 : f32
    %24 = vector.broadcast %cst_17 : f32 to vector<14x50xf32>
    %25 = arith.maximumf %23, %24 : vector<14x50xf32>
    %26 = arith.maximumf %7, %13 : vector<14x50xf32>
    %27 = arith.maximumf %19, %25 : vector<14x50xf32>
    %28 = arith.maximumf %26, %27 : vector<14x50xf32>
    %c0_18 = arith.constant 0 : index
    %c0_19 = arith.constant 0 : index
    %29 = vector.load %arg6[%c0_18, %c0_19] : memref<50x32xf32, #tpu.memory_space<vmem>>, vector<50x32xf32>
    %cst_20 = arith.constant dense<0.000000e+00> : vector<14x32xf32>
    %30 = tpu.matmul %28, %29, %cst_20 {dimension_numbers = #tpu.dot_dimension_numbers<[1], [0], [0], [1], [0, 0, 1, 1], [], []>} : vector<14x50xf32>, vector<50x32xf32>, vector<14x32xf32> -> vector<14x32xf32>
    %c0_21 = arith.constant 0 : index
    %c0_22 = arith.constant 0 : index
    %31 = vector.load %arg7[%c0_21, %c0_22] : memref<1x32xf32, #tpu.memory_space<vmem>>, vector<1x32xf32>
    %32 = vector.broadcast %31 : vector<1x32xf32> to vector<14x32xf32>
    %33 = arith.addf %30, %32 : vector<14x32xf32>
    %cst_23 = arith.constant 0.000000e+00 : f32
    %34 = vector.broadcast %cst_23 : f32 to vector<14x32xf32>
    %35 = arith.cmpf oge, %33, %34 : vector<14x32xf32>
    %cst_24 = arith.constant 0.00999999977 : f32
    %36 = vector.broadcast %cst_24 : f32 to vector<14x32xf32>
    %37 = arith.mulf %36, %33 : vector<14x32xf32>
    %38 = arith.select %35, %33, %37 : vector<14x32xi1>, vector<14x32xf32>
    %c0_25 = arith.constant 0 : index
    %c0_26 = arith.constant 0 : index
    %39 = vector.load %arg8[%c0_25, %c0_26] : memref<14x32xf32, #tpu.memory_space<vmem>>, vector<14x32xf32>
    tpu.vector_store %arg8[%c0_25, %c0_26], %38 {strides = array<i32>} : memref<14x32xf32, #tpu.memory_space<vmem>>, vector<14x32xf32>,
    return
  }
}

module attributes {stable_mosaic.version = 11 : i64} {
  func.func @_head_kernel(%arg0: memref<8x32xf32, #tpu.memory_space<vmem>>, %arg1: memref<6x32xf32, #tpu.memory_space<vmem>>, %arg2: memref<32x16xf32, #tpu.memory_space<vmem>>, %arg3: memref<1x16xf32, #tpu.memory_space<vmem>>, %arg4: memref<32x16xf32, #tpu.memory_space<vmem>>, %arg5: memref<1x16xf32, #tpu.memory_space<vmem>>, %arg6: memref<32x32xf32, #tpu.memory_space<vmem>>, %arg7: memref<1x32xf32, #tpu.memory_space<vmem>>, %arg8: memref<32x16xf32, #tpu.memory_space<vmem>>, %arg9: memref<1x16xf32, #tpu.memory_space<vmem>>, %arg10: memref<32x16xf32, #tpu.memory_space<vmem>>, %arg11: memref<1x16xf32, #tpu.memory_space<vmem>>, %arg12: memref<32x32xf32, #tpu.memory_space<vmem>>, %arg13: memref<1x32xf32, #tpu.memory_space<vmem>>, %arg14: memref<6x16xf32, #tpu.memory_space<vmem>>, %arg15: memref<1x16xf32, #tpu.memory_space<vmem>>, %arg16: memref<6x16xf32, #tpu.memory_space<vmem>>, %arg17: memref<1x16xf32, #tpu.memory_space<vmem>>, %arg18: memref<6x6xf32, #tpu.memory_space<vmem>>, %arg19: memref<1x6xf32, #tpu.memory_space<vmem>>, %arg20: memref<6x16xf32, #tpu.memory_space<vmem>>, %arg21: memref<1x16xf32, #tpu.memory_space<vmem>>, %arg22: memref<6x16xf32, #tpu.memory_space<vmem>>, %arg23: memref<1x16xf32, #tpu.memory_space<vmem>>, %arg24: memref<16x6xf32, #tpu.memory_space<vmem>>, %arg25: memref<1x6xf32, #tpu.memory_space<vmem>>, %arg26: memref<16x1xf32, #tpu.memory_space<vmem>>, %arg27: memref<1x1xf32, #tpu.memory_space<vmem>>, %arg28: memref<32x32xf32, #tpu.memory_space<vmem>>, %arg29: memref<4x32xf32, #tpu.memory_space<vmem>>, %arg30: memref<1x32xf32, #tpu.memory_space<vmem>>, %arg31: memref<32x32xf32, #tpu.memory_space<vmem>>, %arg32: memref<1x32xf32, #tpu.memory_space<vmem>>, %arg33: memref<32x16xf32, #tpu.memory_space<vmem>>, %arg34: memref<1x16xf32, #tpu.memory_space<vmem>>, %arg35: memref<32x16xf32, #tpu.memory_space<vmem>>, %arg36: memref<1x16xf32, #tpu.memory_space<vmem>>, %arg37: memref<16x1xf32, #tpu.memory_space<vmem>>, %arg38: memref<1x1xf32, #tpu.memory_space<vmem>>, %arg39: memref<32x32xf32, #tpu.memory_space<vmem>>, %arg40: memref<1x32xf32, #tpu.memory_space<vmem>>, %arg41: memref<32x32xf32, #tpu.memory_space<vmem>>, %arg42: memref<32x32xf32, #tpu.memory_space<vmem>>, %arg43: memref<1x32xf32, #tpu.memory_space<vmem>>, %arg44: memref<32x16xf32, #tpu.memory_space<vmem>>, %arg45: memref<1x16xf32, #tpu.memory_space<vmem>>, %arg46: memref<32x16xf32, #tpu.memory_space<vmem>>, %arg47: memref<1x16xf32, #tpu.memory_space<vmem>>, %arg48: memref<16x1xf32, #tpu.memory_space<vmem>>, %arg49: memref<1x1xf32, #tpu.memory_space<vmem>>, %arg50: memref<32x64xf32, #tpu.memory_space<vmem>>, %arg51: memref<1x64xf32, #tpu.memory_space<vmem>>, %arg52: memref<64x32xf32, #tpu.memory_space<vmem>>, %arg53: memref<1x32xf32, #tpu.memory_space<vmem>>, %arg54: memref<32x1xf32, #tpu.memory_space<vmem>>, %arg55: memref<1x1xf32, #tpu.memory_space<vmem>>, %arg56: memref<1x1xf32, #tpu.memory_space<vmem>>, %arg57: memref<8x1xf32, #tpu.memory_space<vmem>>) attributes {dimension_semantics = [], scalar_prefetch = 0 : i64, scratch_operands = 0 : i64, tpu.core_type = #tpu.core_type<tc>} {
    %c0 = arith.constant 0 : index
    %c0_0 = arith.constant 0 : index
    %0 = vector.load %arg0[%c0, %c0_0] : memref<8x32xf32, #tpu.memory_space<vmem>>, vector<8x32xf32>
    %c0_1 = arith.constant 0 : index
    %c0_2 = arith.constant 0 : index
    %1 = vector.load %arg1[%c0_1, %c0_2] : memref<6x32xf32, #tpu.memory_space<vmem>>, vector<6x32xf32>
    %c0_3 = arith.constant 0 : index
    %c0_4 = arith.constant 0 : index
    %2 = vector.load %arg2[%c0_3, %c0_4] : memref<32x16xf32, #tpu.memory_space<vmem>>, vector<32x16xf32>
    %c0_5 = arith.constant 0 : index
    %c0_6 = arith.constant 0 : index
    %3 = vector.load %arg3[%c0_5, %c0_6] : memref<1x16xf32, #tpu.memory_space<vmem>>, vector<1x16xf32>
    %c0_7 = arith.constant 0 : index
    %c0_8 = arith.constant 0 : index
    %4 = vector.load %arg4[%c0_7, %c0_8] : memref<32x16xf32, #tpu.memory_space<vmem>>, vector<32x16xf32>
    %c0_9 = arith.constant 0 : index
    %c0_10 = arith.constant 0 : index
    %5 = vector.load %arg5[%c0_9, %c0_10] : memref<1x16xf32, #tpu.memory_space<vmem>>, vector<1x16xf32>
    %c0_11 = arith.constant 0 : index
    %c0_12 = arith.constant 0 : index
    %6 = vector.load %arg6[%c0_11, %c0_12] : memref<32x32xf32, #tpu.memory_space<vmem>>, vector<32x32xf32>
    %c0_13 = arith.constant 0 : index
    %c0_14 = arith.constant 0 : index
    %7 = vector.load %arg7[%c0_13, %c0_14] : memref<1x32xf32, #tpu.memory_space<vmem>>, vector<1x32xf32>
    %cst = arith.constant dense<0.000000e+00> : vector<8x16xf32>
    %8 = tpu.matmul %0, %2, %cst {dimension_numbers = #tpu.dot_dimension_numbers<[1], [0], [0], [1], [0, 0, 1, 1], [], []>} : vector<8x32xf32>, vector<32x16xf32>, vector<8x16xf32> -> vector<8x16xf32>
    %9 = vector.broadcast %3 : vector<1x16xf32> to vector<8x16xf32>
    %10 = arith.addf %8, %9 : vector<8x16xf32>
    %cst_15 = arith.constant 0.000000e+00 : f32
    %11 = vector.broadcast %cst_15 : f32 to vector<8x16xf32>
    %12 = arith.cmpf oge, %10, %11 : vector<8x16xf32>
    %cst_16 = arith.constant 0.00999999977 : f32
    %13 = vector.broadcast %cst_16 : f32 to vector<8x16xf32>
    %14 = arith.mulf %13, %10 : vector<8x16xf32>
    %15 = arith.select %12, %10, %14 : vector<8x16xi1>, vector<8x16xf32>
    %cst_17 = arith.constant 0.999994993 : f32
    %16 = vector.broadcast %cst_17 : f32 to vector<8x16xf32>
    %17 = arith.mulf %15, %16 : vector<8x16xf32>
    %cst_18 = arith.constant dense<0.000000e+00> : vector<8x16xf32>
    %18 = tpu.matmul %0, %4, %cst_18 {dimension_numbers = #tpu.dot_dimension_numbers<[1], [0], [0], [1], [0, 0, 1, 1], [], []>} : vector<8x32xf32>, vector<32x16xf32>, vector<8x16xf32> -> vector<8x16xf32>
    %19 = vector.broadcast %5 : vector<1x16xf32> to vector<8x16xf32>
    %20 = arith.addf %18, %19 : vector<8x16xf32>
    %cst_19 = arith.constant 0.000000e+00 : f32
    %21 = vector.broadcast %cst_19 : f32 to vector<8x16xf32>
    %22 = arith.cmpf oge, %20, %21 : vector<8x16xf32>
    %cst_20 = arith.constant 0.00999999977 : f32
    %23 = vector.broadcast %cst_20 : f32 to vector<8x16xf32>
    %24 = arith.mulf %23, %20 : vector<8x16xf32>
    %25 = arith.select %22, %20, %24 : vector<8x16xi1>, vector<8x16xf32>
    %cst_21 = arith.constant 0.999994993 : f32
    %26 = vector.broadcast %cst_21 : f32 to vector<8x16xf32>
    %27 = arith.mulf %25, %26 : vector<8x16xf32>
    %cst_22 = arith.constant dense<0.000000e+00> : vector<8x32xf32>
    %28 = tpu.matmul %0, %6, %cst_22 {dimension_numbers = #tpu.dot_dimension_numbers<[1], [0], [0], [1], [0, 0, 1, 1], [], []>} : vector<8x32xf32>, vector<32x32xf32>, vector<8x32xf32> -> vector<8x32xf32>
    %29 = vector.broadcast %7 : vector<1x32xf32> to vector<8x32xf32>
    %30 = arith.addf %28, %29 : vector<8x32xf32>
    %cst_23 = arith.constant 0.000000e+00 : f32
    %31 = vector.broadcast %cst_23 : f32 to vector<8x32xf32>
    %32 = arith.cmpf oge, %30, %31 : vector<8x32xf32>
    %cst_24 = arith.constant 0.00999999977 : f32
    %33 = vector.broadcast %cst_24 : f32 to vector<8x32xf32>
    %34 = arith.mulf %33, %30 : vector<8x32xf32>
    %35 = arith.select %32, %30, %34 : vector<8x32xi1>, vector<8x32xf32>
    %cst_25 = arith.constant 0.999994993 : f32
    %36 = vector.broadcast %cst_25 : f32 to vector<8x32xf32>
    %37 = arith.mulf %35, %36 : vector<8x32xf32>
    %cst_26 = arith.constant dense<0.000000e+00> : vector<8x8xf32>
    %38 = tpu.matmul %17, %27, %cst_26 {dimension_numbers = #tpu.dot_dimension_numbers<[1], [1], [0], [0], [0, 0, 1, 0], [], []>} : vector<8x16xf32>, vector<8x16xf32>, vector<8x8xf32> -> vector<8x8xf32>
    %cst_27 = arith.constant dense<0xFF800000> : vector<8xf32>
    %39 = vector.multi_reduction <maximumf>, %38, %cst_27 [0] : vector<8x8xf32> to vector<8xf32>
    %40 = vector.shape_cast %39 : vector<8xf32> to vector<1x8xf32>
    %41 = vector.broadcast %40 : vector<1x8xf32> to vector<8x8xf32>
    %42 = arith.subf %38, %41 : vector<8x8xf32>
    %43 = math.exp %42 : vector<8x8xf32>
    %cst_28 = arith.constant dense<0.000000e+00> : vector<8xf32>
    %44 = vector.multi_reduction <add>, %43, %cst_28 [0] : vector<8x8xf32> to vector<8xf32>
    %45 = vector.shape_cast %44 : vector<8xf32> to vector<1x8xf32>
    %46 = tpu.reciprocal %45 {approx = true} : vector<1x8xf32> -> vector<1x8xf32>
    %47 = vector.broadcast %46 : vector<1x8xf32> to vector<8x8xf32>
    %48 = arith.mulf %43, %47 : vector<8x8xf32>
    %cst_29 = arith.constant dense<0.000000e+00> : vector<8x32xf32>
    %49 = tpu.matmul %48, %37, %cst_29 {dimension_numbers = #tpu.dot_dimension_numbers<[1], [0], [0], [1], [0, 0, 1, 1], [], []>} : vector<8x8xf32>, vector<8x32xf32>, vector<8x32xf32> -> vector<8x32xf32>
    %50 = arith.addf %49, %0 : vector<8x32xf32>
    %c0_30 = arith.constant 0 : index
    %c0_31 = arith.constant 0 : index
    %51 = vector.load %arg8[%c0_30, %c0_31] : memref<32x16xf32, #tpu.memory_space<vmem>>, vector<32x16xf32>
    %c0_32 = arith.constant 0 : index
    %c0_33 = arith.constant 0 : index
    %52 = vector.load %arg9[%c0_32, %c0_33] : memref<1x16xf32, #tpu.memory_space<vmem>>, vector<1x16xf32>
    %c0_34 = arith.constant 0 : index
    %c0_35 = arith.constant 0 : index
    %53 = vector.load %arg10[%c0_34, %c0_35] : memref<32x16xf32, #tpu.memory_space<vmem>>, vector<32x16xf32>
    %c0_36 = arith.constant 0 : index
    %c0_37 = arith.constant 0 : index
    %54 = vector.load %arg11[%c0_36, %c0_37] : memref<1x16xf32, #tpu.memory_space<vmem>>, vector<1x16xf32>
    %c0_38 = arith.constant 0 : index
    %c0_39 = arith.constant 0 : index
    %55 = vector.load %arg12[%c0_38, %c0_39] : memref<32x32xf32, #tpu.memory_space<vmem>>, vector<32x32xf32>
    %c0_40 = arith.constant 0 : index
    %c0_41 = arith.constant 0 : index
    %56 = vector.load %arg13[%c0_40, %c0_41] : memref<1x32xf32, #tpu.memory_space<vmem>>, vector<1x32xf32>
    %cst_42 = arith.constant dense<0.000000e+00> : vector<6x16xf32>
    %57 = tpu.matmul %1, %51, %cst_42 {dimension_numbers = #tpu.dot_dimension_numbers<[1], [0], [0], [1], [0, 0, 1, 1], [], []>} : vector<6x32xf32>, vector<32x16xf32>, vector<6x16xf32> -> vector<6x16xf32>
    %58 = vector.broadcast %52 : vector<1x16xf32> to vector<6x16xf32>
    %59 = arith.addf %57, %58 : vector<6x16xf32>
    %cst_43 = arith.constant 0.000000e+00 : f32
    %60 = vector.broadcast %cst_43 : f32 to vector<6x16xf32>
    %61 = arith.cmpf oge, %59, %60 : vector<6x16xf32>
    %cst_44 = arith.constant 0.00999999977 : f32
    %62 = vector.broadcast %cst_44 : f32 to vector<6x16xf32>
    %63 = arith.mulf %62, %59 : vector<6x16xf32>
    %64 = arith.select %61, %59, %63 : vector<6x16xi1>, vector<6x16xf32>
    %cst_45 = arith.constant 0.999994993 : f32
    %65 = vector.broadcast %cst_45 : f32 to vector<6x16xf32>
    %66 = arith.mulf %64, %65 : vector<6x16xf32>
    %cst_46 = arith.constant dense<0.000000e+00> : vector<6x16xf32>
    %67 = tpu.matmul %1, %53, %cst_46 {dimension_numbers = #tpu.dot_dimension_numbers<[1], [0], [0], [1], [0, 0, 1, 1], [], []>} : vector<6x32xf32>, vector<32x16xf32>, vector<6x16xf32> -> vector<6x16xf32>
    %68 = vector.broadcast %54 : vector<1x16xf32> to vector<6x16xf32>
    %69 = arith.addf %67, %68 : vector<6x16xf32>
    %cst_47 = arith.constant 0.000000e+00 : f32
    %70 = vector.broadcast %cst_47 : f32 to vector<6x16xf32>
    %71 = arith.cmpf oge, %69, %70 : vector<6x16xf32>
    %cst_48 = arith.constant 0.00999999977 : f32
    %72 = vector.broadcast %cst_48 : f32 to vector<6x16xf32>
    %73 = arith.mulf %72, %69 : vector<6x16xf32>
    %74 = arith.select %71, %69, %73 : vector<6x16xi1>, vector<6x16xf32>
    %cst_49 = arith.constant 0.999994993 : f32
    %75 = vector.broadcast %cst_49 : f32 to vector<6x16xf32>
    %76 = arith.mulf %74, %75 : vector<6x16xf32>
    %cst_50 = arith.constant dense<0.000000e+00> : vector<6x32xf32>
    %77 = tpu.matmul %1, %55, %cst_50 {dimension_numbers = #tpu.dot_dimension_numbers<[1], [0], [0], [1], [0, 0, 1, 1], [], []>} : vector<6x32xf32>, vector<32x32xf32>, vector<6x32xf32> -> vector<6x32xf32>
    %78 = vector.broadcast %56 : vector<1x32xf32> to vector<6x32xf32>
    %79 = arith.addf %77, %78 : vector<6x32xf32>
    %cst_51 = arith.constant 0.000000e+00 : f32
    %80 = vector.broadcast %cst_51 : f32 to vector<6x32xf32>
    %81 = arith.cmpf oge, %79, %80 : vector<6x32xf32>
    %cst_52 = arith.constant 0.00999999977 : f32
    %82 = vector.broadcast %cst_52 : f32 to vector<6x32xf32>
    %83 = arith.mulf %82, %79 : vector<6x32xf32>
    %84 = arith.select %81, %79, %83 : vector<6x32xi1>, vector<6x32xf32>
    %cst_53 = arith.constant 0.999994993 : f32
    %85 = vector.broadcast %cst_53 : f32 to vector<6x32xf32>
    %86 = arith.mulf %84, %85 : vector<6x32xf32>
    %cst_54 = arith.constant dense<0.000000e+00> : vector<6x6xf32>
    %87 = tpu.matmul %66, %76, %cst_54 {dimension_numbers = #tpu.dot_dimension_numbers<[1], [1], [0], [0], [0, 0, 1, 0], [], []>} : vector<6x16xf32>, vector<6x16xf32>, vector<6x6xf32> -> vector<6x6xf32>
    %cst_55 = arith.constant dense<0xFF800000> : vector<6xf32>
    %88 = vector.multi_reduction <maximumf>, %87, %cst_55 [0] : vector<6x6xf32> to vector<6xf32>
    %89 = vector.shape_cast %88 : vector<6xf32> to vector<1x6xf32>
    %90 = vector.broadcast %89 : vector<1x6xf32> to vector<6x6xf32>
    %91 = arith.subf %87, %90 : vector<6x6xf32>
    %92 = math.exp %91 : vector<6x6xf32>
    %cst_56 = arith.constant dense<0.000000e+00> : vector<6xf32>
    %93 = vector.multi_reduction <add>, %92, %cst_56 [0] : vector<6x6xf32> to vector<6xf32>
    %94 = vector.shape_cast %93 : vector<6xf32> to vector<1x6xf32>
    %95 = tpu.reciprocal %94 {approx = true} : vector<1x6xf32> -> vector<1x6xf32>
    %96 = vector.broadcast %95 : vector<1x6xf32> to vector<6x6xf32>
    %97 = arith.mulf %92, %96 : vector<6x6xf32>
    %cst_57 = arith.constant dense<0.000000e+00> : vector<6x32xf32>
    %98 = tpu.matmul %97, %86, %cst_57 {dimension_numbers = #tpu.dot_dimension_numbers<[1], [0], [0], [1], [0, 0, 1, 1], [], []>} : vector<6x6xf32>, vector<6x32xf32>, vector<6x32xf32> -> vector<6x32xf32>
    %99 = arith.addf %98, %1 : vector<6x32xf32>
    %cst_58 = arith.constant dense<0.000000e+00> : vector<8x6xf32>
    %100 = tpu.matmul %50, %99, %cst_58 {dimension_numbers = #tpu.dot_dimension_numbers<[1], [1], [0], [0], [0, 0, 1, 0], [], []>} : vector<8x32xf32>, vector<6x32xf32>, vector<8x6xf32> -> vector<8x6xf32>
    %101 = arith.mulf %50, %50 : vector<8x32xf32>
    %cst_59 = arith.constant dense<0.000000e+00> : vector<8xf32>
    %102 = vector.multi_reduction <add>, %101, %cst_59 [1] : vector<8x32xf32> to vector<8xf32>
    %103 = vector.shape_cast %102 : vector<8xf32> to vector<8x1xf32>
    %cst_60 = arith.constant 1.000000e+00 : f32
    %104 = vector.broadcast %cst_60 : f32 to vector<1x32xf32>
    %105 = arith.mulf %99, %99 : vector<6x32xf32>
    %cst_61 = arith.constant dense<0.000000e+00> : vector<1x6xf32>
    %106 = tpu.matmul %104, %105, %cst_61 {dimension_numbers = #tpu.dot_dimension_numbers<[1], [1], [0], [0], [0, 0, 1, 0], [], []>} : vector<1x32xf32>, vector<6x32xf32>, vector<1x6xf32> -> vector<1x6xf32>
    %107 = vector.broadcast %103 : vector<8x1xf32> to vector<8x6xf32>
    %108 = vector.broadcast %106 : vector<1x6xf32> to vector<8x6xf32>
    %109 = arith.addf %107, %108 : vector<8x6xf32>
    %cst_62 = arith.constant 2.000000e+00 : f32
    %110 = vector.broadcast %cst_62 : f32 to vector<8x6xf32>
    %111 = arith.mulf %110, %100 : vector<8x6xf32>
    %112 = arith.subf %109, %111 : vector<8x6xf32>
    %cst_63 = arith.constant 0.000000e+00 : f32
    %113 = vector.broadcast %cst_63 : f32 to vector<8x6xf32>
    %114 = arith.maximumf %112, %113 : vector<8x6xf32>
    %115 = math.sqrt %114 : vector<8x6xf32>
    %c0_64 = arith.constant 0 : index
    %c0_65 = arith.constant 0 : index
    %116 = vector.load %arg14[%c0_64, %c0_65] : memref<6x16xf32, #tpu.memory_space<vmem>>, vector<6x16xf32>
    %c0_66 = arith.constant 0 : index
    %c0_67 = arith.constant 0 : index
    %117 = vector.load %arg15[%c0_66, %c0_67] : memref<1x16xf32, #tpu.memory_space<vmem>>, vector<1x16xf32>
    %c0_68 = arith.constant 0 : index
    %c0_69 = arith.constant 0 : index
    %118 = vector.load %arg16[%c0_68, %c0_69] : memref<6x16xf32, #tpu.memory_space<vmem>>, vector<6x16xf32>
    %c0_70 = arith.constant 0 : index
    %c0_71 = arith.constant 0 : index
    %119 = vector.load %arg17[%c0_70, %c0_71] : memref<1x16xf32, #tpu.memory_space<vmem>>, vector<1x16xf32>
    %c0_72 = arith.constant 0 : index
    %c0_73 = arith.constant 0 : index
    %120 = vector.load %arg18[%c0_72, %c0_73] : memref<6x6xf32, #tpu.memory_space<vmem>>, vector<6x6xf32>
    %c0_74 = arith.constant 0 : index
    %c0_75 = arith.constant 0 : index
    %121 = vector.load %arg19[%c0_74, %c0_75] : memref<1x6xf32, #tpu.memory_space<vmem>>, vector<1x6xf32>
    %cst_76 = arith.constant dense<0.000000e+00> : vector<8x16xf32>
    %122 = tpu.matmul %115, %116, %cst_76 {dimension_numbers = #tpu.dot_dimension_numbers<[1], [0], [0], [1], [0, 0, 1, 1], [], []>} : vector<8x6xf32>, vector<6x16xf32>, vector<8x16xf32> -> vector<8x16xf32>
    %123 = vector.broadcast %117 : vector<1x16xf32> to vector<8x16xf32>
    %124 = arith.addf %122, %123 : vector<8x16xf32>
    %cst_77 = arith.constant 0.000000e+00 : f32
    %125 = vector.broadcast %cst_77 : f32 to vector<8x16xf32>
    %126 = arith.cmpf oge, %124, %125 : vector<8x16xf32>
    %cst_78 = arith.constant 0.00999999977 : f32
    %127 = vector.broadcast %cst_78 : f32 to vector<8x16xf32>
    %128 = arith.mulf %127, %124 : vector<8x16xf32>
    %129 = arith.select %126, %124, %128 : vector<8x16xi1>, vector<8x16xf32>
    %cst_79 = arith.constant 0.999994993 : f32
    %130 = vector.broadcast %cst_79 : f32 to vector<8x16xf32>
    %131 = arith.mulf %129, %130 : vector<8x16xf32>
    %cst_80 = arith.constant dense<0.000000e+00> : vector<8x16xf32>
    %132 = tpu.matmul %115, %118, %cst_80 {dimension_numbers = #tpu.dot_dimension_numbers<[1], [0], [0], [1], [0, 0, 1, 1], [], []>} : vector<8x6xf32>, vector<6x16xf32>, vector<8x16xf32> -> vector<8x16xf32>
    %133 = vector.broadcast %119 : vector<1x16xf32> to vector<8x16xf32>
    %134 = arith.addf %132, %133 : vector<8x16xf32>
    %cst_81 = arith.constant 0.000000e+00 : f32
    %135 = vector.broadcast %cst_81 : f32 to vector<8x16xf32>
    %136 = arith.cmpf oge, %134, %135 : vector<8x16xf32>
    %cst_82 = arith.constant 0.00999999977 : f32
    %137 = vector.broadcast %cst_82 : f32 to vector<8x16xf32>
    %138 = arith.mulf %137, %134 : vector<8x16xf32>
    %139 = arith.select %136, %134, %138 : vector<8x16xi1>, vector<8x16xf32>
    %cst_83 = arith.constant 0.999994993 : f32
    %140 = vector.broadcast %cst_83 : f32 to vector<8x16xf32>
    %141 = arith.mulf %139, %140 : vector<8x16xf32>
    %cst_84 = arith.constant dense<0.000000e+00> : vector<8x6xf32>
    %142 = tpu.matmul %115, %120, %cst_84 {dimension_numbers = #tpu.dot_dimension_numbers<[1], [0], [0], [1], [0, 0, 1, 1], [], []>} : vector<8x6xf32>, vector<6x6xf32>, vector<8x6xf32> -> vector<8x6xf32>
    %143 = vector.broadcast %121 : vector<1x6xf32> to vector<8x6xf32>
    %144 = arith.addf %142, %143 : vector<8x6xf32>
    %cst_85 = arith.constant 0.000000e+00 : f32
    %145 = vector.broadcast %cst_85 : f32 to vector<8x6xf32>
    %146 = arith.cmpf oge, %144, %145 : vector<8x6xf32>
    %cst_86 = arith.constant 0.00999999977 : f32
    %147 = vector.broadcast %cst_86 : f32 to vector<8x6xf32>
    %148 = arith.mulf %147, %144 : vector<8x6xf32>
    %149 = arith.select %146, %144, %148 : vector<8x6xi1>, vector<8x6xf32>
    %cst_87 = arith.constant 0.999994993 : f32
    %150 = vector.broadcast %cst_87 : f32 to vector<8x6xf32>
    %151 = arith.mulf %149, %150 : vector<8x6xf32>
    %cst_88 = arith.constant dense<0.000000e+00> : vector<8x8xf32>
    %152 = tpu.matmul %131, %141, %cst_88 {dimension_numbers = #tpu.dot_dimension_numbers<[1], [1], [0], [0], [0, 0, 1, 0], [], []>} : vector<8x16xf32>, vector<8x16xf32>, vector<8x8xf32> -> vector<8x8xf32>
    %cst_89 = arith.constant dense<0xFF800000> : vector<8xf32>
    %153 = vector.multi_reduction <maximumf>, %152, %cst_89 [0] : vector<8x8xf32> to vector<8xf32>
    %154 = vector.shape_cast %153 : vector<8xf32> to vector<1x8xf32>
    %155 = vector.broadcast %154 : vector<1x8xf32> to vector<8x8xf32>
    %156 = arith.subf %152, %155 : vector<8x8xf32>
    %157 = math.exp %156 : vector<8x8xf32>
    %cst_90 = arith.constant dense<0.000000e+00> : vector<8xf32>
    %158 = vector.multi_reduction <add>, %157, %cst_90 [0] : vector<8x8xf32> to vector<8xf32>
    %159 = vector.shape_cast %158 : vector<8xf32> to vector<1x8xf32>
    %160 = tpu.reciprocal %159 {approx = true} : vector<1x8xf32> -> vector<1x8xf32>
    %161 = vector.broadcast %160 : vector<1x8xf32> to vector<8x8xf32>
    %162 = arith.mulf %157, %161 : vector<8x8xf32>
    %cst_91 = arith.constant dense<0.000000e+00> : vector<8x6xf32>
    %163 = tpu.matmul %162, %151, %cst_91 {dimension_numbers = #tpu.dot_dimension_numbers<[1], [0], [0], [1], [0, 0, 1, 1], [], []>} : vector<8x8xf32>, vector<8x6xf32>, vector<8x6xf32> -> vector<8x6xf32>
    %164 = arith.addf %163, %115 : vector<8x6xf32>
    %c0_92 = arith.constant 0 : index
    %c0_93 = arith.constant 0 : index
    %165 = vector.load %arg20[%c0_92, %c0_93] : memref<6x16xf32, #tpu.memory_space<vmem>>, vector<6x16xf32>
    %cst_94 = arith.constant dense<0.000000e+00> : vector<8x16xf32>
    %166 = tpu.matmul %164, %165, %cst_94 {dimension_numbers = #tpu.dot_dimension_numbers<[1], [0], [0], [1], [0, 0, 1, 1], [], []>} : vector<8x6xf32>, vector<6x16xf32>, vector<8x16xf32> -> vector<8x16xf32>
    %c0_95 = arith.constant 0 : index
    %c0_96 = arith.constant 0 : index
    %167 = vector.load %arg21[%c0_95, %c0_96] : memref<1x16xf32, #tpu.memory_space<vmem>>, vector<1x16xf32>
    %168 = vector.broadcast %167 : vector<1x16xf32> to vector<8x16xf32>
    %169 = arith.addf %166, %168 : vector<8x16xf32>
    %cst_97 = arith.constant 0.000000e+00 : f32
    %170 = vector.broadcast %cst_97 : f32 to vector<8x16xf32>
    %171 = arith.cmpf oge, %169, %170 : vector<8x16xf32>
    %cst_98 = arith.constant 0.00999999977 : f32
    %172 = vector.broadcast %cst_98 : f32 to vector<8x16xf32>
    %173 = arith.mulf %172, %169 : vector<8x16xf32>
    %174 = arith.select %171, %169, %173 : vector<8x16xi1>, vector<8x16xf32>
    %c0_99 = arith.constant 0 : index
    %c0_100 = arith.constant 0 : index
    %175 = vector.load %arg22[%c0_99, %c0_100] : memref<6x16xf32, #tpu.memory_space<vmem>>, vector<6x16xf32>
    %cst_101 = arith.constant dense<0.000000e+00> : vector<8x16xf32>
    %176 = tpu.matmul %164, %175, %cst_101 {dimension_numbers = #tpu.dot_dimension_numbers<[1], [0], [0], [1], [0, 0, 1, 1], [], []>} : vector<8x6xf32>, vector<6x16xf32>, vector<8x16xf32> -> vector<8x16xf32>
    %c0_102 = arith.constant 0 : index
    %c0_103 = arith.constant 0 : index
    %177 = vector.load %arg23[%c0_102, %c0_103] : memref<1x16xf32, #tpu.memory_space<vmem>>, vector<1x16xf32>
    %178 = vector.broadcast %177 : vector<1x16xf32> to vector<8x16xf32>
    %179 = arith.addf %176, %178 : vector<8x16xf32>
    %180 = math.tanh %179 : vector<8x16xf32>
    %cst_104 = arith.constant dense<0.000000e+00> : vector<16x16xf32>
    %181 = tpu.matmul %174, %180, %cst_104 {dimension_numbers = #tpu.dot_dimension_numbers<[0], [0], [1], [1], [0, 1, 1, 1], [], []>} : vector<8x16xf32>, vector<8x16xf32>, vector<16x16xf32> -> vector<16x16xf32>
    %c0_105 = arith.constant 0 : index
    %c0_106 = arith.constant 0 : index
    %182 = vector.load %arg24[%c0_105, %c0_106] : memref<16x6xf32, #tpu.memory_space<vmem>>, vector<16x6xf32>
    %cst_107 = arith.constant dense<0.000000e+00> : vector<16x6xf32>
    %183 = tpu.matmul %181, %182, %cst_107 {dimension_numbers = #tpu.dot_dimension_numbers<[1], [0], [0], [1], [0, 0, 1, 1], [], []>} : vector<16x16xf32>, vector<16x6xf32>, vector<16x6xf32> -> vector<16x6xf32>
    %c0_108 = arith.constant 0 : index
    %c0_109 = arith.constant 0 : index
    %184 = vector.load %arg25[%c0_108, %c0_109] : memref<1x6xf32, #tpu.memory_space<vmem>>, vector<1x6xf32>
    %185 = vector.broadcast %184 : vector<1x6xf32> to vector<16x6xf32>
    %186 = arith.addf %183, %185 : vector<16x6xf32>
    %cst_110 = arith.constant 0.000000e+00 : f32
    %187 = vector.broadcast %cst_110 : f32 to vector<16x6xf32>
    %188 = arith.cmpf oge, %186, %187 : vector<16x6xf32>
    %cst_111 = arith.constant 0.00999999977 : f32
    %189 = vector.broadcast %cst_111 : f32 to vector<16x6xf32>
    %190 = arith.mulf %189, %186 : vector<16x6xf32>
    %191 = arith.select %188, %186, %190 : vector<16x6xi1>, vector<16x6xf32>
    %c0_112 = arith.constant 0 : index
    %c0_113 = arith.constant 0 : index
    %192 = vector.load %arg26[%c0_112, %c0_113] : memref<16x1xf32, #tpu.memory_space<vmem>>, vector<16x1xf32>
    %cst_114 = arith.constant dense<0.000000e+00> : vector<1x6xf32>
    %193 = tpu.matmul %192, %191, %cst_114 {dimension_numbers = #tpu.dot_dimension_numbers<[0], [0], [1], [1], [0, 1, 1, 1], [], []>} : vector<16x1xf32>, vector<16x6xf32>, vector<1x6xf32> -> vector<1x6xf32>
    %c0_115 = arith.constant 0 : index
    %c0_116 = arith.constant 0 : index
    %194 = vector.load %arg27[%c0_115, %c0_116] : memref<1x1xf32, #tpu.memory_space<vmem>>, vector<1x1xf32>
    %195 = vector.broadcast %194 : vector<1x1xf32> to vector<1x6xf32>
    %196 = arith.addf %193, %195 : vector<1x6xf32>
    %197 = tpu.iota {dimensions = array<i32: 0>} : vector<6x6xi32>
    %198 = tpu.iota {dimensions = array<i32: 1>} : vector<6x6xi32>
    %199 = arith.cmpi eq, %197, %198 : vector<6x6xi32>
    %200 = arith.extui %199 : vector<6x6xi1> to vector<6x6xi32>
    %201 = arith.sitofp %200 : vector<6x6xi32> to vector<6x6xf32>
    %202 = vector.broadcast %196 : vector<1x6xf32> to vector<6x6xf32>
    %203 = arith.mulf %202, %201 : vector<6x6xf32>
    %cst_117 = arith.constant dense<0.000000e+00> : vector<6xf32>
    %204 = vector.multi_reduction <add>, %203, %cst_117 [1] : vector<6x6xf32> to vector<6xf32>
    %205 = vector.shape_cast %204 : vector<6xf32> to vector<6x1xf32>
    %206 = vector.broadcast %196 : vector<1x6xf32> to vector<6x6xf32>
    %207 = vector.broadcast %205 : vector<6x1xf32> to vector<6x6xf32>
    %208 = arith.cmpf ogt, %206, %207 : vector<6x6xf32>
    %209 = arith.extui %208 : vector<6x6xi1> to vector<6x6xi32>
    %210 = arith.sitofp %209 : vector<6x6xi32> to vector<6x6xf32>
    %211 = vector.broadcast %196 : vector<1x6xf32> to vector<6x6xf32>
    %212 = vector.broadcast %205 : vector<6x1xf32> to vector<6x6xf32>
    %213 = arith.cmpf oeq, %211, %212 : vector<6x6xf32>
    %214 = arith.cmpi slt, %198, %197 : vector<6x6xi32>
    %215 = arith.andi %213, %214 : vector<6x6xi1>
    %216 = arith.extui %215 : vector<6x6xi1> to vector<6x6xi32>
    %217 = arith.sitofp %216 : vector<6x6xi32> to vector<6x6xf32>
    %218 = arith.addf %210, %217 : vector<6x6xf32>
    %cst_118 = arith.constant dense<0.000000e+00> : vector<6xf32>
    %219 = vector.multi_reduction <add>, %218, %cst_118 [1] : vector<6x6xf32> to vector<6xf32>
    %220 = vector.shape_cast %219 : vector<6xf32> to vector<6x1xf32>
    %221 = tpu.iota {dimensions = array<i32: 1>} : vector<6x4xi32>
    %222 = arith.sitofp %221 : vector<6x4xi32> to vector<6x4xf32>
    %223 = vector.broadcast %220 : vector<6x1xf32> to vector<6x4xf32>
    %224 = arith.cmpf oeq, %223, %222 : vector<6x4xf32>
    %225 = arith.extui %224 : vector<6x4xi1> to vector<6x4xi32>
    %226 = arith.sitofp %225 : vector<6x4xi32> to vector<6x4xf32>
    %cst_119 = arith.constant dense<0.000000e+00> : vector<8x4xf32>
    %227 = tpu.matmul %164, %226, %cst_119 {dimension_numbers = #tpu.dot_dimension_numbers<[1], [0], [0], [1], [0, 0, 1, 1], [], []>} : vector<8x6xf32>, vector<6x4xf32>, vector<8x4xf32> -> vector<8x4xf32>
    %cst_120 = arith.constant dense<0xFF800000> : vector<8xf32>
    %228 = vector.multi_reduction <maximumf>, %227, %cst_120 [1] : vector<8x4xf32> to vector<8xf32>
    %229 = vector.shape_cast %228 : vector<8xf32> to vector<8x1xf32>
    %230 = vector.broadcast %229 : vector<8x1xf32> to vector<8x4xf32>
    %231 = arith.subf %227, %230 : vector<8x4xf32>
    %232 = math.exp %231 : vector<8x4xf32>
    %cst_121 = arith.constant dense<0.000000e+00> : vector<8xf32>
    %233 = vector.multi_reduction <add>, %232, %cst_121 [1] : vector<8x4xf32> to vector<8xf32>
    %234 = vector.shape_cast %233 : vector<8xf32> to vector<8x1xf32>
    %235 = tpu.reciprocal %234 {approx = true} : vector<8x1xf32> -> vector<8x1xf32>
    %236 = vector.broadcast %235 : vector<8x1xf32> to vector<8x4xf32>
    %237 = arith.mulf %232, %236 : vector<8x4xf32>
    %c0_122 = arith.constant 0 : index
    %c0_123 = arith.constant 0 : index
    %238 = vector.load %arg28[%c0_122, %c0_123] : memref<32x32xf32, #tpu.memory_space<vmem>>, vector<32x32xf32>
    %cst_124 = arith.constant dense<0.000000e+00> : vector<8x32xf32>
    %239 = tpu.matmul %0, %238, %cst_124 {dimension_numbers = #tpu.dot_dimension_numbers<[1], [0], [0], [1], [0, 0, 1, 1], [], []>} : vector<8x32xf32>, vector<32x32xf32>, vector<8x32xf32> -> vector<8x32xf32>
    %c0_125 = arith.constant 0 : index
    %c0_126 = arith.constant 0 : index
    %240 = vector.load %arg29[%c0_125, %c0_126] : memref<4x32xf32, #tpu.memory_space<vmem>>, vector<4x32xf32>
    %cst_127 = arith.constant dense<0.000000e+00> : vector<8x32xf32>
    %241 = tpu.matmul %237, %240, %cst_127 {dimension_numbers = #tpu.dot_dimension_numbers<[1], [0], [0], [1], [0, 0, 1, 1], [], []>} : vector<8x4xf32>, vector<4x32xf32>, vector<8x32xf32> -> vector<8x32xf32>
    %242 = arith.addf %239, %241 : vector<8x32xf32>
    %c0_128 = arith.constant 0 : index
    %c0_129 = arith.constant 0 : index
    %243 = vector.load %arg30[%c0_128, %c0_129] : memref<1x32xf32, #tpu.memory_space<vmem>>, vector<1x32xf32>
    %244 = vector.broadcast %243 : vector<1x32xf32> to vector<8x32xf32>
    %245 = arith.addf %242, %244 : vector<8x32xf32>
    %cst_130 = arith.constant 0.000000e+00 : f32
    %246 = vector.broadcast %cst_130 : f32 to vector<8x32xf32>
    %247 = arith.cmpf oge, %245, %246 : vector<8x32xf32>
    %cst_131 = arith.constant 0.00999999977 : f32
    %248 = vector.broadcast %cst_131 : f32 to vector<8x32xf32>
    %249 = arith.mulf %248, %245 : vector<8x32xf32>
    %250 = arith.select %247, %245, %249 : vector<8x32xi1>, vector<8x32xf32>
    %c0_132 = arith.constant 0 : index
    %c0_133 = arith.constant 0 : index
    %251 = vector.load %arg31[%c0_132, %c0_133] : memref<32x32xf32, #tpu.memory_space<vmem>>, vector<32x32xf32>
    %cst_134 = arith.constant dense<0.000000e+00> : vector<8x32xf32>
    %252 = tpu.matmul %250, %251, %cst_134 {dimension_numbers = #tpu.dot_dimension_numbers<[1], [0], [0], [1], [0, 0, 1, 1], [], []>} : vector<8x32xf32>, vector<32x32xf32>, vector<8x32xf32> -> vector<8x32xf32>
    %c0_135 = arith.constant 0 : index
    %c0_136 = arith.constant 0 : index
    %253 = vector.load %arg32[%c0_135, %c0_136] : memref<1x32xf32, #tpu.memory_space<vmem>>, vector<1x32xf32>
    %254 = vector.broadcast %253 : vector<1x32xf32> to vector<8x32xf32>
    %255 = arith.addf %252, %254 : vector<8x32xf32>
    %cst_137 = arith.constant 0.000000e+00 : f32
    %256 = vector.broadcast %cst_137 : f32 to vector<8x32xf32>
    %257 = arith.cmpf oge, %255, %256 : vector<8x32xf32>
    %cst_138 = arith.constant 0.00999999977 : f32
    %258 = vector.broadcast %cst_138 : f32 to vector<8x32xf32>
    %259 = arith.mulf %258, %255 : vector<8x32xf32>
    %260 = arith.select %257, %255, %259 : vector<8x32xi1>, vector<8x32xf32>
    %c0_139 = arith.constant 0 : index
    %c0_140 = arith.constant 0 : index
    %261 = vector.load %arg33[%c0_139, %c0_140] : memref<32x16xf32, #tpu.memory_space<vmem>>, vector<32x16xf32>
    %c0_141 = arith.constant 0 : index
    %c0_142 = arith.constant 0 : index
    %262 = vector.load %arg34[%c0_141, %c0_142] : memref<1x16xf32, #tpu.memory_space<vmem>>, vector<1x16xf32>
    %c0_143 = arith.constant 0 : index
    %c0_144 = arith.constant 0 : index
    %263 = vector.load %arg35[%c0_143, %c0_144] : memref<32x16xf32, #tpu.memory_space<vmem>>, vector<32x16xf32>
    %c0_145 = arith.constant 0 : index
    %c0_146 = arith.constant 0 : index
    %264 = vector.load %arg36[%c0_145, %c0_146] : memref<1x16xf32, #tpu.memory_space<vmem>>, vector<1x16xf32>
    %c0_147 = arith.constant 0 : index
    %c0_148 = arith.constant 0 : index
    %265 = vector.load %arg37[%c0_147, %c0_148] : memref<16x1xf32, #tpu.memory_space<vmem>>, vector<16x1xf32>
    %c0_149 = arith.constant 0 : index
    %c0_150 = arith.constant 0 : index
    %266 = vector.load %arg38[%c0_149, %c0_150] : memref<1x1xf32, #tpu.memory_space<vmem>>, vector<1x1xf32>
    %cst_151 = arith.constant dense<0.000000e+00> : vector<8x16xf32>
    %267 = tpu.matmul %260, %261, %cst_151 {dimension_numbers = #tpu.dot_dimension_numbers<[1], [0], [0], [1], [0, 0, 1, 1], [], []>} : vector<8x32xf32>, vector<32x16xf32>, vector<8x16xf32> -> vector<8x16xf32>
    %268 = vector.broadcast %262 : vector<1x16xf32> to vector<8x16xf32>
    %269 = arith.addf %267, %268 : vector<8x16xf32>
    %270 = math.tanh %269 : vector<8x16xf32>
    %cst_152 = arith.constant dense<0.000000e+00> : vector<8x16xf32>
    %271 = tpu.matmul %260, %263, %cst_152 {dimension_numbers = #tpu.dot_dimension_numbers<[1], [0], [0], [1], [0, 0, 1, 1], [], []>} : vector<8x32xf32>, vector<32x16xf32>, vector<8x16xf32> -> vector<8x16xf32>
    %272 = vector.broadcast %264 : vector<1x16xf32> to vector<8x16xf32>
    %273 = arith.addf %271, %272 : vector<8x16xf32>
    %cst_153 = arith.constant 0.000000e+00 : f32
    %274 = vector.broadcast %cst_153 : f32 to vector<8x16xf32>
    %275 = arith.cmpf oge, %273, %274 : vector<8x16xf32>
    %cst_154 = arith.constant 0.00999999977 : f32
    %276 = vector.broadcast %cst_154 : f32 to vector<8x16xf32>
    %277 = arith.mulf %276, %273 : vector<8x16xf32>
    %278 = arith.select %275, %273, %277 : vector<8x16xi1>, vector<8x16xf32>
    %279 = arith.mulf %270, %278 : vector<8x16xf32>
    %cst_155 = arith.constant dense<0.000000e+00> : vector<8x1xf32>
    %280 = tpu.matmul %279, %265, %cst_155 {dimension_numbers = #tpu.dot_dimension_numbers<[1], [0], [0], [1], [0, 0, 1, 1], [], []>} : vector<8x16xf32>, vector<16x1xf32>, vector<8x1xf32> -> vector<8x1xf32>
    %281 = vector.broadcast %266 : vector<1x1xf32> to vector<8x1xf32>
    %282 = arith.addf %280, %281 : vector<8x1xf32>
    %cst_156 = arith.constant 0.000000e+00 : f32
    %283 = vector.broadcast %cst_156 : f32 to vector<8x1xf32>
    %284 = arith.cmpf oge, %282, %283 : vector<8x1xf32>
    %cst_157 = arith.constant 0.00999999977 : f32
    %285 = vector.broadcast %cst_157 : f32 to vector<8x1xf32>
    %286 = arith.mulf %285, %282 : vector<8x1xf32>
    %287 = arith.select %284, %282, %286 : vector<8x1xi1>, vector<8x1xf32>
    %cst_158 = arith.constant dense<0xFF800000> : vector<1xf32>
    %288 = vector.multi_reduction <maximumf>, %287, %cst_158 [0] : vector<8x1xf32> to vector<1xf32>
    %289 = vector.shape_cast %288 : vector<1xf32> to vector<1x1xf32>
    %290 = vector.broadcast %289 : vector<1x1xf32> to vector<8x1xf32>
    %291 = arith.subf %287, %290 : vector<8x1xf32>
    %292 = math.exp %291 : vector<8x1xf32>
    %cst_159 = arith.constant dense<0.000000e+00> : vector<1xf32>
    %293 = vector.multi_reduction <add>, %292, %cst_159 [0] : vector<8x1xf32> to vector<1xf32>
    %294 = vector.shape_cast %293 : vector<1xf32> to vector<1x1xf32>
    %295 = tpu.reciprocal %294 {approx = true} : vector<1x1xf32> -> vector<1x1xf32>
    %296 = vector.broadcast %295 : vector<1x1xf32> to vector<8x1xf32>
    %297 = arith.mulf %292, %296 : vector<8x1xf32>
    %cst_160 = arith.constant dense<0.000000e+00> : vector<1x32xf32>
    %298 = tpu.matmul %297, %260, %cst_160 {dimension_numbers = #tpu.dot_dimension_numbers<[0], [0], [1], [1], [0, 1, 1, 1], [], []>} : vector<8x1xf32>, vector<8x32xf32>, vector<1x32xf32> -> vector<1x32xf32>
    %c0_161 = arith.constant 0 : index
    %c0_162 = arith.constant 0 : index
    %299 = vector.load %arg39[%c0_161, %c0_162] : memref<32x32xf32, #tpu.memory_space<vmem>>, vector<32x32xf32>
    %cst_163 = arith.constant dense<0.000000e+00> : vector<1x32xf32>
    %300 = tpu.matmul %298, %299, %cst_163 {dimension_numbers = #tpu.dot_dimension_numbers<[1], [0], [0], [1], [0, 0, 1, 1], [], []>} : vector<1x32xf32>, vector<32x32xf32>, vector<1x32xf32> -> vector<1x32xf32>
    %c0_164 = arith.constant 0 : index
    %c0_165 = arith.constant 0 : index
    %301 = vector.load %arg40[%c0_164, %c0_165] : memref<1x32xf32, #tpu.memory_space<vmem>>, vector<1x32xf32>
    %302 = arith.addf %300, %301 : vector<1x32xf32>
    %cst_166 = arith.constant 0.000000e+00 : f32
    %303 = vector.broadcast %cst_166 : f32 to vector<1x32xf32>
    %304 = arith.cmpf oge, %302, %303 : vector<1x32xf32>
    %cst_167 = arith.constant 0.00999999977 : f32
    %305 = vector.broadcast %cst_167 : f32 to vector<1x32xf32>
    %306 = arith.mulf %305, %302 : vector<1x32xf32>
    %307 = arith.select %304, %302, %306 : vector<1x32xi1>, vector<1x32xf32>
    %c0_168 = arith.constant 0 : index
    %c0_169 = arith.constant 0 : index
    %308 = vector.load %arg41[%c0_168, %c0_169] : memref<32x32xf32, #tpu.memory_space<vmem>>, vector<32x32xf32>
    %cst_170 = arith.constant dense<0.000000e+00> : vector<8x32xf32>
    %309 = tpu.matmul %250, %308, %cst_170 {dimension_numbers = #tpu.dot_dimension_numbers<[1], [0], [0], [1], [0, 0, 1, 1], [], []>} : vector<8x32xf32>, vector<32x32xf32>, vector<8x32xf32> -> vector<8x32xf32>
    %c0_171 = arith.constant 0 : index
    %c0_172 = arith.constant 0 : index
    %310 = vector.load %arg42[%c0_171, %c0_172] : memref<32x32xf32, #tpu.memory_space<vmem>>, vector<32x32xf32>
    %cst_173 = arith.constant dense<0.000000e+00> : vector<1x32xf32>
    %311 = tpu.matmul %307, %310, %cst_173 {dimension_numbers = #tpu.dot_dimension_numbers<[1], [0], [0], [1], [0, 0, 1, 1], [], []>} : vector<1x32xf32>, vector<32x32xf32>, vector<1x32xf32> -> vector<1x32xf32>
    %312 = vector.broadcast %311 : vector<1x32xf32> to vector<8x32xf32>
    %313 = arith.addf %309, %312 : vector<8x32xf32>
    %c0_174 = arith.constant 0 : index
    %c0_175 = arith.constant 0 : index
    %314 = vector.load %arg43[%c0_174, %c0_175] : memref<1x32xf32, #tpu.memory_space<vmem>>, vector<1x32xf32>
    %315 = vector.broadcast %314 : vector<1x32xf32> to vector<8x32xf32>
    %316 = arith.addf %313, %315 : vector<8x32xf32>
    %cst_176 = arith.constant 0.000000e+00 : f32
    %317 = vector.broadcast %cst_176 : f32 to vector<8x32xf32>
    %318 = arith.cmpf oge, %316, %317 : vector<8x32xf32>
    %cst_177 = arith.constant 0.00999999977 : f32
    %319 = vector.broadcast %cst_177 : f32 to vector<8x32xf32>
    %320 = arith.mulf %319, %316 : vector<8x32xf32>
    %321 = arith.select %318, %316, %320 : vector<8x32xi1>, vector<8x32xf32>
    %c0_178 = arith.constant 0 : index
    %c0_179 = arith.constant 0 : index
    %322 = vector.load %arg44[%c0_178, %c0_179] : memref<32x16xf32, #tpu.memory_space<vmem>>, vector<32x16xf32>
    %c0_180 = arith.constant 0 : index
    %c0_181 = arith.constant 0 : index
    %323 = vector.load %arg45[%c0_180, %c0_181] : memref<1x16xf32, #tpu.memory_space<vmem>>, vector<1x16xf32>
    %c0_182 = arith.constant 0 : index
    %c0_183 = arith.constant 0 : index
    %324 = vector.load %arg46[%c0_182, %c0_183] : memref<32x16xf32, #tpu.memory_space<vmem>>, vector<32x16xf32>
    %c0_184 = arith.constant 0 : index
    %c0_185 = arith.constant 0 : index
    %325 = vector.load %arg47[%c0_184, %c0_185] : memref<1x16xf32, #tpu.memory_space<vmem>>, vector<1x16xf32>
    %c0_186 = arith.constant 0 : index
    %c0_187 = arith.constant 0 : index
    %326 = vector.load %arg48[%c0_186, %c0_187] : memref<16x1xf32, #tpu.memory_space<vmem>>, vector<16x1xf32>
    %c0_188 = arith.constant 0 : index
    %c0_189 = arith.constant 0 : index
    %327 = vector.load %arg49[%c0_188, %c0_189] : memref<1x1xf32, #tpu.memory_space<vmem>>, vector<1x1xf32>
    %cst_190 = arith.constant dense<0.000000e+00> : vector<8x16xf32>
    %328 = tpu.matmul %321, %322, %cst_190 {dimension_numbers = #tpu.dot_dimension_numbers<[1], [0], [0], [1], [0, 0, 1, 1], [], []>} : vector<8x32xf32>, vector<32x16xf32>, vector<8x16xf32> -> vector<8x16xf32>
    %329 = vector.broadcast %323 : vector<1x16xf32> to vector<8x16xf32>
    %330 = arith.addf %328, %329 : vector<8x16xf32>
    %331 = math.tanh %330 : vector<8x16xf32>
    %cst_191 = arith.constant dense<0.000000e+00> : vector<8x16xf32>
    %332 = tpu.matmul %321, %324, %cst_191 {dimension_numbers = #tpu.dot_dimension_numbers<[1], [0], [0], [1], [0, 0, 1, 1], [], []>} : vector<8x32xf32>, vector<32x16xf32>, vector<8x16xf32> -> vector<8x16xf32>
    %333 = vector.broadcast %325 : vector<1x16xf32> to vector<8x16xf32>
    %334 = arith.addf %332, %333 : vector<8x16xf32>
    %cst_192 = arith.constant 0.000000e+00 : f32
    %335 = vector.broadcast %cst_192 : f32 to vector<8x16xf32>
    %336 = arith.cmpf oge, %334, %335 : vector<8x16xf32>
    %cst_193 = arith.constant 0.00999999977 : f32
    %337 = vector.broadcast %cst_193 : f32 to vector<8x16xf32>
    %338 = arith.mulf %337, %334 : vector<8x16xf32>
    %339 = arith.select %336, %334, %338 : vector<8x16xi1>, vector<8x16xf32>
    %340 = arith.mulf %331, %339 : vector<8x16xf32>
    %cst_194 = arith.constant dense<0.000000e+00> : vector<8x1xf32>
    %341 = tpu.matmul %340, %326, %cst_194 {dimension_numbers = #tpu.dot_dimension_numbers<[1], [0], [0], [1], [0, 0, 1, 1], [], []>} : vector<8x16xf32>, vector<16x1xf32>, vector<8x1xf32> -> vector<8x1xf32>
    %342 = vector.broadcast %327 : vector<1x1xf32> to vector<8x1xf32>
    %343 = arith.addf %341, %342 : vector<8x1xf32>
    %cst_195 = arith.constant 0.000000e+00 : f32
    %344 = vector.broadcast %cst_195 : f32 to vector<8x1xf32>
    %345 = arith.cmpf oge, %343, %344 : vector<8x1xf32>
    %cst_196 = arith.constant 0.00999999977 : f32
    %346 = vector.broadcast %cst_196 : f32 to vector<8x1xf32>
    %347 = arith.mulf %346, %343 : vector<8x1xf32>
    %348 = arith.select %345, %343, %347 : vector<8x1xi1>, vector<8x1xf32>
    %cst_197 = arith.constant dense<0xFF800000> : vector<1xf32>
    %349 = vector.multi_reduction <maximumf>, %348, %cst_197 [0] : vector<8x1xf32> to vector<1xf32>
    %350 = vector.shape_cast %349 : vector<1xf32> to vector<1x1xf32>
    %351 = vector.broadcast %350 : vector<1x1xf32> to vector<8x1xf32>
    %352 = arith.subf %348, %351 : vector<8x1xf32>
    %353 = math.exp %352 : vector<8x1xf32>
    %cst_198 = arith.constant dense<0.000000e+00> : vector<1xf32>
    %354 = vector.multi_reduction <add>, %353, %cst_198 [0] : vector<8x1xf32> to vector<1xf32>
    %355 = vector.shape_cast %354 : vector<1xf32> to vector<1x1xf32>
    %356 = tpu.reciprocal %355 {approx = true} : vector<1x1xf32> -> vector<1x1xf32>
    %357 = vector.broadcast %356 : vector<1x1xf32> to vector<8x1xf32>
    %358 = arith.mulf %353, %357 : vector<8x1xf32>
    %cst_199 = arith.constant dense<0.000000e+00> : vector<1x32xf32>
    %359 = tpu.matmul %358, %321, %cst_199 {dimension_numbers = #tpu.dot_dimension_numbers<[0], [0], [1], [1], [0, 1, 1, 1], [], []>} : vector<8x1xf32>, vector<8x32xf32>, vector<1x32xf32> -> vector<1x32xf32>
    %c0_200 = arith.constant 0 : index
    %c0_201 = arith.constant 0 : index
    %360 = vector.load %arg50[%c0_200, %c0_201] : memref<32x64xf32, #tpu.memory_space<vmem>>, vector<32x64xf32>
    %cst_202 = arith.constant dense<0.000000e+00> : vector<1x64xf32>
    %361 = tpu.matmul %359, %360, %cst_202 {dimension_numbers = #tpu.dot_dimension_numbers<[1], [0], [0], [1], [0, 0, 1, 1], [], []>} : vector<1x32xf32>, vector<32x64xf32>, vector<1x64xf32> -> vector<1x64xf32>
    %c0_203 = arith.constant 0 : index
    %c0_204 = arith.constant 0 : index
    %362 = vector.load %arg51[%c0_203, %c0_204] : memref<1x64xf32, #tpu.memory_space<vmem>>, vector<1x64xf32>
    %363 = arith.addf %361, %362 : vector<1x64xf32>
    %cst_205 = arith.constant 0.000000e+00 : f32
    %364 = vector.broadcast %cst_205 : f32 to vector<1x64xf32>
    %365 = arith.cmpf oge, %363, %364 : vector<1x64xf32>
    %cst_206 = arith.constant 0.00999999977 : f32
    %366 = vector.broadcast %cst_206 : f32 to vector<1x64xf32>
    %367 = arith.mulf %366, %363 : vector<1x64xf32>
    %368 = arith.select %365, %363, %367 : vector<1x64xi1>, vector<1x64xf32>
    %c0_207 = arith.constant 0 : index
    %c0_208 = arith.constant 0 : index
    %369 = vector.load %arg52[%c0_207, %c0_208] : memref<64x32xf32, #tpu.memory_space<vmem>>, vector<64x32xf32>
    %cst_209 = arith.constant dense<0.000000e+00> : vector<1x32xf32>
    %370 = tpu.matmul %368, %369, %cst_209 {dimension_numbers = #tpu.dot_dimension_numbers<[1], [0], [0], [1], [0, 0, 1, 1], [], []>} : vector<1x64xf32>, vector<64x32xf32>, vector<1x32xf32> -> vector<1x32xf32>
    %c0_210 = arith.constant 0 : index
    %c0_211 = arith.constant 0 : index
    %371 = vector.load %arg53[%c0_210, %c0_211] : memref<1x32xf32, #tpu.memory_space<vmem>>, vector<1x32xf32>
    %372 = arith.addf %370, %371 : vector<1x32xf32>
    %cst_212 = arith.constant 0.000000e+00 : f32
    %373 = vector.broadcast %cst_212 : f32 to vector<1x32xf32>
    %374 = arith.cmpf oge, %372, %373 : vector<1x32xf32>
    %cst_213 = arith.constant 0.00999999977 : f32
    %375 = vector.broadcast %cst_213 : f32 to vector<1x32xf32>
    %376 = arith.mulf %375, %372 : vector<1x32xf32>
    %377 = arith.select %374, %372, %376 : vector<1x32xi1>, vector<1x32xf32>
    %c0_214 = arith.constant 0 : index
    %c0_215 = arith.constant 0 : index
    %378 = vector.load %arg54[%c0_214, %c0_215] : memref<32x1xf32, #tpu.memory_space<vmem>>, vector<32x1xf32>
    %cst_216 = arith.constant dense<0.000000e+00> : vector<1x1xf32>
    %379 = tpu.matmul %377, %378, %cst_216 {dimension_numbers = #tpu.dot_dimension_numbers<[1], [0], [0], [1], [0, 0, 1, 1], [], []>} : vector<1x32xf32>, vector<32x1xf32>, vector<1x1xf32> -> vector<1x1xf32>
    %c0_217 = arith.constant 0 : index
    %c0_218 = arith.constant 0 : index
    %380 = vector.load %arg55[%c0_217, %c0_218] : memref<1x1xf32, #tpu.memory_space<vmem>>, vector<1x1xf32>
    %381 = arith.addf %379, %380 : vector<1x1xf32>
    %382 = math.absf %381 : vector<1x1xf32>
    %cst_219 = arith.constant 0.000000e+00 : f32
    %383 = vector.broadcast %cst_219 : f32 to vector<1x1xf32>
    %384 = arith.subf %383, %382 : vector<1x1xf32>
    %385 = math.exp %384 : vector<1x1xf32>
    %cst_220 = arith.constant 0.000000e+00 : f32
    %386 = vector.broadcast %cst_220 : f32 to vector<1x1xf32>
    %387 = arith.cmpf oge, %381, %386 : vector<1x1xf32>
    %cst_221 = arith.constant 1.000000e+00 : f32
    %388 = vector.broadcast %cst_221 : f32 to vector<1x1xf32>
    %389 = arith.select %387, %388, %385 : vector<1x1xi1>, vector<1x1xf32>
    %cst_222 = arith.constant 1.000000e+00 : f32
    %390 = vector.broadcast %cst_222 : f32 to vector<1x1xf32>
    %391 = arith.addf %390, %385 : vector<1x1xf32>
    %392 = arith.divf %389, %391 : vector<1x1xf32>
    %cst_223 = arith.constant 9.99999974E-6 : f32
    %cst_224 = arith.constant 0.999989986 : f32
    %393 = vector.broadcast %cst_223 : f32 to vector<1x1xf32>
    %394 = arith.maximumf %393, %392 : vector<1x1xf32>
    %395 = vector.broadcast %cst_224 : f32 to vector<1x1xf32>
    %396 = arith.minimumf %395, %394 : vector<1x1xf32>
    %c0_225 = arith.constant 0 : index
    %c0_226 = arith.constant 0 : index
    %397 = vector.load %arg56[%c0_225, %c0_226] : memref<1x1xf32, #tpu.memory_space<vmem>>, vector<1x1xf32>
    tpu.vector_store %arg56[%c0_225, %c0_226], %396 {strides = array<i32>} : memref<1x1xf32, #tpu.memory_space<vmem>>, vector<1x1xf32>,
    %c0_227 = arith.constant 0 : index
    %c0_228 = arith.constant 0 : index
    %398 = vector.load %arg57[%c0_227, %c0_228] : memref<8x1xf32, #tpu.memory_space<vmem>>, vector<8x1xf32>
    tpu.vector_store %arg57[%c0_227, %c0_228], %358 {strides = array<i32>} : memref<8x1xf32, #tpu.memory_space<vmem>>, vector<8x1xf32>,
    return
  }
}

</mosaic_0001>

<llo_original>
// kernel: dkmil_forward.3
$region0: #{dkmil_forward.3}
  #allocation0 [shape = 'u32[]', space=smem, size = 0x4, offset = 0x4, fixed_abs, tag = 'smem constant byte address 0x4 - core index']
  #allocation1 [shape = 'u32[72,128]{1,0:T(1,128)}', space=vmem, size = 0x9000, scoped, tag = 'internal scratch']
  %s0 = inlined_call_operand.vmem [shape: f32[504,25], index: 0, kind: input, shape index: {}]
  %s1 = inlined_call_operand.vmem [shape: f32[504,25], index: 1, kind: input, shape index: {}]
  %s2 = inlined_call_operand.vmem [shape: f32[504,25], index: 2, kind: input, shape index: {}]
  %s3 = inlined_call_operand.vmem [shape: f32[504,25], index: 3, kind: input, shape index: {}]
  %s4 = inlined_call_operand.vmem [shape: f32[25,20], index: 4, kind: input, shape index: {}]
  %s5 = inlined_call_operand.vmem [shape: f32[1,20], index: 5, kind: input, shape index: {}]
  %s6 = inlined_call_operand.vmem [shape: f32[504,20], index: 6, kind: output, shape index: {}]
  %s7 = sld [smem:[#allocation0]]
  $region34: #{dkmil_forward.3} parent=0
    _
  %s9 = ssub.s32 1, %s7
  %s10 = scalar_select 0, %s9, %s7
  // Predicated region
  $region2: #{dkmil_forward.3} parent=0 // pred_check
    _
  $region3: #{dkmil_forward.3} parent=0 // pred_check_branch
    %12 = sbr.rel (0) target = $region5
  $region4: #{dkmil_forward.3} parent=0 // pred_region
    _
  $region5: #{dkmil_forward.3} parent=0 // pred_fallthru
    _
  // Predicated region
  $region6: #{dkmil_forward.3} parent=0 // pred_check
    _
  $region7: #{dkmil_forward.3} parent=0 // pred_check_branch
    %14 = sbr.rel (0) target = $region9
  $region8: #{dkmil_forward.3} parent=0 // pred_region
    _
  $region9: #{dkmil_forward.3} parent=0 // pred_fallthru
    _
  // Predicated region
  $region10: #{dkmil_forward.3} parent=0 // pred_check
    _
  $region11: #{dkmil_forward.3} parent=0 // pred_check_branch
    %16 = sbr.rel (0) target = $region13
  $region12: #{dkmil_forward.3} parent=0 // pred_region
    _
  $region13: #{dkmil_forward.3} parent=0 // pred_fallthru
    _
  // Predicated region
  $region14: #{dkmil_forward.3} parent=0 // pred_check
    _
  $region15: #{dkmil_forward.3} parent=0 // pred_check_branch
    %18 = sbr.rel (0) target = $region17
  $region16: #{dkmil_forward.3} parent=0 // pred_region
    _
  $region17: #{dkmil_forward.3} parent=0 // pred_fallthru
    _
  // Predicated region
  $region18: #{dkmil_forward.3} parent=0 // pred_check
    _
  $region19: #{dkmil_forward.3} parent=0 // pred_check_branch
    %20 = sbr.rel (0) target = $region21
  $region20: #{dkmil_forward.3} parent=0 // pred_region
    _
  $region21: #{dkmil_forward.3} parent=0 // pred_fallthru
    _
  // Predicated region
  $region22: #{dkmil_forward.3} parent=0 // pred_check
    _
  $region23: #{dkmil_forward.3} parent=0 // pred_check_branch
    %22 = sbr.rel (0) target = $region25
  $region24: #{dkmil_forward.3} parent=0 // pred_region
    _
  $region25: #{dkmil_forward.3} parent=0 // pred_fallthru
    _
  %v23 = vld [vmem:[%s4] sm:$0xff]
  %v24 = vld [vmem:[%s4 + $0x8] sm:$0xff]
  %v25 = vld [vmem:[%s4 + $0x10] sm:$0xff]
  %v26 = vld [vmem:[%s4 + $0x18] sm:$0x1]
  %v27 = vld [vmem:[%s5] sm:$0x1]
  %v28 = vld [vmem:[%s0] sm:$0xff]
  %v29 = vld [vmem:[%s0 + $0x8] sm:$0xff]
  %v30 = vld [vmem:[%s0 + $0x10] sm:$0xff]
  %v31 = vld [vmem:[%s0 + $0x18] sm:$0xff]
  %v32 = vld [vmem:[%s0 + $0x20] sm:$0xff]
  %v33 = vld [vmem:[%s0 + $0x28] sm:$0xff]
  %v34 = vld [vmem:[%s0 + $0x30] sm:$0xff]
  %v35 = vld [vmem:[%s0 + $0x38] sm:$0xff]
  %v36 = vld [vmem:[%s0 + $0x40] sm:$0xff]
  %v37 = vld [vmem:[%s0 + $0x48] sm:$0xff]
  %v38 = vld [vmem:[%s0 + $0x50] sm:$0xff]
  %v39 = vld [vmem:[%s0 + $0x58] sm:$0xff]
  %v40 = vld [vmem:[%s0 + $0x60] sm:$0xff]
  %v41 = vld [vmem:[%s0 + $0x68] sm:$0xff]
  %v42 = vld [vmem:[%s0 + $0x70] sm:$0xff]
  %v43 = vld [vmem:[%s0 + $0x78] sm:$0xff]
  %v44 = vld [vmem:[%s0 + $0x80] sm:$0xff]
  %v45 = vld [vmem:[%s0 + $0x88] sm:$0xff]
  %v46 = vld [vmem:[%s0 + $0x90] sm:$0xff]
  %v47 = vld [vmem:[%s0 + $0x98] sm:$0xff]
  %v48 = vld [vmem:[%s0 + $0xa0] sm:$0xff]
  %v49 = vld [vmem:[%s0 + $0xa8] sm:$0xff]
  %v50 = vld [vmem:[%s0 + $0xb0] sm:$0xff]
  %v51 = vld [vmem:[%s0 + $0xb8] sm:$0xff]
  %v52 = vld [vmem:[%s0 + $0xc0] sm:$0xff]
  %v53 = vld [vmem:[%s0 + $0xc8] sm:$0xff]
  %v54 = vld [vmem:[%s0 + $0xd0] sm:$0xff]
  %v55 = vld [vmem:[%s0 + $0xd8] sm:$0xff]
  %v56 = vld [vmem:[%s0 + $0xe0] sm:$0xff]
  %v57 = vld [vmem:[%s0 + $0xe8] sm:$0xff]
  %v58 = vld [vmem:[%s0 + $0xf0] sm:$0xff]
  %v59 = vld [vmem:[%s0 + $0xf8] sm:$0xff]
  %v60 = vld [vmem:[%s0 + $0x100] sm:$0xff]
  %v61 = vld [vmem:[%s0 + $0x108] sm:$0xff]
  %v62 = vld [vmem:[%s0 + $0x110] sm:$0xff]
  %v63 = vld [vmem:[%s0 + $0x118] sm:$0xff]
  %v64 = vld [vmem:[%s0 + $0x120] sm:$0xff]
  %v65 = vld [vmem:[%s0 + $0x128] sm:$0xff]
  %v66 = vld [vmem:[%s0 + $0x130] sm:$0xff]
  %v67 = vld [vmem:[%s0 + $0x138] sm:$0xff]
  %v68 = vld [vmem:[%s0 + $0x140] sm:$0xff]
  %v69 = vld [vmem:[%s0 + $0x148] sm:$0xff]
  %v70 = vld [vmem:[%s0 + $0x150] sm:$0xff]
  %v71 = vld [vmem:[%s0 + $0x158] sm:$0xff]
  %v72 = vld [vmem:[%s0 + $0x160] sm:$0xff]
  %v73 = vld [vmem:[%s0 + $0x168] sm:$0xff]
  %v74 = vld [vmem:[%s0 + $0x170] sm:$0xff]
  %v75 = vld [vmem:[%s0 + $0x178] sm:$0xff]
  %v76 = vld [vmem:[%s0 + $0x180] sm:$0xff]
  %v77 = vld [vmem:[%s0 + $0x188] sm:$0xff]
  %v78 = vld [vmem:[%s0 + $0x190] sm:$0xff]
  %v79 = vld [vmem:[%s0 + $0x198] sm:$0xff]
  %v80 = vld [vmem:[%s0 + $0x1a0] sm:$0xff]
  %v81 = vld [vmem:[%s0 + $0x1a8] sm:$0xff]
  %v82 = vld [vmem:[%s0 + $0x1b0] sm:$0xff]
  %v83 = vld [vmem:[%s0 + $0x1b8] sm:$0xff]
  %v84 = vld [vmem:[%s0 + $0x1c0] sm:$0xff]
  %v85 = vld [vmem:[%s0 + $0x1c8] sm:$0xff]
  %v86 = vld [vmem:[%s0 + $0x1d0] sm:$0xff]
  %v87 = vld [vmem:[%s0 + $0x1d8] sm:$0xff]
  %v88 = vld [vmem:[%s0 + $0x1e0] sm:$0xff]
  %v89 = vld [vmem:[%s0 + $0x1e8] sm:$0xff]
  %v90 = vld [vmem:[%s0 + $0x1f0] sm:$0xff]
  %v92 = vperm.slane %v27, 0
  %vm94 = vcmask 203776
  %v96 = vsel %vm94, %v28, 0
  %v99 = vsel %vm94, %v29, 0
  %v102 = vsel %vm94, %v30, 0
  %v105 = vsel %vm94, %v31, 0
  %v108 = vsel %vm94, %v32, 0
  %v111 = vsel %vm94, %v33, 0
  %v114 = vsel %vm94, %v34, 0
  %v117 = vsel %vm94, %v35, 0
  %v120 = vsel %vm94, %v36, 0
  %v123 = vsel %vm94, %v37, 0
  %v126 = vsel %vm94, %v38, 0
  %v129 = vsel %vm94, %v39, 0
  %v132 = vsel %vm94, %v40, 0
  %v135 = vsel %vm94, %v41, 0
  %v138 = vsel %vm94, %v42, 0
  %v141 = vsel %vm94, %v43, 0
  %v144 = vsel %vm94, %v44, 0
  %v147 = vsel %vm94, %v45, 0
  %v150 = vsel %vm94, %v46, 0
  %v153 = vsel %vm94, %v47, 0
  %v156 = vsel %vm94, %v48, 0
  %v159 = vsel %vm94, %v49, 0
  %v162 = vsel %vm94, %v50, 0
  %v165 = vsel %vm94, %v51, 0
  %v168 = vsel %vm94, %v52, 0
  %v171 = vsel %vm94, %v53, 0
  %v174 = vsel %vm94, %v54, 0
  %v177 = vsel %vm94, %v55, 0
  %v180 = vsel %vm94, %v56, 0
  %v183 = vsel %vm94, %v57, 0
  %v186 = vsel %vm94, %v58, 0
  %v189 = vsel %vm94, %v59, 0
  %v192 = vsel %vm94, %v60, 0
  %v195 = vsel %vm94, %v61, 0
  %v198 = vsel %vm94, %v62, 0
  %v201 = vsel %vm94, %v63, 0
  %v204 = vsel %vm94, %v64, 0
  %v207 = vsel %vm94, %v65, 0
  %v210 = vsel %vm94, %v66, 0
  %v213 = vsel %vm94, %v67, 0
  %v216 = vsel %vm94, %v68, 0
  %v219 = vsel %vm94, %v69, 0
  %v222 = vsel %vm94, %v70, 0
  %v225 = vsel %vm94, %v71, 0
  %v228 = vsel %vm94, %v72, 0
  %v231 = vsel %vm94, %v73, 0
  %v234 = vsel %vm94, %v74, 0
  %v237 = vsel %vm94, %v75, 0
  %v240 = vsel %vm94, %v76, 0
  %v243 = vsel %vm94, %v77, 0
  %v246 = vsel %vm94, %v78, 0
  %v249 = vsel %vm94, %v79, 0
  %v252 = vsel %vm94, %v80, 0
  %v255 = vsel %vm94, %v81, 0
  %v258 = vsel %vm94, %v82, 0
  %v261 = vsel %vm94, %v83, 0
  %v264 = vsel %vm94, %v84, 0
  %v267 = vsel %vm94, %v85, 0
  %v270 = vsel %vm94, %v86, 0
  %v273 = vsel %vm94, %v87, 0
  %v276 = vsel %vm94, %v88, 0
  %v279 = vsel %vm94, %v89, 0
  %v282 = vsel %vm94, %v90, 0
  %vm284 = vcmask 1040384
  %v286 = vsel %vm284, %v26, 0
  %288 = vmatpush.msra.mxu0 0.0
  %289 = vmatpush.msra.mxu0 0.0
  %290 = vmatpush.msra.mxu0 0.0
  %291 = vmatpush.msra.mxu0 0.0
  %292 = vmatpush.msra.mxu0 0.0
  %293 = vmatpush.msra.mxu0 0.0
  %294 = vmatpush.msra.mxu0 0.0
  %295 = vmatpush.msra.mxu0 0.0
  %296 = vmatpush.msra.mxu0 0.0
  %297 = vmatpush.msra.mxu0 0.0
  %298 = vmatpush.msra.mxu0 0.0
  %299 = vmatpush.msra.mxu0 0.0
  %300 = vmatpush.msra.mxu0 %v286
  %301 = vmatpush.msra.mxu0 %v25
  %302 = vmatpush.msra.mxu0 %v24
  %303 = vmatpush.msra.mxu0 %v23
  %304 = vmatmul.f32.gmra.mxu0 %v96
  %v305 = vpop.f32.mrf.mxu0
  %v306 = vadd.f32 %v92, %v305
  %307 = vmatmul.f32.gmra.mxu0 %v99
  %v308 = vpop.f32.mrf.mxu0
  %v309 = vadd.f32 %v92, %v308
  %310 = vmatmul.f32.gmra.mxu0 %v102
  %v311 = vpop.f32.mrf.mxu0
  %v312 = vadd.f32 %v92, %v311
  %313 = vmatmul.f32.gmra.mxu0 %v105
  %v314 = vpop.f32.mrf.mxu0
  %v315 = vadd.f32 %v92, %v314
  %316 = vmatmul.f32.gmra.mxu0 %v108
  %v317 = vpop.f32.mrf.mxu0
  %v318 = vadd.f32 %v92, %v317
  %319 = vmatmul.f32.gmra.mxu0 %v111
  %v320 = vpop.f32.mrf.mxu0
  %v321 = vadd.f32 %v92, %v320
  %322 = vmatmul.f32.gmra.mxu0 %v114
  %v323 = vpop.f32.mrf.mxu0
  %v324 = vadd.f32 %v92, %v323
  %325 = vmatmul.f32.gmra.mxu0 %v117
  %v326 = vpop.f32.mrf.mxu0
  %v327 = vadd.f32 %v92, %v326
  %328 = vmatmul.f32.gmra.mxu0 %v120
  %v329 = vpop.f32.mrf.mxu0
  %v330 = vadd.f32 %v92, %v329
  %331 = vmatmul.f32.gmra.mxu0 %v123
  %v332 = vpop.f32.mrf.mxu0
  %v333 = vadd.f32 %v92, %v332
  %334 = vmatmul.f32.gmra.mxu0 %v126
  %v335 = vpop.f32.mrf.mxu0
  %v336 = vadd.f32 %v92, %v335
  %337 = vmatmul.f32.gmra.mxu0 %v129
  %v338 = vpop.f32.mrf.mxu0
  %v339 = vadd.f32 %v92, %v338
  %340 = vmatmul.f32.gmra.mxu0 %v132
  %v341 = vpop.f32.mrf.mxu0
  %v342 = vadd.f32 %v92, %v341
  %343 = vmatmul.f32.gmra.mxu0 %v135
  %v344 = vpop.f32.mrf.mxu0
  %v345 = vadd.f32 %v92, %v344
  %346 = vmatmul.f32.gmra.mxu0 %v138
  %v347 = vpop.f32.mrf.mxu0
  %v348 = vadd.f32 %v92, %v347
  %349 = vmatmul.f32.gmra.mxu0 %v141
  %v350 = vpop.f32.mrf.mxu0
  %v351 = vadd.f32 %v92, %v350
  %352 = vmatmul.f32.gmra.mxu0 %v144
  %v353 = vpop.f32.mrf.mxu0
  %v354 = vadd.f32 %v92, %v353
  %355 = vmatmul.f32.gmra.mxu0 %v147
  %v356 = vpop.f32.mrf.mxu0
  %v357 = vadd.f32 %v92, %v356
  %358 = vmatmul.f32.gmra.mxu0 %v150
  %v359 = vpop.f32.mrf.mxu0
  %v360 = vadd.f32 %v92, %v359
  %361 = vmatmul.f32.gmra.mxu0 %v153
  %v362 = vpop.f32.mrf.mxu0
  %v363 = vadd.f32 %v92, %v362
  %364 = vmatmul.f32.gmra.mxu0 %v156
  %v365 = vpop.f32.mrf.mxu0
  %v366 = vadd.f32 %v92, %v365
  %367 = vmatmul.f32.gmra.mxu0 %v159
  %v368 = vpop.f32.mrf.mxu0
  %v369 = vadd.f32 %v92, %v368
  %370 = vmatmul.f32.gmra.mxu0 %v162
  %v371 = vpop.f32.mrf.mxu0
  %v372 = vadd.f32 %v92, %v371
  %373 = vmatmul.f32.gmra.mxu0 %v165
  %v374 = vpop.f32.mrf.mxu0
  %v375 = vadd.f32 %v92, %v374
  %376 = vmatmul.f32.gmra.mxu0 %v168
  %v377 = vpop.f32.mrf.mxu0
  %v378 = vadd.f32 %v92, %v377
  %379 = vmatmul.f32.gmra.mxu0 %v171
  %v380 = vpop.f32.mrf.mxu0
  %v381 = vadd.f32 %v92, %v380
  %382 = vmatmul.f32.gmra.mxu0 %v174
  %v383 = vpop.f32.mrf.mxu0
  %v384 = vadd.f32 %v92, %v383
  %385 = vmatmul.f32.gmra.mxu0 %v177
  %v386 = vpop.f32.mrf.mxu0
  %v387 = vadd.f32 %v92, %v386
  %388 = vmatmul.f32.gmra.mxu0 %v180
  %v389 = vpop.f32.mrf.mxu0
  %v390 = vadd.f32 %v92, %v389
  %391 = vmatmul.f32.gmra.mxu0 %v183
  %v392 = vpop.f32.mrf.mxu0
  %v393 = vadd.f32 %v92, %v392
  %394 = vmatmul.f32.gmra.mxu0 %v186
  %v395 = vpop.f32.mrf.mxu0
  %v396 = vadd.f32 %v92, %v395
  %397 = vmatmul.f32.gmra.mxu0 %v189
  %v398 = vpop.f32.mrf.mxu0
  %v399 = vadd.f32 %v92, %v398
  %400 = vmatmul.f32.gmra.mxu0 %v192
  %v401 = vpop.f32.mrf.mxu0
  %v402 = vadd.f32 %v92, %v401
  %403 = vmatmul.f32.gmra.mxu0 %v195
  %v404 = vpop.f32.mrf.mxu0
  %v405 = vadd.f32 %v92, %v404
  %406 = vmatmul.f32.gmra.mxu0 %v198
  %v407 = vpop.f32.mrf.mxu0
  %v408 = vadd.f32 %v92, %v407
  %409 = vmatmul.f32.gmra.mxu0 %v201
  %v410 = vpop.f32.mrf.mxu0
  %v411 = vadd.f32 %v92, %v410
  %412 = vmatmul.f32.gmra.mxu0 %v204
  %v413 = vpop.f32.mrf.mxu0
  %v414 = vadd.f32 %v92, %v413
  %415 = vmatmul.f32.gmra.mxu0 %v207
  %v416 = vpop.f32.mrf.mxu0
  %v417 = vadd.f32 %v92, %v416
  %418 = vmatmul.f32.gmra.mxu0 %v210
  %v419 = vpop.f32.mrf.mxu0
  %v420 = vadd.f32 %v92, %v419
  %421 = vmatmul.f32.gmra.mxu0 %v213
  %v422 = vpop.f32.mrf.mxu0
  %v423 = vadd.f32 %v92, %v422
  %424 = vmatmul.f32.gmra.mxu0 %v216
  %v425 = vpop.f32.mrf.mxu0
  %v426 = vadd.f32 %v92, %v425
  %427 = vmatmul.f32.gmra.mxu0 %v219
  %v428 = vpop.f32.mrf.mxu0
  %v429 = vadd.f32 %v92, %v428
  %430 = vmatmul.f32.gmra.mxu0 %v222
  %v431 = vpop.f32.mrf.mxu0
  %v432 = vadd.f32 %v92, %v431
  %433 = vmatmul.f32.gmra.mxu0 %v225
  %v434 = vpop.f32.mrf.mxu0
  %v435 = vadd.f32 %v92, %v434
  %436 = vmatmul.f32.gmra.mxu0 %v228
  %v437 = vpop.f32.mrf.mxu0
  %v438 = vadd.f32 %v92, %v437
  %439 = vmatmul.f32.gmra.mxu0 %v231
  %v440 = vpop.f32.mrf.mxu0
  %v441 = vadd.f32 %v92, %v440
  %442 = vmatmul.f32.gmra.mxu0 %v234
  %v443 = vpop.f32.mrf.mxu0
  %v444 = vadd.f32 %v92, %v443
  %445 = vmatmul.f32.gmra.mxu0 %v237
  %v446 = vpop.f32.mrf.mxu0
  %v447 = vadd.f32 %v92, %v446
  %448 = vmatmul.f32.gmra.mxu0 %v240
  %v449 = vpop.f32.mrf.mxu0
  %v450 = vadd.f32 %v92, %v449
  %451 = vmatmul.f32.gmra.mxu0 %v243
  %v452 = vpop.f32.mrf.mxu0
  %v453 = vadd.f32 %v92, %v452
  %454 = vmatmul.f32.gmra.mxu0 %v246
  %v455 = vpop.f32.mrf.mxu0
  %v456 = vadd.f32 %v92, %v455
  %457 = vmatmul.f32.gmra.mxu0 %v249
  %v458 = vpop.f32.mrf.mxu0
  %v459 = vadd.f32 %v92, %v458
  %460 = vmatmul.f32.gmra.mxu0 %v252
  %v461 = vpop.f32.mrf.mxu0
  %v462 = vadd.f32 %v92, %v461
  %463 = vmatmul.f32.gmra.mxu0 %v255
  %v464 = vpop.f32.mrf.mxu0
  %v465 = vadd.f32 %v92, %v464
  %466 = vmatmul.f32.gmra.mxu0 %v258
  %v467 = vpop.f32.mrf.mxu0
  %v468 = vadd.f32 %v92, %v467
  %469 = vmatmul.f32.gmra.mxu0 %v261
  %v470 = vpop.f32.mrf.mxu0
  %v471 = vadd.f32 %v92, %v470
  %472 = vmatmul.f32.gmra.mxu0 %v264
  %v473 = vpop.f32.mrf.mxu0
  %v474 = vadd.f32 %v92, %v473
  %475 = vmatmul.f32.gmra.mxu0 %v267
  %v476 = vpop.f32.mrf.mxu0
  %v477 = vadd.f32 %v92, %v476
  %478 = vmatmul.f32.gmra.mxu0 %v270
  %v479 = vpop.f32.mrf.mxu0
  %v480 = vadd.f32 %v92, %v479
  %481 = vmatmul.f32.gmra.mxu0 %v273
  %v482 = vpop.f32.mrf.mxu0
  %v483 = vadd.f32 %v92, %v482
  %484 = vmatmul.f32.gmra.mxu0 %v276
  %v485 = vpop.f32.mrf.mxu0
  %v486 = vadd.f32 %v92, %v485
  %487 = vmatmul.f32.gmra.mxu0 %v279
  %v488 = vpop.f32.mrf.mxu0
  %v489 = vadd.f32 %v92, %v488
  %490 = vmatmul.f32.gmra.mxu0 %v282
  %v491 = vpop.f32.mrf.mxu0
  %v492 = vadd.f32 %v92, %v491
  %493 = vdwg.mxu0
  %vm494 = vcmp.ge.f32.partialorder %v306, 0.0
  %vm495 = vcmp.ge.f32.partialorder %v309, 0.0
  %vm496 = vcmp.ge.f32.partialorder %v312, 0.0
  %vm497 = vcmp.ge.f32.partialorder %v315, 0.0
  %vm498 = vcmp.ge.f32.partialorder %v318, 0.0
  %vm499 = vcmp.ge.f32.partialorder %v321, 0.0
  %vm500 = vcmp.ge.f32.partialorder %v324, 0.0
  %vm501 = vcmp.ge.f32.partialorder %v327, 0.0
  %vm502 = vcmp.ge.f32.partialorder %v330, 0.0
  %vm503 = vcmp.ge.f32.partialorder %v333, 0.0
  %vm504 = vcmp.ge.f32.partialorder %v336, 0.0
  %vm505 = vcmp.ge.f32.partialorder %v339, 0.0
  %vm506 = vcmp.ge.f32.partialorder %v342, 0.0
  %vm507 = vcmp.ge.f32.partialorder %v345, 0.0
  %vm508 = vcmp.ge.f32.partialorder %v348, 0.0
  %vm509 = vcmp.ge.f32.partialorder %v351, 0.0
  %vm510 = vcmp.ge.f32.partialorder %v354, 0.0
  %vm511 = vcmp.ge.f32.partialorder %v357, 0.0
  %vm512 = vcmp.ge.f32.partialorder %v360, 0.0
  %vm513 = vcmp.ge.f32.partialorder %v363, 0.0
  %vm514 = vcmp.ge.f32.partialorder %v366, 0.0
  %vm515 = vcmp.ge.f32.partialorder %v369, 0.0
  %vm516 = vcmp.ge.f32.partialorder %v372, 0.0
  %vm517 = vcmp.ge.f32.partialorder %v375, 0.0
  %vm518 = vcmp.ge.f32.partialorder %v378, 0.0
  %vm519 = vcmp.ge.f32.partialorder %v381, 0.0
  %vm520 = vcmp.ge.f32.partialorder %v384, 0.0
  %vm521 = vcmp.ge.f32.partialorder %v387, 0.0
  %vm522 = vcmp.ge.f32.partialorder %v390, 0.0
  %vm523 = vcmp.ge.f32.partialorder %v393, 0.0
  %vm524 = vcmp.ge.f32.partialorder %v396, 0.0
  %vm525 = vcmp.ge.f32.partialorder %v399, 0.0
  %vm526 = vcmp.ge.f32.partialorder %v402, 0.0
  %vm527 = vcmp.ge.f32.partialorder %v405, 0.0
  %vm528 = vcmp.ge.f32.partialorder %v408, 0.0
  %vm529 = vcmp.ge.f32.partialorder %v411, 0.0
  %vm530 = vcmp.ge.f32.partialorder %v414, 0.0
  %vm531 = vcmp.ge.f32.partialorder %v417, 0.0
  %vm532 = vcmp.ge.f32.partialorder %v420, 0.0
  %vm533 = vcmp.ge.f32.partialorder %v423, 0.0
  %vm534 = vcmp.ge.f32.partialorder %v426, 0.0
  %vm535 = vcmp.ge.f32.partialorder %v429, 0.0
  %vm536 = vcmp.ge.f32.partialorder %v432, 0.0
  %vm537 = vcmp.ge.f32.partialorder %v435, 0.0
  %vm538 = vcmp.ge.f32.partialorder %v438, 0.0
  %vm539 = vcmp.ge.f32.partialorder %v441, 0.0
  %vm540 = vcmp.ge.f32.partialorder %v444, 0.0
  %vm541 = vcmp.ge.f32.partialorder %v447, 0.0
  %vm542 = vcmp.ge.f32.partialorder %v450, 0.0
  %vm543 = vcmp.ge.f32.partialorder %v453, 0.0
  %vm544 = vcmp.ge.f32.partialorder %v456, 0.0
  %vm545 = vcmp.ge.f32.partialorder %v459, 0.0
  %vm546 = vcmp.ge.f32.partialorder %v462, 0.0
  %vm547 = vcmp.ge.f32.partialorder %v465, 0.0
  %vm548 = vcmp.ge.f32.partialorder %v468, 0.0
  %vm549 = vcmp.ge.f32.partialorder %v471, 0.0
  %vm550 = vcmp.ge.f32.partialorder %v474, 0.0
  %vm551 = vcmp.ge.f32.partialorder %v477, 0.0
  %vm552 = vcmp.ge.f32.partialorder %v480, 0.0
  %vm553 = vcmp.ge.f32.partialorder %v483, 0.0
  %vm554 = vcmp.ge.f32.partialorder %v486, 0.0
  %vm555 = vcmp.ge.f32.partialorder %v489, 0.0
  %vm556 = vcmp.ge.f32.partialorder %v492, 0.0
  %v557 = vmul.f32 %v306, 0.01
  %v558 = vmul.f32 %v309, 0.01
  %v559 = vmul.f32 %v312, 0.01
  %v560 = vmul.f32 %v315, 0.01
  %v561 = vmul.f32 %v318, 0.01
  %v562 = vmul.f32 %v321, 0.01
  %v563 = vmul.f32 %v324, 0.01
  %v564 = vmul.f32 %v327, 0.01
  %v565 = vmul.f32 %v330, 0.01
  %v566 = vmul.f32 %v333, 0.01
  %v567 = vmul.f32 %v336, 0.01
  %v568 = vmul.f32 %v339, 0.01
  %v569 = vmul.f32 %v342, 0.01
  %v570 = vmul.f32 %v345, 0.01
  %v571 = vmul.f32 %v348, 0.01
  %v572 = vmul.f32 %v351, 0.01
  %v573 = vmul.f32 %v354, 0.01
  %v574 = vmul.f32 %v357, 0.01
  %v575 = vmul.f32 %v360, 0.01
  %v576 = vmul.f32 %v363, 0.01
  %v577 = vmul.f32 %v366, 0.01
  %v578 = vmul.f32 %v369, 0.01
  %v579 = vmul.f32 %v372, 0.01
  %v580 = vmul.f32 %v375, 0.01
  %v581 = vmul.f32 %v378, 0.01
  %v582 = vmul.f32 %v381, 0.01
  %v583 = vmul.f32 %v384, 0.01
  %v584 = vmul.f32 %v387, 0.01
  %v585 = vmul.f32 %v390, 0.01
  %v586 = vmul.f32 %v393, 0.01
  %v587 = vmul.f32 %v396, 0.01
  %v588 = vmul.f32 %v399, 0.01
  %v589 = vmul.f32 %v402, 0.01
  %v590 = vmul.f32 %v405, 0.01
  %v591 = vmul.f32 %v408, 0.01
  %v592 = vmul.f32 %v411, 0.01
  %v593 = vmul.f32 %v414, 0.01
  %v594 = vmul.f32 %v417, 0.01
  %v595 = vmul.f32 %v420, 0.01
  %v596 = vmul.f32 %v423, 0.01
  %v597 = vmul.f32 %v426, 0.01
  %v598 = vmul.f32 %v429, 0.01
  %v599 = vmul.f32 %v432, 0.01
  %v600 = vmul.f32 %v435, 0.01
  %v601 = vmul.f32 %v438, 0.01
  %v602 = vmul.f32 %v441, 0.01
  %v603 = vmul.f32 %v444, 0.01
  %v604 = vmul.f32 %v447, 0.01
  %v605 = vmul.f32 %v450, 0.01
  %v606 = vmul.f32 %v453, 0.01
  %v607 = vmul.f32 %v456, 0.01
  %v608 = vmul.f32 %v459, 0.01
  %v609 = vmul.f32 %v462, 0.01
  %v610 = vmul.f32 %v465, 0.01
  %v611 = vmul.f32 %v468, 0.01
  %v612 = vmul.f32 %v471, 0.01
  %v613 = vmul.f32 %v474, 0.01
  %v614 = vmul.f32 %v477, 0.01
  %v615 = vmul.f32 %v480, 0.01
  %v616 = vmul.f32 %v483, 0.01
  %v617 = vmul.f32 %v486, 0.01
  %v618 = vmul.f32 %v489, 0.01
  %v619 = vmul.f32 %v492, 0.01
  %v620 = vsel %vm494, %v306, %v557
  %v621 = vsel %vm495, %v309, %v558
  %v622 = vsel %vm496, %v312, %v559
  %v623 = vsel %vm497, %v315, %v560
  %v624 = vsel %vm498, %v318, %v561
  %v625 = vsel %vm499, %v321, %v562
  %v626 = vsel %vm500, %v324, %v563
  %v627 = vsel %vm501, %v327, %v564
  %v628 = vsel %vm502, %v330, %v565
  %v629 = vsel %vm503, %v333, %v566
  %v630 = vsel %vm504, %v336, %v567
  %v631 = vsel %vm505, %v339, %v568
  %v632 = vsel %vm506, %v342, %v569
  %v633 = vsel %vm507, %v345, %v570
  %v634 = vsel %vm508, %v348, %v571
  %v635 = vsel %vm509, %v351, %v572
  %v636 = vsel %vm510, %v354, %v573
  %v637 = vsel %vm511, %v357, %v574
  %v638 = vsel %vm512, %v360, %v575
  %v639 = vsel %vm513, %v363, %v576
  %v640 = vsel %vm514, %v366, %v577
  %v641 = vsel %vm515, %v369, %v578
  %v642 = vsel %vm516, %v372, %v579
  %v643 = vsel %vm517, %v375, %v580
  %v644 = vsel %vm518, %v378, %v581
  %v645 = vsel %vm519, %v381, %v582
  %v646 = vsel %vm520, %v384, %v583
  %v647 = vsel %vm521, %v387, %v584
  %v648 = vsel %vm522, %v390, %v585
  %v649 = vsel %vm523, %v393, %v586
  %v650 = vsel %vm524, %v396, %v587
  %v651 = vsel %vm525, %v399, %v588
  %v652 = vsel %vm526, %v402, %v589
  %v653 = vsel %vm527, %v405, %v590
  %v654 = vsel %vm528, %v408, %v591
  %v655 = vsel %vm529, %v411, %v592
  %v656 = vsel %vm530, %v414, %v593
  %v657 = vsel %vm531, %v417, %v594
  %v658 = vsel %vm532, %v420, %v595
  %v659 = vsel %vm533, %v423, %v596
  %v660 = vsel %vm534, %v426, %v597
  %v661 = vsel %vm535, %v429, %v598
  %v662 = vsel %vm536, %v432, %v599
  %v663 = vsel %vm537, %v435, %v600
  %v664 = vsel %vm538, %v438, %v601
  %v665 = vsel %vm539, %v441, %v602
  %v666 = vsel %vm540, %v444, %v603
  %v667 = vsel %vm541, %v447, %v604
  %v668 = vsel %vm542, %v450, %v605
  %v669 = vsel %vm543, %v453, %v606
  %v670 = vsel %vm544, %v456, %v607
  %v671 = vsel %vm545, %v459, %v608
  %v672 = vsel %vm546, %v462, %v609
  %v673 = vsel %vm547, %v465, %v610
  %v674 = vsel %vm548, %v468, %v611
  %v675 = vsel %vm549, %v471, %v612
  %v676 = vsel %vm550, %v474, %v613
  %v677 = vsel %vm551, %v477, %v614
  %v678 = vsel %vm552, %v480, %v615
  %v679 = vsel %vm553, %v483, %v616
  %v680 = vsel %vm554, %v486, %v617
  %v681 = vsel %vm555, %v489, %v618
  %v682 = vsel %vm556, %v492, %v619
  %v683 = vld [vmem:[%s1] sm:$0xff]
  %v684 = vld [vmem:[%s1 + $0x8] sm:$0xff]
  %v685 = vld [vmem:[%s1 + $0x10] sm:$0xff]
  %v686 = vld [vmem:[%s1 + $0x18] sm:$0xff]
  %v687 = vld [vmem:[%s1 + $0x20] sm:$0xff]
  %v688 = vld [vmem:[%s1 + $0x28] sm:$0xff]
  %v689 = vld [vmem:[%s1 + $0x30] sm:$0xff]
  %v690 = vld [vmem:[%s1 + $0x38] sm:$0xff]
  %v691 = vld [vmem:[%s1 + $0x40] sm:$0xff]
  %v692 = vld [vmem:[%s1 + $0x48] sm:$0xff]
  %v693 = vld [vmem:[%s1 + $0x50] sm:$0xff]
  %v694 = vld [vmem:[%s1 + $0x58] sm:$0xff]
  %v695 = vld [vmem:[%s1 + $0x60] sm:$0xff]
  %v696 = vld [vmem:[%s1 + $0x68] sm:$0xff]
  %v697 = vld [vmem:[%s1 + $0x70] sm:$0xff]
  %v698 = vld [vmem:[%s1 + $0x78] sm:$0xff]
  %v699 = vld [vmem:[%s1 + $0x80] sm:$0xff]
  %v700 = vld [vmem:[%s1 + $0x88] sm:$0xff]
  %v701 = vld [vmem:[%s1 + $0x90] sm:$0xff]
  %v702 = vld [vmem:[%s1 + $0x98] sm:$0xff]
  %v703 = vld [vmem:[%s1 + $0xa0] sm:$0xff]
  %v704 = vld [vmem:[%s1 + $0xa8] sm:$0xff]
  %v705 = vld [vmem:[%s1 + $0xb0] sm:$0xff]
  %v706 = vld [vmem:[%s1 + $0xb8] sm:$0xff]
  %v707 = vld [vmem:[%s1 + $0xc0] sm:$0xff]
  %v708 = vld [vmem:[%s1 + $0xc8] sm:$0xff]
  %v709 = vld [vmem:[%s1 + $0xd0] sm:$0xff]
  %v710 = vld [vmem:[%s1 + $0xd8] sm:$0xff]
  %v711 = vld [vmem:[%s1 + $0xe0] sm:$0xff]
  %v712 = vld [vmem:[%s1 + $0xe8] sm:$0xff]
  %v713 = vld [vmem:[%s1 + $0xf0] sm:$0xff]
  %v714 = vld [vmem:[%s1 + $0xf8] sm:$0xff]
  %v715 = vld [vmem:[%s1 + $0x100] sm:$0xff]
  %v716 = vld [vmem:[%s1 + $0x108] sm:$0xff]
  %v717 = vld [vmem:[%s1 + $0x110] sm:$0xff]
  %v718 = vld [vmem:[%s1 + $0x118] sm:$0xff]
  %v719 = vld [vmem:[%s1 + $0x120] sm:$0xff]
  %v720 = vld [vmem:[%s1 + $0x128] sm:$0xff]
  %v721 = vld [vmem:[%s1 + $0x130] sm:$0xff]
  %v722 = vld [vmem:[%s1 + $0x138] sm:$0xff]
  %v723 = vld [vmem:[%s1 + $0x140] sm:$0xff]
  %v724 = vld [vmem:[%s1 + $0x148] sm:$0xff]
  %v725 = vld [vmem:[%s1 + $0x150] sm:$0xff]
  %v726 = vld [vmem:[%s1 + $0x158] sm:$0xff]
  %v727 = vld [vmem:[%s1 + $0x160] sm:$0xff]
  %v728 = vld [vmem:[%s1 + $0x168] sm:$0xff]
  %v729 = vld [vmem:[%s1 + $0x170] sm:$0xff]
  %v730 = vld [vmem:[%s1 + $0x178] sm:$0xff]
  %v731 = vld [vmem:[%s1 + $0x180] sm:$0xff]
  %v732 = vld [vmem:[%s1 + $0x188] sm:$0xff]
  %v733 = vld [vmem:[%s1 + $0x190] sm:$0xff]
  %v734 = vld [vmem:[%s1 + $0x198] sm:$0xff]
  %v735 = vld [vmem:[%s1 + $0x1a0] sm:$0xff]
  %v736 = vld [vmem:[%s1 + $0x1a8] sm:$0xff]
  %v737 = vld [vmem:[%s1 + $0x1b0] sm:$0xff]
  %v738 = vld [vmem:[%s1 + $0x1b8] sm:$0xff]
  %v739 = vld [vmem:[%s1 + $0x1c0] sm:$0xff]
  %v740 = vld [vmem:[%s1 + $0x1c8] sm:$0xff]
  %v741 = vld [vmem:[%s1 + $0x1d0] sm:$0xff]
  %v742 = vld [vmem:[%s1 + $0x1d8] sm:$0xff]
  %v743 = vld [vmem:[%s1 + $0x1e0] sm:$0xff]
  %v744 = vld [vmem:[%s1 + $0x1e8] sm:$0xff]
  %v745 = vld [vmem:[%s1 + $0x1f0] sm:$0xff]
  %v747 = vsel %vm94, %v683, 0
  %v750 = vsel %vm94, %v684, 0
  %v753 = vsel %vm94, %v685, 0
  %v756 = vsel %vm94, %v686, 0
  %v759 = vsel %vm94, %v687, 0
  %v762 = vsel %vm94, %v688, 0
  %v765 = vsel %vm94, %v689, 0
  %v768 = vsel %vm94, %v690, 0
  %v771 = vsel %vm94, %v691, 0
  %v774 = vsel %vm94, %v692, 0
  %v777 = vsel %vm94, %v693, 0
  %v780 = vsel %vm94, %v694, 0
  %v783 = vsel %vm94, %v695, 0
  %v786 = vsel %vm94, %v696, 0
  %v789 = vsel %vm94, %v697, 0
  %v792 = vsel %vm94, %v698, 0
  %v795 = vsel %vm94, %v699, 0
  %v798 = vsel %vm94, %v700, 0
  %v801 = vsel %vm94, %v701, 0
  %v804 = vsel %vm94, %v702, 0
  %v807 = vsel %vm94, %v703, 0
  %v810 = vsel %vm94, %v704, 0
  %v813 = vsel %vm94, %v705, 0
  %v816 = vsel %vm94, %v706, 0
  %v819 = vsel %vm94, %v707, 0
  %v822 = vsel %vm94, %v708, 0
  %v825 = vsel %vm94, %v709, 0
  %v828 = vsel %vm94, %v710, 0
  %v831 = vsel %vm94, %v711, 0
  %v834 = vsel %vm94, %v712, 0
  %v837 = vsel %vm94, %v713, 0
  %v840 = vsel %vm94, %v714, 0
  %v843 = vsel %vm94, %v715, 0
  %v846 = vsel %vm94, %v716, 0
  %v849 = vsel %vm94, %v717, 0
  %v852 = vsel %vm94, %v718, 0
  %v855 = vsel %vm94, %v719, 0
  %v858 = vsel %vm94, %v720, 0
  %v861 = vsel %vm94, %v721, 0
  %v864 = vsel %vm94, %v722, 0
  %v867 = vsel %vm94, %v723, 0
  %v870 = vsel %vm94, %v724, 0
  %v873 = vsel %vm94, %v725, 0
  %v876 = vsel %vm94, %v726, 0
  %v879 = vsel %vm94, %v727, 0
  %v882 = vsel %vm94, %v728, 0
  %v885 = vsel %vm94, %v729, 0
  %v888 = vsel %vm94, %v730, 0
  %v891 = vsel %vm94, %v731, 0
  %v894 = vsel %vm94, %v732, 0
  %v897 = vsel %vm94, %v733, 0
  %v900 = vsel %vm94, %v734, 0
  %v903 = vsel %vm94, %v735, 0
  %v906 = vsel %vm94, %v736, 0
  %v909 = vsel %vm94, %v737, 0
  %v912 = vsel %vm94, %v738, 0
  %v915 = vsel %vm94, %v739, 0
  %v918 = vsel %vm94, %v740, 0
  %v921 = vsel %vm94, %v741, 0
  %v924 = vsel %vm94, %v742, 0
  %v927 = vsel %vm94, %v743, 0
  %v930 = vsel %vm94, %v744, 0
  %v933 = vsel %vm94, %v745, 0
  %935 = vmatpush.msra.mxu0 0.0
  %936 = vmatpush.msra.mxu0 0.0
  %937 = vmatpush.msra.mxu0 0.0
  %938 = vmatpush.msra.mxu0 0.0
  %939 = vmatpush.msra.mxu0 0.0
  %940 = vmatpush.msra.mxu0 0.0
  %941 = vmatpush.msra.mxu0 0.0
  %942 = vmatpush.msra.mxu0 0.0
  %943 = vmatpush.msra.mxu0 0.0
  %944 = vmatpush.msra.mxu0 0.0
  %945 = vmatpush.msra.mxu0 0.0
  %946 = vmatpush.msra.mxu0 0.0
  %947 = vmatpush.msra.mxu0 %v286
  %948 = vmatpush.msra.mxu0 %v25
  %949 = vmatpush.msra.mxu0 %v24
  %950 = vmatpush.msra.mxu0 %v23
  %951 = vmatmul.f32.gmra.mxu0 %v747
  %v952 = vpop.f32.mrf.mxu0
  %v953 = vadd.f32 %v92, %v952
  %954 = vmatmul.f32.gmra.mxu0 %v750
  %v955 = vpop.f32.mrf.mxu0
  %v956 = vadd.f32 %v92, %v955
  %957 = vmatmul.f32.gmra.mxu0 %v753
  %v958 = vpop.f32.mrf.mxu0
  %v959 = vadd.f32 %v92, %v958
  %960 = vmatmul.f32.gmra.mxu0 %v756
  %v961 = vpop.f32.mrf.mxu0
  %v962 = vadd.f32 %v92, %v961
  %963 = vmatmul.f32.gmra.mxu0 %v759
  %v964 = vpop.f32.mrf.mxu0
  %v965 = vadd.f32 %v92, %v964
  %966 = vmatmul.f32.gmra.mxu0 %v762
  %v967 = vpop.f32.mrf.mxu0
  %v968 = vadd.f32 %v92, %v967
  %969 = vmatmul.f32.gmra.mxu0 %v765
  %v970 = vpop.f32.mrf.mxu0
  %v971 = vadd.f32 %v92, %v970
  %972 = vmatmul.f32.gmra.mxu0 %v768
  %v973 = vpop.f32.mrf.mxu0
  %v974 = vadd.f32 %v92, %v973
  %975 = vmatmul.f32.gmra.mxu0 %v771
  %v976 = vpop.f32.mrf.mxu0
  %v977 = vadd.f32 %v92, %v976
  %978 = vmatmul.f32.gmra.mxu0 %v774
  %v979 = vpop.f32.mrf.mxu0
  %v980 = vadd.f32 %v92, %v979
  %981 = vmatmul.f32.gmra.mxu0 %v777
  %v982 = vpop.f32.mrf.mxu0
  %v983 = vadd.f32 %v92, %v982
  %984 = vmatmul.f32.gmra.mxu0 %v780
  %v985 = vpop.f32.mrf.mxu0
  %v986 = vadd.f32 %v92, %v985
  %987 = vmatmul.f32.gmra.mxu0 %v783
  %v988 = vpop.f32.mrf.mxu0
  %v989 = vadd.f32 %v92, %v988
  %990 = vmatmul.f32.gmra.mxu0 %v786
  %v991 = vpop.f32.mrf.mxu0
  %v992 = vadd.f32 %v92, %v991
  %993 = vmatmul.f32.gmra.mxu0 %v789
  %v994 = vpop.f32.mrf.mxu0
  %v995 = vadd.f32 %v92, %v994
  %996 = vmatmul.f32.gmra.mxu0 %v792
  %v997 = vpop.f32.mrf.mxu0
  %v998 = vadd.f32 %v92, %v997
  %999 = vmatmul.f32.gmra.mxu0 %v795
  %v1000 = vpop.f32.mrf.mxu0
  %v1001 = vadd.f32 %v92, %v1000
  %1002 = vmatmul.f32.gmra.mxu0 %v798
  %v1003 = vpop.f32.mrf.mxu0
  %v1004 = vadd.f32 %v92, %v1003
  %1005 = vmatmul.f32.gmra.mxu0 %v801
  %v1006 = vpop.f32.mrf.mxu0
  %v1007 = vadd.f32 %v92, %v1006
  %1008 = vmatmul.f32.gmra.mxu0 %v804
  %v1009 = vpop.f32.mrf.mxu0
  %v1010 = vadd.f32 %v92, %v1009
  %1011 = vmatmul.f32.gmra.mxu0 %v807
  %v1012 = vpop.f32.mrf.mxu0
  %v1013 = vadd.f32 %v92, %v1012
  %1014 = vmatmul.f32.gmra.mxu0 %v810
  %v1015 = vpop.f32.mrf.mxu0
  %v1016 = vadd.f32 %v92, %v1015
  %1017 = vmatmul.f32.gmra.mxu0 %v813
  %v1018 = vpop.f32.mrf.mxu0
  %v1019 = vadd.f32 %v92, %v1018
  %1020 = vmatmul.f32.gmra.mxu0 %v816
  %v1021 = vpop.f32.mrf.mxu0
  %v1022 = vadd.f32 %v92, %v1021
  %1023 = vmatmul.f32.gmra.mxu0 %v819
  %v1024 = vpop.f32.mrf.mxu0
  %v1025 = vadd.f32 %v92, %v1024
  %1026 = vmatmul.f32.gmra.mxu0 %v822
  %v1027 = vpop.f32.mrf.mxu0
  %v1028 = vadd.f32 %v92, %v1027
  %1029 = vmatmul.f32.gmra.mxu0 %v825
  %v1030 = vpop.f32.mrf.mxu0
  %v1031 = vadd.f32 %v92, %v1030
  %1032 = vmatmul.f32.gmra.mxu0 %v828
  %v1033 = vpop.f32.mrf.mxu0
  %v1034 = vadd.f32 %v92, %v1033
  %1035 = vmatmul.f32.gmra.mxu0 %v831
  %v1036 = vpop.f32.mrf.mxu0
  %v1037 = vadd.f32 %v92, %v1036
  %1038 = vmatmul.f32.gmra.mxu0 %v834
  %v1039 = vpop.f32.mrf.mxu0
  %v1040 = vadd.f32 %v92, %v1039
  %1041 = vmatmul.f32.gmra.mxu0 %v837
  %v1042 = vpop.f32.mrf.mxu0
  %v1043 = vadd.f32 %v92, %v1042
  %1044 = vmatmul.f32.gmra.mxu0 %v840
  %v1045 = vpop.f32.mrf.mxu0
  %v1046 = vadd.f32 %v92, %v1045
  %1047 = vmatmul.f32.gmra.mxu0 %v843
  %v1048 = vpop.f32.mrf.mxu0
  %v1049 = vadd.f32 %v92, %v1048
  %1050 = vmatmul.f32.gmra.mxu0 %v846
  %v1051 = vpop.f32.mrf.mxu0
  %v1052 = vadd.f32 %v92, %v1051
  %1053 = vmatmul.f32.gmra.mxu0 %v849
  %v1054 = vpop.f32.mrf.mxu0
  %v1055 = vadd.f32 %v92, %v1054
  %1056 = vmatmul.f32.gmra.mxu0 %v852
  %v1057 = vpop.f32.mrf.mxu0
  %v1058 = vadd.f32 %v92, %v1057
  %1059 = vmatmul.f32.gmra.mxu0 %v855
  %v1060 = vpop.f32.mrf.mxu0
  %v1061 = vadd.f32 %v92, %v1060
  %1062 = vmatmul.f32.gmra.mxu0 %v858
  %v1063 = vpop.f32.mrf.mxu0
  %v1064 = vadd.f32 %v92, %v1063
  %1065 = vmatmul.f32.gmra.mxu0 %v861
  %v1066 = vpop.f32.mrf.mxu0
  %v1067 = vadd.f32 %v92, %v1066
  %1068 = vmatmul.f32.gmra.mxu0 %v864
  %v1069 = vpop.f32.mrf.mxu0
  %v1070 = vadd.f32 %v92, %v1069
  %1071 = vmatmul.f32.gmra.mxu0 %v867
  %v1072 = vpop.f32.mrf.mxu0
  %v1073 = vadd.f32 %v92, %v1072
  %1074 = vmatmul.f32.gmra.mxu0 %v870
  %v1075 = vpop.f32.mrf.mxu0
  %v1076 = vadd.f32 %v92, %v1075
  %1077 = vmatmul.f32.gmra.mxu0 %v873
  %v1078 = vpop.f32.mrf.mxu0
  %v1079 = vadd.f32 %v92, %v1078
  %1080 = vmatmul.f32.gmra.mxu0 %v876
  %v1081 = vpop.f32.mrf.mxu0
  %v1082 = vadd.f32 %v92, %v1081
  %1083 = vmatmul.f32.gmra.mxu0 %v879
  %v1084 = vpop.f32.mrf.mxu0
  %v1085 = vadd.f32 %v92, %v1084
  %1086 = vmatmul.f32.gmra.mxu0 %v882
  %v1087 = vpop.f32.mrf.mxu0
  %v1088 = vadd.f32 %v92, %v1087
  %1089 = vmatmul.f32.gmra.mxu0 %v885
  %v1090 = vpop.f32.mrf.mxu0
  %v1091 = vadd.f32 %v92, %v1090
  %1092 = vmatmul.f32.gmra.mxu0 %v888
  %v1093 = vpop.f32.mrf.mxu0
  %v1094 = vadd.f32 %v92, %v1093
  %1095 = vmatmul.f32.gmra.mxu0 %v891
  %v1096 = vpop.f32.mrf.mxu0
  %v1097 = vadd.f32 %v92, %v1096
  %1098 = vmatmul.f32.gmra.mxu0 %v894
  %v1099 = vpop.f32.mrf.mxu0
  %v1100 = vadd.f32 %v92, %v1099
  %1101 = vmatmul.f32.gmra.mxu0 %v897
  %v1102 = vpop.f32.mrf.mxu0
  %v1103 = vadd.f32 %v92, %v1102
  %1104 = vmatmul.f32.gmra.mxu0 %v900
  %v1105 = vpop.f32.mrf.mxu0
  %v1106 = vadd.f32 %v92, %v1105
  %1107 = vmatmul.f32.gmra.mxu0 %v903
  %v1108 = vpop.f32.mrf.mxu0
  %v1109 = vadd.f32 %v92, %v1108
  %1110 = vmatmul.f32.gmra.mxu0 %v906
  %v1111 = vpop.f32.mrf.mxu0
  %v1112 = vadd.f32 %v92, %v1111
  %1113 = vmatmul.f32.gmra.mxu0 %v909
  %v1114 = vpop.f32.mrf.mxu0
  %v1115 = vadd.f32 %v92, %v1114
  %1116 = vmatmul.f32.gmra.mxu0 %v912
  %v1117 = vpop.f32.mrf.mxu0
  %v1118 = vadd.f32 %v92, %v1117
  %1119 = vmatmul.f32.gmra.mxu0 %v915
  %v1120 = vpop.f32.mrf.mxu0
  %v1121 = vadd.f32 %v92, %v1120
  %1122 = vmatmul.f32.gmra.mxu0 %v918
  %v1123 = vpop.f32.mrf.mxu0
  %v1124 = vadd.f32 %v92, %v1123
  %1125 = vmatmul.f32.gmra.mxu0 %v921
  %v1126 = vpop.f32.mrf.mxu0
  %v1127 = vadd.f32 %v92, %v1126
  %1128 = vmatmul.f32.gmra.mxu0 %v924
  %v1129 = vpop.f32.mrf.mxu0
  %v1130 = vadd.f32 %v92, %v1129
  %1131 = vmatmul.f32.gmra.mxu0 %v927
  %v1132 = vpop.f32.mrf.mxu0
  %v1133 = vadd.f32 %v92, %v1132
  %1134 = vmatmul.f32.gmra.mxu0 %v930
  %v1135 = vpop.f32.mrf.mxu0
  %v1136 = vadd.f32 %v92, %v1135
  %1137 = vmatmul.f32.gmra.mxu0 %v933
  %v1138 = vpop.f32.mrf.mxu0
  %v1139 = vadd.f32 %v92, %v1138
  %1140 = vdwg.mxu0
  %vm1141 = vcmp.ge.f32.partialorder %v953, 0.0
  %vm1142 = vcmp.ge.f32.partialorder %v956, 0.0
  %vm1143 = vcmp.ge.f32.partialorder %v959, 0.0
  %vm1144 = vcmp.ge.f32.partialorder %v962, 0.0
  %vm1145 = vcmp.ge.f32.partialorder %v965, 0.0
  %vm1146 = vcmp.ge.f32.partialorder %v968, 0.0
  %vm1147 = vcmp.ge.f32.partialorder %v971, 0.0
  %vm1148 = vcmp.ge.f32.partialorder %v974, 0.0
  %vm1149 = vcmp.ge.f32.partialorder %v977, 0.0
  %vm1150 = vcmp.ge.f32.partialorder %v980, 0.0
  %vm1151 = vcmp.ge.f32.partialorder %v983, 0.0
  %vm1152 = vcmp.ge.f32.partialorder %v986, 0.0
  %vm1153 = vcmp.ge.f32.partialorder %v989, 0.0
  %vm1154 = vcmp.ge.f32.partialorder %v992, 0.0
  %vm1155 = vcmp.ge.f32.partialorder %v995, 0.0
  %vm1156 = vcmp.ge.f32.partialorder %v998, 0.0
  %vm1157 = vcmp.ge.f32.partialorder %v1001, 0.0
  %vm1158 = vcmp.ge.f32.partialorder %v1004, 0.0
  %vm1159 = vcmp.ge.f32.partialorder %v1007, 0.0
  %vm1160 = vcmp.ge.f32.partialorder %v1010, 0.0
  %vm1161 = vcmp.ge.f32.partialorder %v1013, 0.0
  %vm1162 = vcmp.ge.f32.partialorder %v1016, 0.0
  %vm1163 = vcmp.ge.f32.partialorder %v1019, 0.0
  %vm1164 = vcmp.ge.f32.partialorder %v1022, 0.0
  %vm1165 = vcmp.ge.f32.partialorder %v1025, 0.0
  %vm1166 = vcmp.ge.f32.partialorder %v1028, 0.0
  %vm1167 = vcmp.ge.f32.partialorder %v1031, 0.0
  %vm1168 = vcmp.ge.f32.partialorder %v1034, 0.0
  %vm1169 = vcmp.ge.f32.partialorder %v1037, 0.0
  %vm1170 = vcmp.ge.f32.partialorder %v1040, 0.0
  %vm1171 = vcmp.ge.f32.partialorder %v1043, 0.0
  %vm1172 = vcmp.ge.f32.partialorder %v1046, 0.0
  %vm1173 = vcmp.ge.f32.partialorder %v1049, 0.0
  %vm1174 = vcmp.ge.f32.partialorder %v1052, 0.0
  %vm1175 = vcmp.ge.f32.partialorder %v1055, 0.0
  %vm1176 = vcmp.ge.f32.partialorder %v1058, 0.0
  %vm1177 = vcmp.ge.f32.partialorder %v1061, 0.0
  %vm1178 = vcmp.ge.f32.partialorder %v1064, 0.0
  %vm1179 = vcmp.ge.f32.partialorder %v1067, 0.0
  %vm1180 = vcmp.ge.f32.partialorder %v1070, 0.0
  %vm1181 = vcmp.ge.f32.partialorder %v1073, 0.0
  %vm1182 = vcmp.ge.f32.partialorder %v1076, 0.0
  %vm1183 = vcmp.ge.f32.partialorder %v1079, 0.0
  %vm1184 = vcmp.ge.f32.partialorder %v1082, 0.0
  %vm1185 = vcmp.ge.f32.partialorder %v1085, 0.0
  %vm1186 = vcmp.ge.f32.partialorder %v1088, 0.0
  %vm1187 = vcmp.ge.f32.partialorder %v1091, 0.0
  %vm1188 = vcmp.ge.f32.partialorder %v1094, 0.0
  %vm1189 = vcmp.ge.f32.partialorder %v1097, 0.0
  %vm1190 = vcmp.ge.f32.partialorder %v1100, 0.0
  %vm1191 = vcmp.ge.f32.partialorder %v1103, 0.0
  %vm1192 = vcmp.ge.f32.partialorder %v1106, 0.0
  %vm1193 = vcmp.ge.f32.partialorder %v1109, 0.0
  %vm1194 = vcmp.ge.f32.partialorder %v1112, 0.0
  %vm1195 = vcmp.ge.f32.partialorder %v1115, 0.0
  %vm1196 = vcmp.ge.f32.partialorder %v1118, 0.0
  %vm1197 = vcmp.ge.f32.partialorder %v1121, 0.0
  %vm1198 = vcmp.ge.f32.partialorder %v1124, 0.0
  %vm1199 = vcmp.ge.f32.partialorder %v1127, 0.0
  %vm1200 = vcmp.ge.f32.partialorder %v1130, 0.0
  %vm1201 = vcmp.ge.f32.partialorder %v1133, 0.0
  %vm1202 = vcmp.ge.f32.partialorder %v1136, 0.0
  %vm1203 = vcmp.ge.f32.partialorder %v1139, 0.0
  %v1204 = vmul.f32 %v953, 0.01
  %v1205 = vmul.f32 %v956, 0.01
  %v1206 = vmul.f32 %v959, 0.01
  %v1207 = vmul.f32 %v962, 0.01
  %v1208 = vmul.f32 %v965, 0.01
  %v1209 = vmul.f32 %v968, 0.01
  %v1210 = vmul.f32 %v971, 0.01
  %v1211 = vmul.f32 %v974, 0.01
  %v1212 = vmul.f32 %v977, 0.01
  %v1213 = vmul.f32 %v980, 0.01
  %v1214 = vmul.f32 %v983, 0.01
  %v1215 = vmul.f32 %v986, 0.01
  %v1216 = vmul.f32 %v989, 0.01
  %v1217 = vmul.f32 %v992, 0.01
  %v1218 = vmul.f32 %v995, 0.01
  %v1219 = vmul.f32 %v998, 0.01
  %v1220 = vmul.f32 %v1001, 0.01
  %v1221 = vmul.f32 %v1004, 0.01
  %v1222 = vmul.f32 %v1007, 0.01
  %v1223 = vmul.f32 %v1010, 0.01
  %v1224 = vmul.f32 %v1013, 0.01
  %v1225 = vmul.f32 %v1016, 0.01
  %v1226 = vmul.f32 %v1019, 0.01
  %v1227 = vmul.f32 %v1022, 0.01
  %v1228 = vmul.f32 %v1025, 0.01
  %v1229 = vmul.f32 %v1028, 0.01
  %v1230 = vmul.f32 %v1031, 0.01
  %v1231 = vmul.f32 %v1034, 0.01
  %v1232 = vmul.f32 %v1037, 0.01
  %v1233 = vmul.f32 %v1040, 0.01
  %v1234 = vmul.f32 %v1043, 0.01
  %v1235 = vmul.f32 %v1046, 0.01
  %v1236 = vmul.f32 %v1049, 0.01
  %v1237 = vmul.f32 %v1052, 0.01
  %v1238 = vmul.f32 %v1055, 0.01
  %v1239 = vmul.f32 %v1058, 0.01
  %v1240 = vmul.f32 %v1061, 0.01
  %v1241 = vmul.f32 %v1064, 0.01
  %v1242 = vmul.f32 %v1067, 0.01
  %v1243 = vmul.f32 %v1070, 0.01
  %v1244 = vmul.f32 %v1073, 0.01
  %v1245 = vmul.f32 %v1076, 0.01
  %v1246 = vmul.f32 %v1079, 0.01
  %v1247 = vmul.f32 %v1082, 0.01
  %v1248 = vmul.f32 %v1085, 0.01
  %v1249 = vmul.f32 %v1088, 0.01
  %v1250 = vmul.f32 %v1091, 0.01
  %v1251 = vmul.f32 %v1094, 0.01
  %v1252 = vmul.f32 %v1097, 0.01
  %v1253 = vmul.f32 %v1100, 0.01
  %v1254 = vmul.f32 %v1103, 0.01
  %v1255 = vmul.f32 %v1106, 0.01
  %v1256 = vmul.f32 %v1109, 0.01
  %v1257 = vmul.f32 %v1112, 0.01
  %v1258 = vmul.f32 %v1115, 0.01
  %v1259 = vmul.f32 %v1118, 0.01
  %v1260 = vmul.f32 %v1121, 0.01
  %v1261 = vmul.f32 %v1124, 0.01
  %v1262 = vmul.f32 %v1127, 0.01
  %v1263 = vmul.f32 %v1130, 0.01
  %v1264 = vmul.f32 %v1133, 0.01
  %v1265 = vmul.f32 %v1136, 0.01
  %v1266 = vmul.f32 %v1139, 0.01
  %v1267 = vsel %vm1141, %v953, %v1204
  %v1268 = vsel %vm1142, %v956, %v1205
  %v1269 = vsel %vm1143, %v959, %v1206
  %v1270 = vsel %vm1144, %v962, %v1207
  %v1271 = vsel %vm1145, %v965, %v1208
  %v1272 = vsel %vm1146, %v968, %v1209
  %v1273 = vsel %vm1147, %v971, %v1210
  %v1274 = vsel %vm1148, %v974, %v1211
  %v1275 = vsel %vm1149, %v977, %v1212
  %v1276 = vsel %vm1150, %v980, %v1213
  %v1277 = vsel %vm1151, %v983, %v1214
  %v1278 = vsel %vm1152, %v986, %v1215
  %v1279 = vsel %vm1153, %v989, %v1216
  %v1280 = vsel %vm1154, %v992, %v1217
  %v1281 = vsel %vm1155, %v995, %v1218
  %v1282 = vsel %vm1156, %v998, %v1219
  %v1283 = vsel %vm1157, %v1001, %v1220
  %v1284 = vsel %vm1158, %v1004, %v1221
  %v1285 = vsel %vm1159, %v1007, %v1222
  %v1286 = vsel %vm1160, %v1010, %v1223
  %v1287 = vsel %vm1161, %v1013, %v1224
  %v1288 = vsel %vm1162, %v1016, %v1225
  %v1289 = vsel %vm1163, %v1019, %v1226
  %v1290 = vsel %vm1164, %v1022, %v1227
  %v1291 = vsel %vm1165, %v1025, %v1228
  %v1292 = vsel %vm1166, %v1028, %v1229
  %v1293 = vsel %vm1167, %v1031, %v1230
  %v1294 = vsel %vm1168, %v1034, %v1231
  %v1295 = vsel %vm1169, %v1037, %v1232
  %v1296 = vsel %vm1170, %v1040, %v1233
  %v1297 = vsel %vm1171, %v1043, %v1234
  %v1298 = vsel %vm1172, %v1046, %v1235
  %v1299 = vsel %vm1173, %v1049, %v1236
  %v1300 = vsel %vm1174, %v1052, %v1237
  %v1301 = vsel %vm1175, %v1055, %v1238
  %v1302 = vsel %vm1176, %v1058, %v1239
  %v1303 = vsel %vm1177, %v1061, %v1240
  %v1304 = vsel %vm1178, %v1064, %v1241
  %v1305 = vsel %vm1179, %v1067, %v1242
  %v1306 = vsel %vm1180, %v1070, %v1243
  %v1307 = vsel %vm1181, %v1073, %v1244
  %v1308 = vsel %vm1182, %v1076, %v1245
  %v1309 = vsel %vm1183, %v1079, %v1246
  %v1310 = vsel %vm1184, %v1082, %v1247
  %v1311 = vsel %vm1185, %v1085, %v1248
  %v1312 = vsel %vm1186, %v1088, %v1249
  %v1313 = vsel %vm1187, %v1091, %v1250
  %v1314 = vsel %vm1188, %v1094, %v1251
  %v1315 = vsel %vm1189, %v1097, %v1252
  %v1316 = vsel %vm1190, %v1100, %v1253
  %v1317 = vsel %vm1191, %v1103, %v1254
  %v1318 = vsel %vm1192, %v1106, %v1255
  %v1319 = vsel %vm1193, %v1109, %v1256
  %v1320 = vsel %vm1194, %v1112, %v1257
  %v1321 = vsel %vm1195, %v1115, %v1258
  %v1322 = vsel %vm1196, %v1118, %v1259
  %v1323 = vsel %vm1197, %v1121, %v1260
  %v1324 = vsel %vm1198, %v1124, %v1261
  %v1325 = vsel %vm1199, %v1127, %v1262
  %v1326 = vsel %vm1200, %v1130, %v1263
  %v1327 = vsel %vm1201, %v1133, %v1264
  %v1328 = vsel %vm1202, %v1136, %v1265
  %v1329 = vsel %vm1203, %v1139, %v1266
  %v1330 = vld [vmem:[%s2] sm:$0xff]
  %v1331 = vld [vmem:[%s2 + $0x8] sm:$0xff]
  %v1332 = vld [vmem:[%s2 + $0x10] sm:$0xff]
  %v1333 = vld [vmem:[%s2 + $0x18] sm:$0xff]
  %v1334 = vld [vmem:[%s2 + $0x20] sm:$0xff]
  %v1335 = vld [vmem:[%s2 + $0x28] sm:$0xff]
  %v1336 = vld [vmem:[%s2 + $0x30] sm:$0xff]
  %v1337 = vld [vmem:[%s2 + $0x38] sm:$0xff]
  %v1338 = vld [vmem:[%s2 + $0x40] sm:$0xff]
  %v1339 = vld [vmem:[%s2 + $0x48] sm:$0xff]
  %v1340 = vld [vmem:[%s2 + $0x50] sm:$0xff]
  %v1341 = vld [vmem:[%s2 + $0x58] sm:$0xff]
  %v1342 = vld [vmem:[%s2 + $0x60] sm:$0xff]
  %v1343 = vld [vmem:[%s2 + $0x68] sm:$0xff]
  %v1344 = vld [vmem:[%s2 + $0x70] sm:$0xff]
  %v1345 = vld [vmem:[%s2 + $0x78] sm:$0xff]
  %v1346 = vld [vmem:[%s2 + $0x80] sm:$0xff]
  %v1347 = vld [vmem:[%s2 + $0x88] sm:$0xff]
  %v1348 = vld [vmem:[%s2 + $0x90] sm:$0xff]
  %v1349 = vld [vmem:[%s2 + $0x98] sm:$0xff]
  %v1350 = vld [vmem:[%s2 + $0xa0] sm:$0xff]
  %v1351 = vld [vmem:[%s2 + $0xa8] sm:$0xff]
  %v1352 = vld [vmem:[%s2 + $0xb0] sm:$0xff]
  %v1353 = vld [vmem:[%s2 + $0xb8] sm:$0xff]
  %v1354 = vld [vmem:[%s2 + $0xc0] sm:$0xff]
  %v1355 = vld [vmem:[%s2 + $0xc8] sm:$0xff]
  %v1356 = vld [vmem:[%s2 + $0xd0] sm:$0xff]
  %v1357 = vld [vmem:[%s2 + $0xd8] sm:$0xff]
  %v1358 = vld [vmem:[%s2 + $0xe0] sm:$0xff]
  %v1359 = vld [vmem:[%s2 + $0xe8] sm:$0xff]
  %v1360 = vld [vmem:[%s2 + $0xf0] sm:$0xff]
  %v1361 = vld [vmem:[%s2 + $0xf8] sm:$0xff]
  %v1362 = vld [vmem:[%s2 + $0x100] sm:$0xff]
  %v1363 = vld [vmem:[%s2 + $0x108] sm:$0xff]
  %v1364 = vld [vmem:[%s2 + $0x110] sm:$0xff]
  %v1365 = vld [vmem:[%s2 + $0x118] sm:$0xff]
  %v1366 = vld [vmem:[%s2 + $0x120] sm:$0xff]
  %v1367 = vld [vmem:[%s2 + $0x128] sm:$0xff]
  %v1368 = vld [vmem:[%s2 + $0x130] sm:$0xff]
  %v1369 = vld [vmem:[%s2 + $0x138] sm:$0xff]
  %v1370 = vld [vmem:[%s2 + $0x140] sm:$0xff]
  %v1371 = vld [vmem:[%s2 + $0x148] sm:$0xff]
  %v1372 = vld [vmem:[%s2 + $0x150] sm:$0xff]
  %v1373 = vld [vmem:[%s2 + $0x158] sm:$0xff]
  %v1374 = vld [vmem:[%s2 + $0x160] sm:$0xff]
  %v1375 = vld [vmem:[%s2 + $0x168] sm:$0xff]
  %v1376 = vld [vmem:[%s2 + $0x170] sm:$0xff]
  %v1377 = vld [vmem:[%s2 + $0x178] sm:$0xff]
  %v1378 = vld [vmem:[%s2 + $0x180] sm:$0xff]
  %v1379 = vld [vmem:[%s2 + $0x188] sm:$0xff]
  %v1380 = vld [vmem:[%s2 + $0x190] sm:$0xff]
  %v1381 = vld [vmem:[%s2 + $0x198] sm:$0xff]
  %v1382 = vld [vmem:[%s2 + $0x1a0] sm:$0xff]
  %v1383 = vld [vmem:[%s2 + $0x1a8] sm:$0xff]
  %v1384 = vld [vmem:[%s2 + $0x1b0] sm:$0xff]
  %v1385 = vld [vmem:[%s2 + $0x1b8] sm:$0xff]
  %v1386 = vld [vmem:[%s2 + $0x1c0] sm:$0xff]
  %v1387 = vld [vmem:[%s2 + $0x1c8] sm:$0xff]
  %v1388 = vld [vmem:[%s2 + $0x1d0] sm:$0xff]
  %v1389 = vld [vmem:[%s2 + $0x1d8] sm:$0xff]
  %v1390 = vld [vmem:[%s2 + $0x1e0] sm:$0xff]
  %v1391 = vld [vmem:[%s2 + $0x1e8] sm:$0xff]
  %v1392 = vld [vmem:[%s2 + $0x1f0] sm:$0xff]
  %v1394 = vsel %vm94, %v1330, 0
  %v1397 = vsel %vm94, %v1331, 0
  %v1400 = vsel %vm94, %v1332, 0
  %v1403 = vsel %vm94, %v1333, 0
  %v1406 = vsel %vm94, %v1334, 0
  %v1409 = vsel %vm94, %v1335, 0
  %v1412 = vsel %vm94, %v1336, 0
  %v1415 = vsel %vm94, %v1337, 0
  %v1418 = vsel %vm94, %v1338, 0
  %v1421 = vsel %vm94, %v1339, 0
  %v1424 = vsel %vm94, %v1340, 0
  %v1427 = vsel %vm94, %v1341, 0
  %v1430 = vsel %vm94, %v1342, 0
  %v1433 = vsel %vm94, %v1343, 0
  %v1436 = vsel %vm94, %v1344, 0
  %v1439 = vsel %vm94, %v1345, 0
  %v1442 = vsel %vm94, %v1346, 0
  %v1445 = vsel %vm94, %v1347, 0
  %v1448 = vsel %vm94, %v1348, 0
  %v1451 = vsel %vm94, %v1349, 0
  %v1454 = vsel %vm94, %v1350, 0
  %v1457 = vsel %vm94, %v1351, 0
  %v1460 = vsel %vm94, %v1352, 0
  %v1463 = vsel %vm94, %v1353, 0
  %v1466 = vsel %vm94, %v1354, 0
  %v1469 = vsel %vm94, %v1355, 0
  %v1472 = vsel %vm94, %v1356, 0
  %v1475 = vsel %vm94, %v1357, 0
  %v1478 = vsel %vm94, %v1358, 0
  %v1481 = vsel %vm94, %v1359, 0
  %v1484 = vsel %vm94, %v1360, 0
  %v1487 = vsel %vm94, %v1361, 0
  %v1490 = vsel %vm94, %v1362, 0
  %v1493 = vsel %vm94, %v1363, 0
  %v1496 = vsel %vm94, %v1364, 0
  %v1499 = vsel %vm94, %v1365, 0
  %v1502 = vsel %vm94, %v1366, 0
  %v1505 = vsel %vm94, %v1367, 0
  %v1508 = vsel %vm94, %v1368, 0
  %v1511 = vsel %vm94, %v1369, 0
  %v1514 = vsel %vm94, %v1370, 0
  %v1517 = vsel %vm94, %v1371, 0
  %v1520 = vsel %vm94, %v1372, 0
  %v1523 = vsel %vm94, %v1373, 0
  %v1526 = vsel %vm94, %v1374, 0
  %v1529 = vsel %vm94, %v1375, 0
  %v1532 = vsel %vm94, %v1376, 0
  %v1535 = vsel %vm94, %v1377, 0
  %v1538 = vsel %vm94, %v1378, 0
  %v1541 = vsel %vm94, %v1379, 0
  %v1544 = vsel %vm94, %v1380, 0
  %v1547 = vsel %vm94, %v1381, 0
  %v1550 = vsel %vm94, %v1382, 0
  %v1553 = vsel %vm94, %v1383, 0
  %v1556 = vsel %vm94, %v1384, 0
  %v1559 = vsel %vm94, %v1385, 0
  %v1562 = vsel %vm94, %v1386, 0
  %v1565 = vsel %vm94, %v1387, 0
  %v1568 = vsel %vm94, %v1388, 0
  %v1571 = vsel %vm94, %v1389, 0
  %v1574 = vsel %vm94, %v1390, 0
  %v1577 = vsel %vm94, %v1391, 0
  %v1580 = vsel %vm94, %v1392, 0
  %1582 = vmatpush.msra.mxu0 0.0
  %1583 = vmatpush.msra.mxu0 0.0
  %1584 = vmatpush.msra.mxu0 0.0
  %1585 = vmatpush.msra.mxu0 0.0
  %1586 = vmatpush.msra.mxu0 0.0
  %1587 = vmatpush.msra.mxu0 0.0
  %1588 = vmatpush.msra.mxu0 0.0
  %1589 = vmatpush.msra.mxu0 0.0
  %1590 = vmatpush.msra.mxu0 0.0
  %1591 = vmatpush.msra.mxu0 0.0
  %1592 = vmatpush.msra.mxu0 0.0
  %1593 = vmatpush.msra.mxu0 0.0
  %1594 = vmatpush.msra.mxu0 %v286
  %1595 = vmatpush.msra.mxu0 %v25
  %1596 = vmatpush.msra.mxu0 %v24
  %1597 = vmatpush.msra.mxu0 %v23
  %1598 = vmatmul.f32.gmra.mxu0 %v1394
  %v1599 = vpop.f32.mrf.mxu0
  %v1600 = vadd.f32 %v92, %v1599
  %1601 = vmatmul.f32.gmra.mxu0 %v1397
  %v1602 = vpop.f32.mrf.mxu0
  %v1603 = vadd.f32 %v92, %v1602
  %1604 = vmatmul.f32.gmra.mxu0 %v1400
  %v1605 = vpop.f32.mrf.mxu0
  %v1606 = vadd.f32 %v92, %v1605
  %1607 = vmatmul.f32.gmra.mxu0 %v1403
  %v1608 = vpop.f32.mrf.mxu0
  %v1609 = vadd.f32 %v92, %v1608
  %1610 = vmatmul.f32.gmra.mxu0 %v1406
  %v1611 = vpop.f32.mrf.mxu0
  %v1612 = vadd.f32 %v92, %v1611
  %1613 = vmatmul.f32.gmra.mxu0 %v1409
  %v1614 = vpop.f32.mrf.mxu0
  %v1615 = vadd.f32 %v92, %v1614
  %1616 = vmatmul.f32.gmra.mxu0 %v1412
  %v1617 = vpop.f32.mrf.mxu0
  %v1618 = vadd.f32 %v92, %v1617
  %1619 = vmatmul.f32.gmra.mxu0 %v1415
  %v1620 = vpop.f32.mrf.mxu0
  %v1621 = vadd.f32 %v92, %v1620
  %1622 = vmatmul.f32.gmra.mxu0 %v1418
  %v1623 = vpop.f32.mrf.mxu0
  %v1624 = vadd.f32 %v92, %v1623
  %1625 = vmatmul.f32.gmra.mxu0 %v1421
  %v1626 = vpop.f32.mrf.mxu0
  %v1627 = vadd.f32 %v92, %v1626
  %1628 = vmatmul.f32.gmra.mxu0 %v1424
  %v1629 = vpop.f32.mrf.mxu0
  %v1630 = vadd.f32 %v92, %v1629
  %1631 = vmatmul.f32.gmra.mxu0 %v1427
  %v1632 = vpop.f32.mrf.mxu0
  %v1633 = vadd.f32 %v92, %v1632
  %1634 = vmatmul.f32.gmra.mxu0 %v1430
  %v1635 = vpop.f32.mrf.mxu0
  %v1636 = vadd.f32 %v92, %v1635
  %1637 = vmatmul.f32.gmra.mxu0 %v1433
  %v1638 = vpop.f32.mrf.mxu0
  %v1639 = vadd.f32 %v92, %v1638
  %1640 = vmatmul.f32.gmra.mxu0 %v1436
  %v1641 = vpop.f32.mrf.mxu0
  %v1642 = vadd.f32 %v92, %v1641
  %1643 = vmatmul.f32.gmra.mxu0 %v1439
  %v1644 = vpop.f32.mrf.mxu0
  %v1645 = vadd.f32 %v92, %v1644
  %1646 = vmatmul.f32.gmra.mxu0 %v1442
  %v1647 = vpop.f32.mrf.mxu0
  %v1648 = vadd.f32 %v92, %v1647
  %1649 = vmatmul.f32.gmra.mxu0 %v1445
  %v1650 = vpop.f32.mrf.mxu0
  %v1651 = vadd.f32 %v92, %v1650
  %1652 = vmatmul.f32.gmra.mxu0 %v1448
  %v1653 = vpop.f32.mrf.mxu0
  %v1654 = vadd.f32 %v92, %v1653
  %1655 = vmatmul.f32.gmra.mxu0 %v1451
  %v1656 = vpop.f32.mrf.mxu0
  %v1657 = vadd.f32 %v92, %v1656
  %1658 = vmatmul.f32.gmra.mxu0 %v1454
  %v1659 = vpop.f32.mrf.mxu0
  %v1660 = vadd.f32 %v92, %v1659
  %1661 = vmatmul.f32.gmra.mxu0 %v1457
  %v1662 = vpop.f32.mrf.mxu0
  %v1663 = vadd.f32 %v92, %v1662
  %1664 = vmatmul.f32.gmra.mxu0 %v1460
  %v1665 = vpop.f32.mrf.mxu0
  %v1666 = vadd.f32 %v92, %v1665
  %1667 = vmatmul.f32.gmra.mxu0 %v1463
  %v1668 = vpop.f32.mrf.mxu0
  %v1669 = vadd.f32 %v92, %v1668
  %1670 = vmatmul.f32.gmra.mxu0 %v1466
  %v1671 = vpop.f32.mrf.mxu0
  %v1672 = vadd.f32 %v92, %v1671
  %1673 = vmatmul.f32.gmra.mxu0 %v1469
  %v1674 = vpop.f32.mrf.mxu0
  %v1675 = vadd.f32 %v92, %v1674
  %1676 = vmatmul.f32.gmra.mxu0 %v1472
  %v1677 = vpop.f32.mrf.mxu0
  %v1678 = vadd.f32 %v92, %v1677
  %1679 = vmatmul.f32.gmra.mxu0 %v1475
  %v1680 = vpop.f32.mrf.mxu0
  %v1681 = vadd.f32 %v92, %v1680
  %1682 = vmatmul.f32.gmra.mxu0 %v1478
  %v1683 = vpop.f32.mrf.mxu0
  %v1684 = vadd.f32 %v92, %v1683
  %1685 = vmatmul.f32.gmra.mxu0 %v1481
  %v1686 = vpop.f32.mrf.mxu0
  %v1687 = vadd.f32 %v92, %v1686
  %1688 = vmatmul.f32.gmra.mxu0 %v1484
  %v1689 = vpop.f32.mrf.mxu0
  %v1690 = vadd.f32 %v92, %v1689
  %1691 = vmatmul.f32.gmra.mxu0 %v1487
  %v1692 = vpop.f32.mrf.mxu0
  %v1693 = vadd.f32 %v92, %v1692
  %1694 = vmatmul.f32.gmra.mxu0 %v1490
  %v1695 = vpop.f32.mrf.mxu0
  %v1696 = vadd.f32 %v92, %v1695
  %1697 = vmatmul.f32.gmra.mxu0 %v1493
  %v1698 = vpop.f32.mrf.mxu0
  %v1699 = vadd.f32 %v92, %v1698
  %1700 = vmatmul.f32.gmra.mxu0 %v1496
  %v1701 = vpop.f32.mrf.mxu0
  %v1702 = vadd.f32 %v92, %v1701
  %1703 = vmatmul.f32.gmra.mxu0 %v1499
  %v1704 = vpop.f32.mrf.mxu0
  %v1705 = vadd.f32 %v92, %v1704
  %1706 = vmatmul.f32.gmra.mxu0 %v1502
  %v1707 = vpop.f32.mrf.mxu0
  %v1708 = vadd.f32 %v92, %v1707
  %1709 = vmatmul.f32.gmra.mxu0 %v1505
  %v1710 = vpop.f32.mrf.mxu0
  %v1711 = vadd.f32 %v92, %v1710
  %1712 = vmatmul.f32.gmra.mxu0 %v1508
  %v1713 = vpop.f32.mrf.mxu0
  %v1714 = vadd.f32 %v92, %v1713
  %1715 = vmatmul.f32.gmra.mxu0 %v1511
  %v1716 = vpop.f32.mrf.mxu0
  %v1717 = vadd.f32 %v92, %v1716
  %1718 = vmatmul.f32.gmra.mxu0 %v1514
  %v1719 = vpop.f32.mrf.mxu0
  %v1720 = vadd.f32 %v92, %v1719
  %1721 = vmatmul.f32.gmra.mxu0 %v1517
  %v1722 = vpop.f32.mrf.mxu0
  %v1723 = vadd.f32 %v92, %v1722
  %1724 = vmatmul.f32.gmra.mxu0 %v1520
  %v1725 = vpop.f32.mrf.mxu0
  %v1726 = vadd.f32 %v92, %v1725
  %1727 = vmatmul.f32.gmra.mxu0 %v1523
  %v1728 = vpop.f32.mrf.mxu0
  %v1729 = vadd.f32 %v92, %v1728
  %1730 = vmatmul.f32.gmra.mxu0 %v1526
  %v1731 = vpop.f32.mrf.mxu0
  %v1732 = vadd.f32 %v92, %v1731
  %1733 = vmatmul.f32.gmra.mxu0 %v1529
  %v1734 = vpop.f32.mrf.mxu0
  %v1735 = vadd.f32 %v92, %v1734
  %1736 = vmatmul.f32.gmra.mxu0 %v1532
  %v1737 = vpop.f32.mrf.mxu0
  %v1738 = vadd.f32 %v92, %v1737
  %1739 = vmatmul.f32.gmra.mxu0 %v1535
  %v1740 = vpop.f32.mrf.mxu0
  %v1741 = vadd.f32 %v92, %v1740
  %1742 = vmatmul.f32.gmra.mxu0 %v1538
  %v1743 = vpop.f32.mrf.mxu0
  %v1744 = vadd.f32 %v92, %v1743
  %1745 = vmatmul.f32.gmra.mxu0 %v1541
  %v1746 = vpop.f32.mrf.mxu0
  %v1747 = vadd.f32 %v92, %v1746
  %1748 = vmatmul.f32.gmra.mxu0 %v1544
  %v1749 = vpop.f32.mrf.mxu0
  %v1750 = vadd.f32 %v92, %v1749
  %1751 = vmatmul.f32.gmra.mxu0 %v1547
  %v1752 = vpop.f32.mrf.mxu0
  %v1753 = vadd.f32 %v92, %v1752
  %1754 = vmatmul.f32.gmra.mxu0 %v1550
  %v1755 = vpop.f32.mrf.mxu0
  %v1756 = vadd.f32 %v92, %v1755
  %1757 = vmatmul.f32.gmra.mxu0 %v1553
  %v1758 = vpop.f32.mrf.mxu0
  %v1759 = vadd.f32 %v92, %v1758
  %1760 = vmatmul.f32.gmra.mxu0 %v1556
  %v1761 = vpop.f32.mrf.mxu0
  %v1762 = vadd.f32 %v92, %v1761
  %1763 = vmatmul.f32.gmra.mxu0 %v1559
  %v1764 = vpop.f32.mrf.mxu0
  %v1765 = vadd.f32 %v92, %v1764
  %1766 = vmatmul.f32.gmra.mxu0 %v1562
  %v1767 = vpop.f32.mrf.mxu0
  %v1768 = vadd.f32 %v92, %v1767
  %1769 = vmatmul.f32.gmra.mxu0 %v1565
  %v1770 = vpop.f32.mrf.mxu0
  %v1771 = vadd.f32 %v92, %v1770
  %1772 = vmatmul.f32.gmra.mxu0 %v1568
  %v1773 = vpop.f32.mrf.mxu0
  %v1774 = vadd.f32 %v92, %v1773
  %1775 = vmatmul.f32.gmra.mxu0 %v1571
  %v1776 = vpop.f32.mrf.mxu0
  %v1777 = vadd.f32 %v92, %v1776
  %1778 = vmatmul.f32.gmra.mxu0 %v1574
  %v1779 = vpop.f32.mrf.mxu0
  %v1780 = vadd.f32 %v92, %v1779
  %1781 = vmatmul.f32.gmra.mxu0 %v1577
  %v1782 = vpop.f32.mrf.mxu0
  %v1783 = vadd.f32 %v92, %v1782
  %1784 = vmatmul.f32.gmra.mxu0 %v1580
  %v1785 = vpop.f32.mrf.mxu0
  %v1786 = vadd.f32 %v92, %v1785
  %1787 = vdwg.mxu0
  %vm1788 = vcmp.ge.f32.partialorder %v1600, 0.0
  %vm1789 = vcmp.ge.f32.partialorder %v1603, 0.0
  %vm1790 = vcmp.ge.f32.partialorder %v1606, 0.0
  %vm1791 = vcmp.ge.f32.partialorder %v1609, 0.0
  %vm1792 = vcmp.ge.f32.partialorder %v1612, 0.0
  %vm1793 = vcmp.ge.f32.partialorder %v1615, 0.0
  %vm1794 = vcmp.ge.f32.partialorder %v1618, 0.0
  %vm1795 = vcmp.ge.f32.partialorder %v1621, 0.0
  %vm1796 = vcmp.ge.f32.partialorder %v1624, 0.0
  %vm1797 = vcmp.ge.f32.partialorder %v1627, 0.0
  %vm1798 = vcmp.ge.f32.partialorder %v1630, 0.0
  %vm1799 = vcmp.ge.f32.partialorder %v1633, 0.0
  %vm1800 = vcmp.ge.f32.partialorder %v1636, 0.0
  %vm1801 = vcmp.ge.f32.partialorder %v1639, 0.0
  %vm1802 = vcmp.ge.f32.partialorder %v1642, 0.0
  %vm1803 = vcmp.ge.f32.partialorder %v1645, 0.0
  %vm1804 = vcmp.ge.f32.partialorder %v1648, 0.0
  %vm1805 = vcmp.ge.f32.partialorder %v1651, 0.0
  %vm1806 = vcmp.ge.f32.partialorder %v1654, 0.0
  %vm1807 = vcmp.ge.f32.partialorder %v1657, 0.0
  %vm1808 = vcmp.ge.f32.partialorder %v1660, 0.0
  %vm1809 = vcmp.ge.f32.partialorder %v1663, 0.0
  %vm1810 = vcmp.ge.f32.partialorder %v1666, 0.0
  %vm1811 = vcmp.ge.f32.partialorder %v1669, 0.0
  %vm1812 = vcmp.ge.f32.partialorder %v1672, 0.0
  %vm1813 = vcmp.ge.f32.partialorder %v1675, 0.0
  %vm1814 = vcmp.ge.f32.partialorder %v1678, 0.0
  %vm1815 = vcmp.ge.f32.partialorder %v1681, 0.0
  %vm1816 = vcmp.ge.f32.partialorder %v1684, 0.0
  %vm1817 = vcmp.ge.f32.partialorder %v1687, 0.0
  %vm1818 = vcmp.ge.f32.partialorder %v1690, 0.0
  %vm1819 = vcmp.ge.f32.partialorder %v1693, 0.0
  %vm1820 = vcmp.ge.f32.partialorder %v1696, 0.0
  %vm1821 = vcmp.ge.f32.partialorder %v1699, 0.0
  %vm1822 = vcmp.ge.f32.partialorder %v1702, 0.0
  %vm1823 = vcmp.ge.f32.partialorder %v1705, 0.0
  %vm1824 = vcmp.ge.f32.partialorder %v1708, 0.0
  %vm1825 = vcmp.ge.f32.partialorder %v1711, 0.0
  %vm1826 = vcmp.ge.f32.partialorder %v1714, 0.0
  %vm1827 = vcmp.ge.f32.partialorder %v1717, 0.0
  %vm1828 = vcmp.ge.f32.partialorder %v1720, 0.0
  %vm1829 = vcmp.ge.f32.partialorder %v1723, 0.0
  %vm1830 = vcmp.ge.f32.partialorder %v1726, 0.0
  %vm1831 = vcmp.ge.f32.partialorder %v1729, 0.0
  %vm1832 = vcmp.ge.f32.partialorder %v1732, 0.0
  %vm1833 = vcmp.ge.f32.partialorder %v1735, 0.0
  %vm1834 = vcmp.ge.f32.partialorder %v1738, 0.0
  %vm1835 = vcmp.ge.f32.partialorder %v1741, 0.0
  %vm1836 = vcmp.ge.f32.partialorder %v1744, 0.0
  %vm1837 = vcmp.ge.f32.partialorder %v1747, 0.0
  %vm1838 = vcmp.ge.f32.partialorder %v1750, 0.0
  %vm1839 = vcmp.ge.f32.partialorder %v1753, 0.0
  %vm1840 = vcmp.ge.f32.partialorder %v1756, 0.0
  %vm1841 = vcmp.ge.f32.partialorder %v1759, 0.0
  %vm1842 = vcmp.ge.f32.partialorder %v1762, 0.0
  %vm1843 = vcmp.ge.f32.partialorder %v1765, 0.0
  %vm1844 = vcmp.ge.f32.partialorder %v1768, 0.0
  %vm1845 = vcmp.ge.f32.partialorder %v1771, 0.0
  %vm1846 = vcmp.ge.f32.partialorder %v1774, 0.0
  %vm1847 = vcmp.ge.f32.partialorder %v1777, 0.0
  %vm1848 = vcmp.ge.f32.partialorder %v1780, 0.0
  %vm1849 = vcmp.ge.f32.partialorder %v1783, 0.0
  %vm1850 = vcmp.ge.f32.partialorder %v1786, 0.0
  %v1851 = vmul.f32 %v1600, 0.01
  %v1852 = vmul.f32 %v1603, 0.01
  %v1853 = vmul.f32 %v1606, 0.01
  %v1854 = vmul.f32 %v1609, 0.01
  %v1855 = vmul.f32 %v1612, 0.01
  %v1856 = vmul.f32 %v1615, 0.01
  %v1857 = vmul.f32 %v1618, 0.01
  %v1858 = vmul.f32 %v1621, 0.01
  %v1859 = vmul.f32 %v1624, 0.01
  %v1860 = vmul.f32 %v1627, 0.01
  %v1861 = vmul.f32 %v1630, 0.01
  %v1862 = vmul.f32 %v1633, 0.01
  %v1863 = vmul.f32 %v1636, 0.01
  %v1864 = vmul.f32 %v1639, 0.01
  %v1865 = vmul.f32 %v1642, 0.01
  %v1866 = vmul.f32 %v1645, 0.01
  %v1867 = vmul.f32 %v1648, 0.01
  %v1868 = vmul.f32 %v1651, 0.01
  %v1869 = vmul.f32 %v1654, 0.01
  %v1870 = vmul.f32 %v1657, 0.01
  %v1871 = vmul.f32 %v1660, 0.01
  %v1872 = vmul.f32 %v1663, 0.01
  %v1873 = vmul.f32 %v1666, 0.01
  %v1874 = vmul.f32 %v1669, 0.01
  %v1875 = vmul.f32 %v1672, 0.01
  %v1876 = vmul.f32 %v1675, 0.01
  %v1877 = vmul.f32 %v1678, 0.01
  %v1878 = vmul.f32 %v1681, 0.01
  %v1879 = vmul.f32 %v1684, 0.01
  %v1880 = vmul.f32 %v1687, 0.01
  %v1881 = vmul.f32 %v1690, 0.01
  %v1882 = vmul.f32 %v1693, 0.01
  %v1883 = vmul.f32 %v1696, 0.01
  %v1884 = vmul.f32 %v1699, 0.01
  %v1885 = vmul.f32 %v1702, 0.01
  %v1886 = vmul.f32 %v1705, 0.01
  %v1887 = vmul.f32 %v1708, 0.01
  %v1888 = vmul.f32 %v1711, 0.01
  %v1889 = vmul.f32 %v1714, 0.01
  %v1890 = vmul.f32 %v1717, 0.01
  %v1891 = vmul.f32 %v1720, 0.01
  %v1892 = vmul.f32 %v1723, 0.01
  %v1893 = vmul.f32 %v1726, 0.01
  %v1894 = vmul.f32 %v1729, 0.01
  %v1895 = vmul.f32 %v1732, 0.01
  %v1896 = vmul.f32 %v1735, 0.01
  %v1897 = vmul.f32 %v1738, 0.01
  %v1898 = vmul.f32 %v1741, 0.01
  %v1899 = vmul.f32 %v1744, 0.01
  %v1900 = vmul.f32 %v1747, 0.01
  %v1901 = vmul.f32 %v1750, 0.01
  %v1902 = vmul.f32 %v1753, 0.01
  %v1903 = vmul.f32 %v1756, 0.01
  %v1904 = vmul.f32 %v1759, 0.01
  %v1905 = vmul.f32 %v1762, 0.01
  %v1906 = vmul.f32 %v1765, 0.01
  %v1907 = vmul.f32 %v1768, 0.01
  %v1908 = vmul.f32 %v1771, 0.01
  %v1909 = vmul.f32 %v1774, 0.01
  %v1910 = vmul.f32 %v1777, 0.01
  %v1911 = vmul.f32 %v1780, 0.01
  %v1912 = vmul.f32 %v1783, 0.01
  %v1913 = vmul.f32 %v1786, 0.01
  %v1914 = vsel %vm1788, %v1600, %v1851
  %v1915 = vsel %vm1789, %v1603, %v1852
  %v1916 = vsel %vm1790, %v1606, %v1853
  %v1917 = vsel %vm1791, %v1609, %v1854
  %v1918 = vsel %vm1792, %v1612, %v1855
  %v1919 = vsel %vm1793, %v1615, %v1856
  %v1920 = vsel %vm1794, %v1618, %v1857
  %v1921 = vsel %vm1795, %v1621, %v1858
  %v1922 = vsel %vm1796, %v1624, %v1859
  %v1923 = vsel %vm1797, %v1627, %v1860
  %v1924 = vsel %vm1798, %v1630, %v1861
  %v1925 = vsel %vm1799, %v1633, %v1862
  %v1926 = vsel %vm1800, %v1636, %v1863
  %v1927 = vsel %vm1801, %v1639, %v1864
  %v1928 = vsel %vm1802, %v1642, %v1865
  %v1929 = vsel %vm1803, %v1645, %v1866
  %v1930 = vsel %vm1804, %v1648, %v1867
  %v1931 = vsel %vm1805, %v1651, %v1868
  %v1932 = vsel %vm1806, %v1654, %v1869
  %v1933 = vsel %vm1807, %v1657, %v1870
  %v1934 = vsel %vm1808, %v1660, %v1871
  %v1935 = vsel %vm1809, %v1663, %v1872
  %v1936 = vsel %vm1810, %v1666, %v1873
  %v1937 = vsel %vm1811, %v1669, %v1874
  %v1938 = vsel %vm1812, %v1672, %v1875
  %v1939 = vsel %vm1813, %v1675, %v1876
  %v1940 = vsel %vm1814, %v1678, %v1877
  %v1941 = vsel %vm1815, %v1681, %v1878
  %v1942 = vsel %vm1816, %v1684, %v1879
  %v1943 = vsel %vm1817, %v1687, %v1880
  %v1944 = vsel %vm1818, %v1690, %v1881
  %v1945 = vsel %vm1819, %v1693, %v1882
  %v1946 = vsel %vm1820, %v1696, %v1883
  %v1947 = vsel %vm1821, %v1699, %v1884
  %v1948 = vsel %vm1822, %v1702, %v1885
  %v1949 = vsel %vm1823, %v1705, %v1886
  %v1950 = vsel %vm1824, %v1708, %v1887
  %v1951 = vsel %vm1825, %v1711, %v1888
  %v1952 = vsel %vm1826, %v1714, %v1889
  %v1953 = vsel %vm1827, %v1717, %v1890
  %v1954 = vsel %vm1828, %v1720, %v1891
  %v1955 = vsel %vm1829, %v1723, %v1892
  %v1956 = vsel %vm1830, %v1726, %v1893
  %v1957 = vsel %vm1831, %v1729, %v1894
  %v1958 = vsel %vm1832, %v1732, %v1895
  %v1959 = vsel %vm1833, %v1735, %v1896
  %v1960 = vsel %vm1834, %v1738, %v1897
  %v1961 = vsel %vm1835, %v1741, %v1898
  %v1962 = vsel %vm1836, %v1744, %v1899
  %v1963 = vsel %vm1837, %v1747, %v1900
  %v1964 = vsel %vm1838, %v1750, %v1901
  %v1965 = vsel %vm1839, %v1753, %v1902
  %v1966 = vsel %vm1840, %v1756, %v1903
  %v1967 = vsel %vm1841, %v1759, %v1904
  %v1968 = vsel %vm1842, %v1762, %v1905
  %v1969 = vsel %vm1843, %v1765, %v1906
  %v1970 = vsel %vm1844, %v1768, %v1907
  %v1971 = vsel %vm1845, %v1771, %v1908
  %v1972 = vsel %vm1846, %v1774, %v1909
  %v1973 = vsel %vm1847, %v1777, %v1910
  %v1974 = vsel %vm1848, %v1780, %v1911
  %v1975 = vsel %vm1849, %v1783, %v1912
  %v1976 = vsel %vm1850, %v1786, %v1913
  %v1977 = vld [vmem:[%s3] sm:$0xff]
  %v1978 = vld [vmem:[%s3 + $0x8] sm:$0xff]
  %v1979 = vld [vmem:[%s3 + $0x10] sm:$0xff]
  %v1980 = vld [vmem:[%s3 + $0x18] sm:$0xff]
  %v1981 = vld [vmem:[%s3 + $0x20] sm:$0xff]
  %v1982 = vld [vmem:[%s3 + $0x28] sm:$0xff]
  %v1983 = vld [vmem:[%s3 + $0x30] sm:$0xff]
  %v1984 = vld [vmem:[%s3 + $0x38] sm:$0xff]
  %v1985 = vld [vmem:[%s3 + $0x40] sm:$0xff]
  %v1986 = vld [vmem:[%s3 + $0x48] sm:$0xff]
  %v1987 = vld [vmem:[%s3 + $0x50] sm:$0xff]
  %v1988 = vld [vmem:[%s3 + $0x58] sm:$0xff]
  %v1989 = vld [vmem:[%s3 + $0x60] sm:$0xff]
  %v1990 = vld [vmem:[%s3 + $0x68] sm:$0xff]
  %v1991 = vld [vmem:[%s3 + $0x70] sm:$0xff]
  %v1992 = vld [vmem:[%s3 + $0x78] sm:$0xff]
  %v1993 = vld [vmem:[%s3 + $0x80] sm:$0xff]
  %v1994 = vld [vmem:[%s3 + $0x88] sm:$0xff]
  %v1995 = vld [vmem:[%s3 + $0x90] sm:$0xff]
  %v1996 = vld [vmem:[%s3 + $0x98] sm:$0xff]
  %v1997 = vld [vmem:[%s3 + $0xa0] sm:$0xff]
  %v1998 = vld [vmem:[%s3 + $0xa8] sm:$0xff]
  %v1999 = vld [vmem:[%s3 + $0xb0] sm:$0xff]
  %v2000 = vld [vmem:[%s3 + $0xb8] sm:$0xff]
  %v2001 = vld [vmem:[%s3 + $0xc0] sm:$0xff]
  %v2002 = vld [vmem:[%s3 + $0xc8] sm:$0xff]
  %v2003 = vld [vmem:[%s3 + $0xd0] sm:$0xff]
  %v2004 = vld [vmem:[%s3 + $0xd8] sm:$0xff]
  %v2005 = vld [vmem:[%s3 + $0xe0] sm:$0xff]
  %v2006 = vld [vmem:[%s3 + $0xe8] sm:$0xff]
  %v2007 = vld [vmem:[%s3 + $0xf0] sm:$0xff]
  %v2008 = vld [vmem:[%s3 + $0xf8] sm:$0xff]
  %v2009 = vld [vmem:[%s3 + $0x100] sm:$0xff]
  %v2010 = vld [vmem:[%s3 + $0x108] sm:$0xff]
  %v2011 = vld [vmem:[%s3 + $0x110] sm:$0xff]
  %v2012 = vld [vmem:[%s3 + $0x118] sm:$0xff]
  %v2013 = vld [vmem:[%s3 + $0x120] sm:$0xff]
  %v2014 = vld [vmem:[%s3 + $0x128] sm:$0xff]
  %v2015 = vld [vmem:[%s3 + $0x130] sm:$0xff]
  %v2016 = vld [vmem:[%s3 + $0x138] sm:$0xff]
  %v2017 = vld [vmem:[%s3 + $0x140] sm:$0xff]
  %v2018 = vld [vmem:[%s3 + $0x148] sm:$0xff]
  %v2019 = vld [vmem:[%s3 + $0x150] sm:$0xff]
  %v2020 = vld [vmem:[%s3 + $0x158] sm:$0xff]
  %v2021 = vld [vmem:[%s3 + $0x160] sm:$0xff]
  %v2022 = vld [vmem:[%s3 + $0x168] sm:$0xff]
  %v2023 = vld [vmem:[%s3 + $0x170] sm:$0xff]
  %v2024 = vld [vmem:[%s3 + $0x178] sm:$0xff]
  %v2025 = vld [vmem:[%s3 + $0x180] sm:$0xff]
  %v2026 = vld [vmem:[%s3 + $0x188] sm:$0xff]
  %v2027 = vld [vmem:[%s3 + $0x190] sm:$0xff]
  %v2028 = vld [vmem:[%s3 + $0x198] sm:$0xff]
  %v2029 = vld [vmem:[%s3 + $0x1a0] sm:$0xff]
  %v2030 = vld [vmem:[%s3 + $0x1a8] sm:$0xff]
  %v2031 = vld [vmem:[%s3 + $0x1b0] sm:$0xff]
  %v2032 = vld [vmem:[%s3 + $0x1b8] sm:$0xff]
  %v2033 = vld [vmem:[%s3 + $0x1c0] sm:$0xff]
  %v2034 = vld [vmem:[%s3 + $0x1c8] sm:$0xff]
  %v2035 = vld [vmem:[%s3 + $0x1d0] sm:$0xff]
  %v2036 = vld [vmem:[%s3 + $0x1d8] sm:$0xff]
  %v2037 = vld [vmem:[%s3 + $0x1e0] sm:$0xff]
  %v2038 = vld [vmem:[%s3 + $0x1e8] sm:$0xff]
  %v2039 = vld [vmem:[%s3 + $0x1f0] sm:$0xff]
  %v2041 = vsel %vm94, %v1977, 0
  %v2044 = vsel %vm94, %v1978, 0
  %v2047 = vsel %vm94, %v1979, 0
  %v2050 = vsel %vm94, %v1980, 0
  %v2053 = vsel %vm94, %v1981, 0
  %v2056 = vsel %vm94, %v1982, 0
  %v2059 = vsel %vm94, %v1983, 0
  %v2062 = vsel %vm94, %v1984, 0
  %v2065 = vsel %vm94, %v1985, 0
  %v2068 = vsel %vm94, %v1986, 0
  %v2071 = vsel %vm94, %v1987, 0
  %v2074 = vsel %vm94, %v1988, 0
  %v2077 = vsel %vm94, %v1989, 0
  %v2080 = vsel %vm94, %v1990, 0
  %v2083 = vsel %vm94, %v1991, 0
  %v2086 = vsel %vm94, %v1992, 0
  %v2089 = vsel %vm94, %v1993, 0
  %v2092 = vsel %vm94, %v1994, 0
  %v2095 = vsel %vm94, %v1995, 0
  %v2098 = vsel %vm94, %v1996, 0
  %v2101 = vsel %vm94, %v1997, 0
  %v2104 = vsel %vm94, %v1998, 0
  %v2107 = vsel %vm94, %v1999, 0
  %v2110 = vsel %vm94, %v2000, 0
  %v2113 = vsel %vm94, %v2001, 0
  %v2116 = vsel %vm94, %v2002, 0
  %v2119 = vsel %vm94, %v2003, 0
  %v2122 = vsel %vm94, %v2004, 0
  %v2125 = vsel %vm94, %v2005, 0
  %v2128 = vsel %vm94, %v2006, 0
  %v2131 = vsel %vm94, %v2007, 0
  %v2134 = vsel %vm94, %v2008, 0
  %v2137 = vsel %vm94, %v2009, 0
  %v2140 = vsel %vm94, %v2010, 0
  %v2143 = vsel %vm94, %v2011, 0
  %v2146 = vsel %vm94, %v2012, 0
  %v2149 = vsel %vm94, %v2013, 0
  %v2152 = vsel %vm94, %v2014, 0
  %v2155 = vsel %vm94, %v2015, 0
  %v2158 = vsel %vm94, %v2016, 0
  %v2161 = vsel %vm94, %v2017, 0
  %v2164 = vsel %vm94, %v2018, 0
  %v2167 = vsel %vm94, %v2019, 0
  %v2170 = vsel %vm94, %v2020, 0
  %v2173 = vsel %vm94, %v2021, 0
  %v2176 = vsel %vm94, %v2022, 0
  %v2179 = vsel %vm94, %v2023, 0
  %v2182 = vsel %vm94, %v2024, 0
  %v2185 = vsel %vm94, %v2025, 0
  %v2188 = vsel %vm94, %v2026, 0
  %v2191 = vsel %vm94, %v2027, 0
  %v2194 = vsel %vm94, %v2028, 0
  %v2197 = vsel %vm94, %v2029, 0
  %v2200 = vsel %vm94, %v2030, 0
  %v2203 = vsel %vm94, %v2031, 0
  %v2206 = vsel %vm94, %v2032, 0
  %v2209 = vsel %vm94, %v2033, 0
  %v2212 = vsel %vm94, %v2034, 0
  %v2215 = vsel %vm94, %v2035, 0
  %v2218 = vsel %vm94, %v2036, 0
  %v2221 = vsel %vm94, %v2037, 0
  %v2224 = vsel %vm94, %v2038, 0
  %v2227 = vsel %vm94, %v2039, 0
  %2229 = vmatpush.msra.mxu0 0.0
  %2230 = vmatpush.msra.mxu0 0.0
  %2231 = vmatpush.msra.mxu0 0.0
  %2232 = vmatpush.msra.mxu0 0.0
  %2233 = vmatpush.msra.mxu0 0.0
  %2234 = vmatpush.msra.mxu0 0.0
  %2235 = vmatpush.msra.mxu0 0.0
  %2236 = vmatpush.msra.mxu0 0.0
  %2237 = vmatpush.msra.mxu0 0.0
  %2238 = vmatpush.msra.mxu0 0.0
  %2239 = vmatpush.msra.mxu0 0.0
  %2240 = vmatpush.msra.mxu0 0.0
  %2241 = vmatpush.msra.mxu0 %v286
  %2242 = vmatpush.msra.mxu0 %v25
  %2243 = vmatpush.msra.mxu0 %v24
  %2244 = vmatpush.msra.mxu0 %v23
  %2245 = vmatmul.f32.gmra.mxu0 %v2041
  %v2246 = vpop.f32.mrf.mxu0
  %v2247 = vadd.f32 %v92, %v2246
  %2248 = vmatmul.f32.gmra.mxu0 %v2044
  %v2249 = vpop.f32.mrf.mxu0
  %v2250 = vadd.f32 %v92, %v2249
  %2251 = vmatmul.f32.gmra.mxu0 %v2047
  %v2252 = vpop.f32.mrf.mxu0
  %v2253 = vadd.f32 %v92, %v2252
  %2254 = vmatmul.f32.gmra.mxu0 %v2050
  %v2255 = vpop.f32.mrf.mxu0
  %v2256 = vadd.f32 %v92, %v2255
  %2257 = vmatmul.f32.gmra.mxu0 %v2053
  %v2258 = vpop.f32.mrf.mxu0
  %v2259 = vadd.f32 %v92, %v2258
  %2260 = vmatmul.f32.gmra.mxu0 %v2056
  %v2261 = vpop.f32.mrf.mxu0
  %v2262 = vadd.f32 %v92, %v2261
  %2263 = vmatmul.f32.gmra.mxu0 %v2059
  %v2264 = vpop.f32.mrf.mxu0
  %v2265 = vadd.f32 %v92, %v2264
  %2266 = vmatmul.f32.gmra.mxu0 %v2062
  %v2267 = vpop.f32.mrf.mxu0
  %v2268 = vadd.f32 %v92, %v2267
  %2269 = vmatmul.f32.gmra.mxu0 %v2065
  %v2270 = vpop.f32.mrf.mxu0
  %v2271 = vadd.f32 %v92, %v2270
  %2272 = vmatmul.f32.gmra.mxu0 %v2068
  %v2273 = vpop.f32.mrf.mxu0
  %v2274 = vadd.f32 %v92, %v2273
  %2275 = vmatmul.f32.gmra.mxu0 %v2071
  %v2276 = vpop.f32.mrf.mxu0
  %v2277 = vadd.f32 %v92, %v2276
  %2278 = vmatmul.f32.gmra.mxu0 %v2074
  %v2279 = vpop.f32.mrf.mxu0
  %v2280 = vadd.f32 %v92, %v2279
  %2281 = vmatmul.f32.gmra.mxu0 %v2077
  %v2282 = vpop.f32.mrf.mxu0
  %v2283 = vadd.f32 %v92, %v2282
  %2284 = vmatmul.f32.gmra.mxu0 %v2080
  %v2285 = vpop.f32.mrf.mxu0
  %v2286 = vadd.f32 %v92, %v2285
  %2287 = vmatmul.f32.gmra.mxu0 %v2083
  %v2288 = vpop.f32.mrf.mxu0
  %v2289 = vadd.f32 %v92, %v2288
  %2290 = vmatmul.f32.gmra.mxu0 %v2086
  %v2291 = vpop.f32.mrf.mxu0
  %v2292 = vadd.f32 %v92, %v2291
  %2293 = vmatmul.f32.gmra.mxu0 %v2089
  %v2294 = vpop.f32.mrf.mxu0
  %v2295 = vadd.f32 %v92, %v2294
  %2296 = vmatmul.f32.gmra.mxu0 %v2092
  %v2297 = vpop.f32.mrf.mxu0
  %v2298 = vadd.f32 %v92, %v2297
  %2299 = vmatmul.f32.gmra.mxu0 %v2095
  %v2300 = vpop.f32.mrf.mxu0
  %v2301 = vadd.f32 %v92, %v2300
  %2302 = vmatmul.f32.gmra.mxu0 %v2098
  %v2303 = vpop.f32.mrf.mxu0
  %v2304 = vadd.f32 %v92, %v2303
  %2305 = vmatmul.f32.gmra.mxu0 %v2101
  %v2306 = vpop.f32.mrf.mxu0
  %v2307 = vadd.f32 %v92, %v2306
  %2308 = vmatmul.f32.gmra.mxu0 %v2104
  %v2309 = vpop.f32.mrf.mxu0
  %v2310 = vadd.f32 %v92, %v2309
  %2311 = vmatmul.f32.gmra.mxu0 %v2107
  %v2312 = vpop.f32.mrf.mxu0
  %v2313 = vadd.f32 %v92, %v2312
  %2314 = vmatmul.f32.gmra.mxu0 %v2110
  %v2315 = vpop.f32.mrf.mxu0
  %v2316 = vadd.f32 %v92, %v2315
  %2317 = vmatmul.f32.gmra.mxu0 %v2113
  %v2318 = vpop.f32.mrf.mxu0
  %v2319 = vadd.f32 %v92, %v2318
  %2320 = vmatmul.f32.gmra.mxu0 %v2116
  %v2321 = vpop.f32.mrf.mxu0
  %v2322 = vadd.f32 %v92, %v2321
  %2323 = vmatmul.f32.gmra.mxu0 %v2119
  %v2324 = vpop.f32.mrf.mxu0
  %v2325 = vadd.f32 %v92, %v2324
  %2326 = vmatmul.f32.gmra.mxu0 %v2122
  %v2327 = vpop.f32.mrf.mxu0
  %v2328 = vadd.f32 %v92, %v2327
  %2329 = vmatmul.f32.gmra.mxu0 %v2125
  %v2330 = vpop.f32.mrf.mxu0
  %v2331 = vadd.f32 %v92, %v2330
  %2332 = vmatmul.f32.gmra.mxu0 %v2128
  %v2333 = vpop.f32.mrf.mxu0
  %v2334 = vadd.f32 %v92, %v2333
  %2335 = vmatmul.f32.gmra.mxu0 %v2131
  %v2336 = vpop.f32.mrf.mxu0
  %v2337 = vadd.f32 %v92, %v2336
  %2338 = vmatmul.f32.gmra.mxu0 %v2134
  %v2339 = vpop.f32.mrf.mxu0
  %v2340 = vadd.f32 %v92, %v2339
  %2341 = vmatmul.f32.gmra.mxu0 %v2137
  %v2342 = vpop.f32.mrf.mxu0
  %v2343 = vadd.f32 %v92, %v2342
  %2344 = vmatmul.f32.gmra.mxu0 %v2140
  %v2345 = vpop.f32.mrf.mxu0
  %v2346 = vadd.f32 %v92, %v2345
  %2347 = vmatmul.f32.gmra.mxu0 %v2143
  %v2348 = vpop.f32.mrf.mxu0
  %v2349 = vadd.f32 %v92, %v2348
  %2350 = vmatmul.f32.gmra.mxu0 %v2146
  %v2351 = vpop.f32.mrf.mxu0
  %v2352 = vadd.f32 %v92, %v2351
  %2353 = vmatmul.f32.gmra.mxu0 %v2149
  %v2354 = vpop.f32.mrf.mxu0
  %v2355 = vadd.f32 %v92, %v2354
  %2356 = vmatmul.f32.gmra.mxu0 %v2152
  %v2357 = vpop.f32.mrf.mxu0
  %v2358 = vadd.f32 %v92, %v2357
  %2359 = vmatmul.f32.gmra.mxu0 %v2155
  %v2360 = vpop.f32.mrf.mxu0
  %v2361 = vadd.f32 %v92, %v2360
  %2362 = vmatmul.f32.gmra.mxu0 %v2158
  %v2363 = vpop.f32.mrf.mxu0
  %v2364 = vadd.f32 %v92, %v2363
  %2365 = vmatmul.f32.gmra.mxu0 %v2161
  %v2366 = vpop.f32.mrf.mxu0
  %v2367 = vadd.f32 %v92, %v2366
  %2368 = vmatmul.f32.gmra.mxu0 %v2164
  %v2369 = vpop.f32.mrf.mxu0
  %v2370 = vadd.f32 %v92, %v2369
  %2371 = vmatmul.f32.gmra.mxu0 %v2167
  %v2372 = vpop.f32.mrf.mxu0
  %v2373 = vadd.f32 %v92, %v2372
  %2374 = vmatmul.f32.gmra.mxu0 %v2170
  %v2375 = vpop.f32.mrf.mxu0
  %v2376 = vadd.f32 %v92, %v2375
  %2377 = vmatmul.f32.gmra.mxu0 %v2173
  %v2378 = vpop.f32.mrf.mxu0
  %v2379 = vadd.f32 %v92, %v2378
  %2380 = vmatmul.f32.gmra.mxu0 %v2176
  %v2381 = vpop.f32.mrf.mxu0
  %v2382 = vadd.f32 %v92, %v2381
  %2383 = vmatmul.f32.gmra.mxu0 %v2179
  %v2384 = vpop.f32.mrf.mxu0
  %v2385 = vadd.f32 %v92, %v2384
  %2386 = vmatmul.f32.gmra.mxu0 %v2182
  %v2387 = vpop.f32.mrf.mxu0
  %v2388 = vadd.f32 %v92, %v2387
  %2389 = vmatmul.f32.gmra.mxu0 %v2185
  %v2390 = vpop.f32.mrf.mxu0
  %v2391 = vadd.f32 %v92, %v2390
  %2392 = vmatmul.f32.gmra.mxu0 %v2188
  %v2393 = vpop.f32.mrf.mxu0
  %v2394 = vadd.f32 %v92, %v2393
  %2395 = vmatmul.f32.gmra.mxu0 %v2191
  %v2396 = vpop.f32.mrf.mxu0
  %v2397 = vadd.f32 %v92, %v2396
  %2398 = vmatmul.f32.gmra.mxu0 %v2194
  %v2399 = vpop.f32.mrf.mxu0
  %v2400 = vadd.f32 %v92, %v2399
  %2401 = vmatmul.f32.gmra.mxu0 %v2197
  %v2402 = vpop.f32.mrf.mxu0
  %v2403 = vadd.f32 %v92, %v2402
  %2404 = vmatmul.f32.gmra.mxu0 %v2200
  %v2405 = vpop.f32.mrf.mxu0
  %v2406 = vadd.f32 %v92, %v2405
  %2407 = vmatmul.f32.gmra.mxu0 %v2203
  %v2408 = vpop.f32.mrf.mxu0
  %v2409 = vadd.f32 %v92, %v2408
  %2410 = vmatmul.f32.gmra.mxu0 %v2206
  %v2411 = vpop.f32.mrf.mxu0
  %v2412 = vadd.f32 %v92, %v2411
  %2413 = vmatmul.f32.gmra.mxu0 %v2209
  %v2414 = vpop.f32.mrf.mxu0
  %v2415 = vadd.f32 %v92, %v2414
  %2416 = vmatmul.f32.gmra.mxu0 %v2212
  %v2417 = vpop.f32.mrf.mxu0
  %v2418 = vadd.f32 %v92, %v2417
  %2419 = vmatmul.f32.gmra.mxu0 %v2215
  %v2420 = vpop.f32.mrf.mxu0
  %v2421 = vadd.f32 %v92, %v2420
  %2422 = vmatmul.f32.gmra.mxu0 %v2218
  %v2423 = vpop.f32.mrf.mxu0
  %v2424 = vadd.f32 %v92, %v2423
  %2425 = vmatmul.f32.gmra.mxu0 %v2221
  %v2426 = vpop.f32.mrf.mxu0
  %v2427 = vadd.f32 %v92, %v2426
  %2428 = vmatmul.f32.gmra.mxu0 %v2224
  %v2429 = vpop.f32.mrf.mxu0
  %v2430 = vadd.f32 %v92, %v2429
  %2431 = vmatmul.f32.gmra.mxu0 %v2227
  %v2432 = vpop.f32.mrf.mxu0
  %v2433 = vadd.f32 %v92, %v2432
  %2434 = vdwg.mxu0
  %vm2435 = vcmp.ge.f32.partialorder %v2247, 0.0
  %vm2436 = vcmp.ge.f32.partialorder %v2250, 0.0
  %vm2437 = vcmp.ge.f32.partialorder %v2253, 0.0
  %vm2438 = vcmp.ge.f32.partialorder %v2256, 0.0
  %vm2439 = vcmp.ge.f32.partialorder %v2259, 0.0
  %vm2440 = vcmp.ge.f32.partialorder %v2262, 0.0
  %vm2441 = vcmp.ge.f32.partialorder %v2265, 0.0
  %vm2442 = vcmp.ge.f32.partialorder %v2268, 0.0
  %vm2443 = vcmp.ge.f32.partialorder %v2271, 0.0
  %vm2444 = vcmp.ge.f32.partialorder %v2274, 0.0
  %vm2445 = vcmp.ge.f32.partialorder %v2277, 0.0
  %vm2446 = vcmp.ge.f32.partialorder %v2280, 0.0
  %vm2447 = vcmp.ge.f32.partialorder %v2283, 0.0
  %vm2448 = vcmp.ge.f32.partialorder %v2286, 0.0
  %vm2449 = vcmp.ge.f32.partialorder %v2289, 0.0
  %vm2450 = vcmp.ge.f32.partialorder %v2292, 0.0
  %vm2451 = vcmp.ge.f32.partialorder %v2295, 0.0
  %vm2452 = vcmp.ge.f32.partialorder %v2298, 0.0
  %vm2453 = vcmp.ge.f32.partialorder %v2301, 0.0
  %vm2454 = vcmp.ge.f32.partialorder %v2304, 0.0
  %vm2455 = vcmp.ge.f32.partialorder %v2307, 0.0
  %vm2456 = vcmp.ge.f32.partialorder %v2310, 0.0
  %vm2457 = vcmp.ge.f32.partialorder %v2313, 0.0
  %vm2458 = vcmp.ge.f32.partialorder %v2316, 0.0
  %vm2459 = vcmp.ge.f32.partialorder %v2319, 0.0
  %vm2460 = vcmp.ge.f32.partialorder %v2322, 0.0
  %vm2461 = vcmp.ge.f32.partialorder %v2325, 0.0
  %vm2462 = vcmp.ge.f32.partialorder %v2328, 0.0
  %vm2463 = vcmp.ge.f32.partialorder %v2331, 0.0
  %vm2464 = vcmp.ge.f32.partialorder %v2334, 0.0
  %vm2465 = vcmp.ge.f32.partialorder %v2337, 0.0
  %vm2466 = vcmp.ge.f32.partialorder %v2340, 0.0
  %vm2467 = vcmp.ge.f32.partialorder %v2343, 0.0
  %vm2468 = vcmp.ge.f32.partialorder %v2346, 0.0
  %vm2469 = vcmp.ge.f32.partialorder %v2349, 0.0
  %vm2470 = vcmp.ge.f32.partialorder %v2352, 0.0
  %vm2471 = vcmp.ge.f32.partialorder %v2355, 0.0
  %vm2472 = vcmp.ge.f32.partialorder %v2358, 0.0
  %vm2473 = vcmp.ge.f32.partialorder %v2361, 0.0
  %vm2474 = vcmp.ge.f32.partialorder %v2364, 0.0
  %vm2475 = vcmp.ge.f32.partialorder %v2367, 0.0
  %vm2476 = vcmp.ge.f32.partialorder %v2370, 0.0
  %vm2477 = vcmp.ge.f32.partialorder %v2373, 0.0
  %vm2478 = vcmp.ge.f32.partialorder %v2376, 0.0
  %vm2479 = vcmp.ge.f32.partialorder %v2379, 0.0
  %vm2480 = vcmp.ge.f32.partialorder %v2382, 0.0
  %vm2481 = vcmp.ge.f32.partialorder %v2385, 0.0
  %vm2482 = vcmp.ge.f32.partialorder %v2388, 0.0
  %vm2483 = vcmp.ge.f32.partialorder %v2391, 0.0
  %vm2484 = vcmp.ge.f32.partialorder %v2394, 0.0
  %vm2485 = vcmp.ge.f32.partialorder %v2397, 0.0
  %vm2486 = vcmp.ge.f32.partialorder %v2400, 0.0
  %vm2487 = vcmp.ge.f32.partialorder %v2403, 0.0
  %vm2488 = vcmp.ge.f32.partialorder %v2406, 0.0
  %vm2489 = vcmp.ge.f32.partialorder %v2409, 0.0
  %vm2490 = vcmp.ge.f32.partialorder %v2412, 0.0
  %vm2491 = vcmp.ge.f32.partialorder %v2415, 0.0
  %vm2492 = vcmp.ge.f32.partialorder %v2418, 0.0
  %vm2493 = vcmp.ge.f32.partialorder %v2421, 0.0
  %vm2494 = vcmp.ge.f32.partialorder %v2424, 0.0
  %vm2495 = vcmp.ge.f32.partialorder %v2427, 0.0
  %vm2496 = vcmp.ge.f32.partialorder %v2430, 0.0
  %vm2497 = vcmp.ge.f32.partialorder %v2433, 0.0
  %v2498 = vmul.f32 %v2247, 0.01
  %v2499 = vmul.f32 %v2250, 0.01
  %v2500 = vmul.f32 %v2253, 0.01
  %v2501 = vmul.f32 %v2256, 0.01
  %v2502 = vmul.f32 %v2259, 0.01
  %v2503 = vmul.f32 %v2262, 0.01
  %v2504 = vmul.f32 %v2265, 0.01
  %v2505 = vmul.f32 %v2268, 0.01
  %v2506 = vmul.f32 %v2271, 0.01
  %v2507 = vmul.f32 %v2274, 0.01
  %v2508 = vmul.f32 %v2277, 0.01
  %v2509 = vmul.f32 %v2280, 0.01
  %v2510 = vmul.f32 %v2283, 0.01
  %v2511 = vmul.f32 %v2286, 0.01
  %v2512 = vmul.f32 %v2289, 0.01
  %v2513 = vmul.f32 %v2292, 0.01
  %v2514 = vmul.f32 %v2295, 0.01
  %v2515 = vmul.f32 %v2298, 0.01
  %v2516 = vmul.f32 %v2301, 0.01
  %v2517 = vmul.f32 %v2304, 0.01
  %v2518 = vmul.f32 %v2307, 0.01
  %v2519 = vmul.f32 %v2310, 0.01
  %v2520 = vmul.f32 %v2313, 0.01
  %v2521 = vmul.f32 %v2316, 0.01
  %v2522 = vmul.f32 %v2319, 0.01
  %v2523 = vmul.f32 %v2322, 0.01
  %v2524 = vmul.f32 %v2325, 0.01
  %v2525 = vmul.f32 %v2328, 0.01
  %v2526 = vmul.f32 %v2331, 0.01
  %v2527 = vmul.f32 %v2334, 0.01
  %v2528 = vmul.f32 %v2337, 0.01
  %v2529 = vmul.f32 %v2340, 0.01
  %v2530 = vmul.f32 %v2343, 0.01
  %v2531 = vmul.f32 %v2346, 0.01
  %v2532 = vmul.f32 %v2349, 0.01
  %v2533 = vmul.f32 %v2352, 0.01
  %v2534 = vmul.f32 %v2355, 0.01
  %v2535 = vmul.f32 %v2358, 0.01
  %v2536 = vmul.f32 %v2361, 0.01
  %v2537 = vmul.f32 %v2364, 0.01
  %v2538 = vmul.f32 %v2367, 0.01
  %v2539 = vmul.f32 %v2370, 0.01
  %v2540 = vmul.f32 %v2373, 0.01
  %v2541 = vmul.f32 %v2376, 0.01
  %v2542 = vmul.f32 %v2379, 0.01
  %v2543 = vmul.f32 %v2382, 0.01
  %v2544 = vmul.f32 %v2385, 0.01
  %v2545 = vmul.f32 %v2388, 0.01
  %v2546 = vmul.f32 %v2391, 0.01
  %v2547 = vmul.f32 %v2394, 0.01
  %v2548 = vmul.f32 %v2397, 0.01
  %v2549 = vmul.f32 %v2400, 0.01
  %v2550 = vmul.f32 %v2403, 0.01
  %v2551 = vmul.f32 %v2406, 0.01
  %v2552 = vmul.f32 %v2409, 0.01
  %v2553 = vmul.f32 %v2412, 0.01
  %v2554 = vmul.f32 %v2415, 0.01
  %v2555 = vmul.f32 %v2418, 0.01
  %v2556 = vmul.f32 %v2421, 0.01
  %v2557 = vmul.f32 %v2424, 0.01
  %v2558 = vmul.f32 %v2427, 0.01
  %v2559 = vmul.f32 %v2430, 0.01
  %v2560 = vmul.f32 %v2433, 0.01
  %v2561 = vsel %vm2435, %v2247, %v2498
  %v2562 = vsel %vm2436, %v2250, %v2499
  %v2563 = vsel %vm2437, %v2253, %v2500
  %v2564 = vsel %vm2438, %v2256, %v2501
  %v2565 = vsel %vm2439, %v2259, %v2502
  %v2566 = vsel %vm2440, %v2262, %v2503
  %v2567 = vsel %vm2441, %v2265, %v2504
  %v2568 = vsel %vm2442, %v2268, %v2505
  %v2569 = vsel %vm2443, %v2271, %v2506
  %v2570 = vsel %vm2444, %v2274, %v2507
  %v2571 = vsel %vm2445, %v2277, %v2508
  %v2572 = vsel %vm2446, %v2280, %v2509
  %v2573 = vsel %vm2447, %v2283, %v2510
  %v2574 = vsel %vm2448, %v2286, %v2511
  %v2575 = vsel %vm2449, %v2289, %v2512
  %v2576 = vsel %vm2450, %v2292, %v2513
  %v2577 = vsel %vm2451, %v2295, %v2514
  %v2578 = vsel %vm2452, %v2298, %v2515
  %v2579 = vsel %vm2453, %v2301, %v2516
  %v2580 = vsel %vm2454, %v2304, %v2517
  %v2581 = vsel %vm2455, %v2307, %v2518
  %v2582 = vsel %vm2456, %v2310, %v2519
  %v2583 = vsel %vm2457, %v2313, %v2520
  %v2584 = vsel %vm2458, %v2316, %v2521
  %v2585 = vsel %vm2459, %v2319, %v2522
  %v2586 = vsel %vm2460, %v2322, %v2523
  %v2587 = vsel %vm2461, %v2325, %v2524
  %v2588 = vsel %vm2462, %v2328, %v2525
  %v2589 = vsel %vm2463, %v2331, %v2526
  %v2590 = vsel %vm2464, %v2334, %v2527
  %v2591 = vsel %vm2465, %v2337, %v2528
  %v2592 = vsel %vm2466, %v2340, %v2529
  %v2593 = vsel %vm2467, %v2343, %v2530
  %v2594 = vsel %vm2468, %v2346, %v2531
  %v2595 = vsel %vm2469, %v2349, %v2532
  %v2596 = vsel %vm2470, %v2352, %v2533
  %v2597 = vsel %vm2471, %v2355, %v2534
  %v2598 = vsel %vm2472, %v2358, %v2535
  %v2599 = vsel %vm2473, %v2361, %v2536
  %v2600 = vsel %vm2474, %v2364, %v2537
  %v2601 = vsel %vm2475, %v2367, %v2538
  %v2602 = vsel %vm2476, %v2370, %v2539
  %v2603 = vsel %vm2477, %v2373, %v2540
  %v2604 = vsel %vm2478, %v2376, %v2541
  %v2605 = vsel %vm2479, %v2379, %v2542
  %v2606 = vsel %vm2480, %v2382, %v2543
  %v2607 = vsel %vm2481, %v2385, %v2544
  %v2608 = vsel %vm2482, %v2388, %v2545
  %v2609 = vsel %vm2483, %v2391, %v2546
  %v2610 = vsel %vm2484, %v2394, %v2547
  %v2611 = vsel %vm2485, %v2397, %v2548
  %v2612 = vsel %vm2486, %v2400, %v2549
  %v2613 = vsel %vm2487, %v2403, %v2550
  %v2614 = vsel %vm2488, %v2406, %v2551
  %v2615 = vsel %vm2489, %v2409, %v2552
  %v2616 = vsel %vm2490, %v2412, %v2553
  %v2617 = vsel %vm2491, %v2415, %v2554
  %v2618 = vsel %vm2492, %v2418, %v2555
  %v2619 = vsel %vm2493, %v2421, %v2556
  %v2620 = vsel %vm2494, %v2424, %v2557
  %v2621 = vsel %vm2495, %v2427, %v2558
  %v2622 = vsel %vm2496, %v2430, %v2559
  %v2623 = vsel %vm2497, %v2433, %v2560
  %v2624 = vmax.f32 %v620, %v1267
  %v2625 = vmax.f32 %v621, %v1268
  %v2626 = vmax.f32 %v622, %v1269
  %v2627 = vmax.f32 %v623, %v1270
  %v2628 = vmax.f32 %v624, %v1271
  %v2629 = vmax.f32 %v625, %v1272
  %v2630 = vmax.f32 %v626, %v1273
  %v2631 = vmax.f32 %v627, %v1274
  %v2632 = vmax.f32 %v628, %v1275
  %v2633 = vmax.f32 %v629, %v1276
  %v2634 = vmax.f32 %v630, %v1277
  %v2635 = vmax.f32 %v631, %v1278
  %v2636 = vmax.f32 %v632, %v1279
  %v2637 = vmax.f32 %v633, %v1280
  %v2638 = vmax.f32 %v634, %v1281
  %v2639 = vmax.f32 %v635, %v1282
  %v2640 = vmax.f32 %v636, %v1283
  %v2641 = vmax.f32 %v637, %v1284
  %v2642 = vmax.f32 %v638, %v1285
  %v2643 = vmax.f32 %v639, %v1286
  %v2644 = vmax.f32 %v640, %v1287
  %v2645 = vmax.f32 %v641, %v1288
  %v2646 = vmax.f32 %v642, %v1289
  %v2647 = vmax.f32 %v643, %v1290
  %v2648 = vmax.f32 %v644, %v1291
  %v2649 = vmax.f32 %v645, %v1292
  %v2650 = vmax.f32 %v646, %v1293
  %v2651 = vmax.f32 %v647, %v1294
  %v2652 = vmax.f32 %v648, %v1295
  %v2653 = vmax.f32 %v649, %v1296
  %v2654 = vmax.f32 %v650, %v1297
  %v2655 = vmax.f32 %v651, %v1298
  %v2656 = vmax.f32 %v652, %v1299
  %v2657 = vmax.f32 %v653, %v1300
  %v2658 = vmax.f32 %v654, %v1301
  %v2659 = vmax.f32 %v655, %v1302
  %v2660 = vmax.f32 %v656, %v1303
  %v2661 = vmax.f32 %v657, %v1304
  %v2662 = vmax.f32 %v658, %v1305
  %v2663 = vmax.f32 %v659, %v1306
  %v2664 = vmax.f32 %v660, %v1307
  %v2665 = vmax.f32 %v661, %v1308
  %v2666 = vmax.f32 %v662, %v1309
  %v2667 = vmax.f32 %v663, %v1310
  %v2668 = vmax.f32 %v664, %v1311
  %v2669 = vmax.f32 %v665, %v1312
  %v2670 = vmax.f32 %v666, %v1313
  %v2671 = vmax.f32 %v667, %v1314
  %v2672 = vmax.f32 %v668, %v1315
  %v2673 = vmax.f32 %v669, %v1316
  %v2674 = vmax.f32 %v670, %v1317
  %v2675 = vmax.f32 %v671, %v1318
  %v2676 = vmax.f32 %v672, %v1319
  %v2677 = vmax.f32 %v673, %v1320
  %v2678 = vmax.f32 %v674, %v1321
  %v2679 = vmax.f32 %v675, %v1322
  %v2680 = vmax.f32 %v676, %v1323
  %v2681 = vmax.f32 %v677, %v1324
  %v2682 = vmax.f32 %v678, %v1325
  %v2683 = vmax.f32 %v679, %v1326
  %v2684 = vmax.f32 %v680, %v1327
  %v2685 = vmax.f32 %v681, %v1328
  %v2686 = vmax.f32 %v682, %v1329
  %v2687 = vmax.f32 %v1914, %v2561
  %v2688 = vmax.f32 %v1915, %v2562
  %v2689 = vmax.f32 %v1916, %v2563
  %v2690 = vmax.f32 %v1917, %v2564
  %v2691 = vmax.f32 %v1918, %v2565
  %v2692 = vmax.f32 %v1919, %v2566
  %v2693 = vmax.f32 %v1920, %v2567
  %v2694 = vmax.f32 %v1921, %v2568
  %v2695 = vmax.f32 %v1922, %v2569
  %v2696 = vmax.f32 %v1923, %v2570
  %v2697 = vmax.f32 %v1924, %v2571
  %v2698 = vmax.f32 %v1925, %v2572
  %v2699 = vmax.f32 %v1926, %v2573
  %v2700 = vmax.f32 %v1927, %v2574
  %v2701 = vmax.f32 %v1928, %v2575
  %v2702 = vmax.f32 %v1929, %v2576
  %v2703 = vmax.f32 %v1930, %v2577
  %v2704 = vmax.f32 %v1931, %v2578
  %v2705 = vmax.f32 %v1932, %v2579
  %v2706 = vmax.f32 %v1933, %v2580
  %v2707 = vmax.f32 %v1934, %v2581
  %v2708 = vmax.f32 %v1935, %v2582
  %v2709 = vmax.f32 %v1936, %v2583
  %v2710 = vmax.f32 %v1937, %v2584
  %v2711 = vmax.f32 %v1938, %v2585
  %v2712 = vmax.f32 %v1939, %v2586
  %v2713 = vmax.f32 %v1940, %v2587
  %v2714 = vmax.f32 %v1941, %v2588
  %v2715 = vmax.f32 %v1942, %v2589
  %v2716 = vmax.f32 %v1943, %v2590
  %v2717 = vmax.f32 %v1944, %v2591
  %v2718 = vmax.f32 %v1945, %v2592
  %v2719 = vmax.f32 %v1946, %v2593
  %v2720 = vmax.f32 %v1947, %v2594
  %v2721 = vmax.f32 %v1948, %v2595
  %v2722 = vmax.f32 %v1949, %v2596
  %v2723 = vmax.f32 %v1950, %v2597
  %v2724 = vmax.f32 %v1951, %v2598
  %v2725 = vmax.f32 %v1952, %v2599
  %v2726 = vmax.f32 %v1953, %v2600
  %v2727 = vmax.f32 %v1954, %v2601
  %v2728 = vmax.f32 %v1955, %v2602
  %v2729 = vmax.f32 %v1956, %v2603
  %v2730 = vmax.f32 %v1957, %v2604
  %v2731 = vmax.f32 %v1958, %v2605
  %v2732 = vmax.f32 %v1959, %v2606
  %v2733 = vmax.f32 %v1960, %v2607
  %v2734 = vmax.f32 %v1961, %v2608
  %v2735 = vmax.f32 %v1962, %v2609
  %v2736 = vmax.f32 %v1963, %v2610
  %v2737 = vmax.f32 %v1964, %v2611
  %v2738 = vmax.f32 %v1965, %v2612
  %v2739 = vmax.f32 %v1966, %v2613
  %v2740 = vmax.f32 %v1967, %v2614
  %v2741 = vmax.f32 %v1968, %v2615
  %v2742 = vmax.f32 %v1969, %v2616
  %v2743 = vmax.f32 %v1970, %v2617
  %v2744 = vmax.f32 %v1971, %v2618
  %v2745 = vmax.f32 %v1972, %v2619
  %v2746 = vmax.f32 %v1973, %v2620
  %v2747 = vmax.f32 %v1974, %v2621
  %v2748 = vmax.f32 %v1975, %v2622
  %v2749 = vmax.f32 %v1976, %v2623
  %v2750 = vmax.f32 %v2624, %v2687
  %v2751 = vmax.f32 %v2625, %v2688
  %v2752 = vmax.f32 %v2626, %v2689
  %v2753 = vmax.f32 %v2627, %v2690
  %v2754 = vmax.f32 %v2628, %v2691
  %v2755 = vmax.f32 %v2629, %v2692
  %v2756 = vmax.f32 %v2630, %v2693
  %v2757 = vmax.f32 %v2631, %v2694
  %v2758 = vmax.f32 %v2632, %v2695
  %v2759 = vmax.f32 %v2633, %v2696
  %v2760 = vmax.f32 %v2634, %v2697
  %v2761 = vmax.f32 %v2635, %v2698
  %v2762 = vmax.f32 %v2636, %v2699
  %v2763 = vmax.f32 %v2637, %v2700
  %v2764 = vmax.f32 %v2638, %v2701
  %v2765 = vmax.f32 %v2639, %v2702
  %v2766 = vmax.f32 %v2640, %v2703
  %v2767 = vmax.f32 %v2641, %v2704
  %v2768 = vmax.f32 %v2642, %v2705
  %v2769 = vmax.f32 %v2643, %v2706
  %v2770 = vmax.f32 %v2644, %v2707
  %v2771 = vmax.f32 %v2645, %v2708
  %v2772 = vmax.f32 %v2646, %v2709
  %v2773 = vmax.f32 %v2647, %v2710
  %v2774 = vmax.f32 %v2648, %v2711
  %v2775 = vmax.f32 %v2649, %v2712
  %v2776 = vmax.f32 %v2650, %v2713
  %v2777 = vmax.f32 %v2651, %v2714
  %v2778 = vmax.f32 %v2652, %v2715
  %v2779 = vmax.f32 %v2653, %v2716
  %v2780 = vmax.f32 %v2654, %v2717
  %v2781 = vmax.f32 %v2655, %v2718
  %v2782 = vmax.f32 %v2656, %v2719
  %v2783 = vmax.f32 %v2657, %v2720
  %v2784 = vmax.f32 %v2658, %v2721
  %v2785 = vmax.f32 %v2659, %v2722
  %v2786 = vmax.f32 %v2660, %v2723
  %v2787 = vmax.f32 %v2661, %v2724
  %v2788 = vmax.f32 %v2662, %v2725
  %v2789 = vmax.f32 %v2663, %v2726
  %v2790 = vmax.f32 %v2664, %v2727
  %v2791 = vmax.f32 %v2665, %v2728
  %v2792 = vmax.f32 %v2666, %v2729
  %v2793 = vmax.f32 %v2667, %v2730
  %v2794 = vmax.f32 %v2668, %v2731
  %v2795 = vmax.f32 %v2669, %v2732
  %v2796 = vmax.f32 %v2670, %v2733
  %v2797 = vmax.f32 %v2671, %v2734
  %v2798 = vmax.f32 %v2672, %v2735
  %v2799 = vmax.f32 %v2673, %v2736
  %v2800 = vmax.f32 %v2674, %v2737
  %v2801 = vmax.f32 %v2675, %v2738
  %v2802 = vmax.f32 %v2676, %v2739
  %v2803 = vmax.f32 %v2677, %v2740
  %v2804 = vmax.f32 %v2678, %v2741
  %v2805 = vmax.f32 %v2679, %v2742
  %v2806 = vmax.f32 %v2680, %v2743
  %v2807 = vmax.f32 %v2681, %v2744
  %v2808 = vmax.f32 %v2682, %v2745
  %v2809 = vmax.f32 %v2683, %v2746
  %v2810 = vmax.f32 %v2684, %v2747
  %v2811 = vmax.f32 %v2685, %v2748
  %v2812 = vmax.f32 %v2686, %v2749
  %vm2813 = vcmask 162816
  %2814 = vst.msk [vmem:[%s6] sm:$0xff] %vm2813, %v2750
  %2815 = vst.msk [vmem:[%s6 + $0x8] sm:$0xff] %vm2813, %v2751
  %2816 = vst.msk [vmem:[%s6 + $0x10] sm:$0xff] %vm2813, %v2752
  %2817 = vst.msk [vmem:[%s6 + $0x18] sm:$0xff] %vm2813, %v2753
  %2818 = vst.msk [vmem:[%s6 + $0x20] sm:$0xff] %vm2813, %v2754
  %2819 = vst.msk [vmem:[%s6 + $0x28] sm:$0xff] %vm2813, %v2755
  %2820 = vst.msk [vmem:[%s6 + $0x30] sm:$0xff] %vm2813, %v2756
  %2821 = vst.msk [vmem:[%s6 + $0x38] sm:$0xff] %vm2813, %v2757
  %2822 = vst.msk [vmem:[%s6 + $0x40] sm:$0xff] %vm2813, %v2758
  %2823 = vst.msk [vmem:[%s6 + $0x48] sm:$0xff] %vm2813, %v2759
  %2824 = vst.msk [vmem:[%s6 + $0x50] sm:$0xff] %vm2813, %v2760
  %2825 = vst.msk [vmem:[%s6 + $0x58] sm:$0xff] %vm2813, %v2761
  %2826 = vst.msk [vmem:[%s6 + $0x60] sm:$0xff] %vm2813, %v2762
  %2827 = vst.msk [vmem:[%s6 + $0x68] sm:$0xff] %vm2813, %v2763
  %2828 = vst.msk [vmem:[%s6 + $0x70] sm:$0xff] %vm2813, %v2764
  %2829 = vst.msk [vmem:[%s6 + $0x78] sm:$0xff] %vm2813, %v2765
  %2830 = vst.msk [vmem:[%s6 + $0x80] sm:$0xff] %vm2813, %v2766
  %2831 = vst.msk [vmem:[%s6 + $0x88] sm:$0xff] %vm2813, %v2767
  %2832 = vst.msk [vmem:[%s6 + $0x90] sm:$0xff] %vm2813, %v2768
  %2833 = vst.msk [vmem:[%s6 + $0x98] sm:$0xff] %vm2813, %v2769
  %2834 = vst.msk [vmem:[%s6 + $0xa0] sm:$0xff] %vm2813, %v2770
  %2835 = vst.msk [vmem:[%s6 + $0xa8] sm:$0xff] %vm2813, %v2771
  %2836 = vst.msk [vmem:[%s6 + $0xb0] sm:$0xff] %vm2813, %v2772
  %2837 = vst.msk [vmem:[%s6 + $0xb8] sm:$0xff] %vm2813, %v2773
  %2838 = vst.msk [vmem:[%s6 + $0xc0] sm:$0xff] %vm2813, %v2774
  %2839 = vst.msk [vmem:[%s6 + $0xc8] sm:$0xff] %vm2813, %v2775
  %2840 = vst.msk [vmem:[%s6 + $0xd0] sm:$0xff] %vm2813, %v2776
  %2841 = vst.msk [vmem:[%s6 + $0xd8] sm:$0xff] %vm2813, %v2777
  %2842 = vst.msk [vmem:[%s6 + $0xe0] sm:$0xff] %vm2813, %v2778
  %2843 = vst.msk [vmem:[%s6 + $0xe8] sm:$0xff] %vm2813, %v2779
  %2844 = vst.msk [vmem:[%s6 + $0xf0] sm:$0xff] %vm2813, %v2780
  %2845 = vst.msk [vmem:[%s6 + $0xf8] sm:$0xff] %vm2813, %v2781
  %2846 = vst.msk [vmem:[%s6 + $0x100] sm:$0xff] %vm2813, %v2782
  %2847 = vst.msk [vmem:[%s6 + $0x108] sm:$0xff] %vm2813, %v2783
  %2848 = vst.msk [vmem:[%s6 + $0x110] sm:$0xff] %vm2813, %v2784
  %2849 = vst.msk [vmem:[%s6 + $0x118] sm:$0xff] %vm2813, %v2785
  %2850 = vst.msk [vmem:[%s6 + $0x120] sm:$0xff] %vm2813, %v2786
  %2851 = vst.msk [vmem:[%s6 + $0x128] sm:$0xff] %vm2813, %v2787
  %2852 = vst.msk [vmem:[%s6 + $0x130] sm:$0xff] %vm2813, %v2788
  %2853 = vst.msk [vmem:[%s6 + $0x138] sm:$0xff] %vm2813, %v2789
  %2854 = vst.msk [vmem:[%s6 + $0x140] sm:$0xff] %vm2813, %v2790
  %2855 = vst.msk [vmem:[%s6 + $0x148] sm:$0xff] %vm2813, %v2791
  %2856 = vst.msk [vmem:[%s6 + $0x150] sm:$0xff] %vm2813, %v2792
  %2857 = vst.msk [vmem:[%s6 + $0x158] sm:$0xff] %vm2813, %v2793
  %2858 = vst.msk [vmem:[%s6 + $0x160] sm:$0xff] %vm2813, %v2794
  %2859 = vst.msk [vmem:[%s6 + $0x168] sm:$0xff] %vm2813, %v2795
  %2860 = vst.msk [vmem:[%s6 + $0x170] sm:$0xff] %vm2813, %v2796
  %2861 = vst.msk [vmem:[%s6 + $0x178] sm:$0xff] %vm2813, %v2797
  %2862 = vst.msk [vmem:[%s6 + $0x180] sm:$0xff] %vm2813, %v2798
  %2863 = vst.msk [vmem:[%s6 + $0x188] sm:$0xff] %vm2813, %v2799
  %2864 = vst.msk [vmem:[%s6 + $0x190] sm:$0xff] %vm2813, %v2800
  %2865 = vst.msk [vmem:[%s6 + $0x198] sm:$0xff] %vm2813, %v2801
  %2866 = vst.msk [vmem:[%s6 + $0x1a0] sm:$0xff] %vm2813, %v2802
  %2867 = vst.msk [vmem:[%s6 + $0x1a8] sm:$0xff] %vm2813, %v2803
  %2868 = vst.msk [vmem:[%s6 + $0x1b0] sm:$0xff] %vm2813, %v2804
  %2869 = vst.msk [vmem:[%s6 + $0x1b8] sm:$0xff] %vm2813, %v2805
  %2870 = vst.msk [vmem:[%s6 + $0x1c0] sm:$0xff] %vm2813, %v2806
  %2871 = vst.msk [vmem:[%s6 + $0x1c8] sm:$0xff] %vm2813, %v2807
  %2872 = vst.msk [vmem:[%s6 + $0x1d0] sm:$0xff] %vm2813, %v2808
  %2873 = vst.msk [vmem:[%s6 + $0x1d8] sm:$0xff] %vm2813, %v2809
  %2874 = vst.msk [vmem:[%s6 + $0x1e0] sm:$0xff] %vm2813, %v2810
  %2875 = vst.msk [vmem:[%s6 + $0x1e8] sm:$0xff] %vm2813, %v2811
  %2876 = vst.msk [vmem:[%s6 + $0x1f0] sm:$0xff] %vm2813, %v2812
  // Predicated region
  $region26: #{dkmil_forward.3} parent=0 // pred_check
    _
  $region27: #{dkmil_forward.3} parent=0 // pred_check_branch
    %2878 = sbr.rel (0) target = $region29
  $region28: #{dkmil_forward.3} parent=0 // pred_region
    _
  $region29: #{dkmil_forward.3} parent=0 // pred_fallthru
    _
  // Predicated region
  $region30: #{dkmil_forward.3} parent=0 // pred_check
    _
  $region31: #{dkmil_forward.3} parent=0 // pred_check_branch
    %2880 = sbr.rel (0) target = $region33
  $region32: #{dkmil_forward.3} parent=0 // pred_region
    _
  $region33: #{dkmil_forward.3} parent=0 // pred_fallthru
    _

// kernel: dkmil_forward.4
$region0: #{dkmil_forward.4}
  #allocation0 [shape = 'u32[]', space=smem, size = 0x4, offset = 0x4, fixed_abs, tag = 'smem constant byte address 0x4 - core index']
  #allocation1 [shape = 'u32[72,128]{1,0:T(1,128)}', space=vmem, size = 0x9000, scoped, tag = 'internal scratch']
  %s0 = inlined_call_operand.vmem [shape: f32[14,500], index: 0, kind: input, shape index: {}]
  %s1 = inlined_call_operand.vmem [shape: f32[14,500], index: 1, kind: input, shape index: {}]
  %s2 = inlined_call_operand.vmem [shape: f32[14,500], index: 2, kind: input, shape index: {}]
  %s3 = inlined_call_operand.vmem [shape: f32[14,500], index: 3, kind: input, shape index: {}]
  %s4 = inlined_call_operand.vmem [shape: f32[500,50], index: 4, kind: input, shape index: {}]
  %s5 = inlined_call_operand.vmem [shape: f32[1,50], index: 5, kind: input, shape index: {}]
  %s6 = inlined_call_operand.vmem [shape: f32[50,32], index: 6, kind: input, shape index: {}]
  %s7 = inlined_call_operand.vmem [shape: f32[1,32], index: 7, kind: input, shape index: {}]
  %s8 = inlined_call_operand.vmem [shape: f32[14,32], index: 8, kind: output, shape index: {}]
  %s9 = sld [smem:[#allocation0]]
  $region42: #{dkmil_forward.4} parent=0
    _
  %s11 = ssub.s32 1, %s9
  %s12 = scalar_select 0, %s11, %s9
  // Predicated region
  $region2: #{dkmil_forward.4} parent=0 // pred_check
    _
  $region3: #{dkmil_forward.4} parent=0 // pred_check_branch
    %14 = sbr.rel (0) target = $region5
  $region4: #{dkmil_forward.4} parent=0 // pred_region
    _
  $region5: #{dkmil_forward.4} parent=0 // pred_fallthru
    _
  // Predicated region
  $region6: #{dkmil_forward.4} parent=0 // pred_check
    _
  $region7: #{dkmil_forward.4} parent=0 // pred_check_branch
    %16 = sbr.rel (0) target = $region9
  $region8: #{dkmil_forward.4} parent=0 // pred_region
    _
  $region9: #{dkmil_forward.4} parent=0 // pred_fallthru
    _
  // Predicated region
  $region10: #{dkmil_forward.4} parent=0 // pred_check
    _
  $region11: #{dkmil_forward.4} parent=0 // pred_check_branch
    %18 = sbr.rel (0) target = $region13
  $region12: #{dkmil_forward.4} parent=0 // pred_region
    _
  $region13: #{dkmil_forward.4} parent=0 // pred_fallthru
    _
  // Predicated region
  $region14: #{dkmil_forward.4} parent=0 // pred_check
    _
  $region15: #{dkmil_forward.4} parent=0 // pred_check_branch
    %20 = sbr.rel (0) target = $region17
  $region16: #{dkmil_forward.4} parent=0 // pred_region
    _
  $region17: #{dkmil_forward.4} parent=0 // pred_fallthru
    _
  // Predicated region
  $region18: #{dkmil_forward.4} parent=0 // pred_check
    _
  $region19: #{dkmil_forward.4} parent=0 // pred_check_branch
    %22 = sbr.rel (0) target = $region21
  $region20: #{dkmil_forward.4} parent=0 // pred_region
    _
  $region21: #{dkmil_forward.4} parent=0 // pred_fallthru
    _
  // Predicated region
  $region22: #{dkmil_forward.4} parent=0 // pred_check
    _
  $region23: #{dkmil_forward.4} parent=0 // pred_check_branch
    %24 = sbr.rel (0) target = $region25
  $region24: #{dkmil_forward.4} parent=0 // pred_region
    _
  $region25: #{dkmil_forward.4} parent=0 // pred_fallthru
    _
  // Predicated region
  $region26: #{dkmil_forward.4} parent=0 // pred_check
    _
  $region27: #{dkmil_forward.4} parent=0 // pred_check_branch
    %26 = sbr.rel (0) target = $region29
  $region28: #{dkmil_forward.4} parent=0 // pred_region
    _
  $region29: #{dkmil_forward.4} parent=0 // pred_fallthru
    _
  // Predicated region
  $region30: #{dkmil_forward.4} parent=0 // pred_check
    _
  $region31: #{dkmil_forward.4} parent=0 // pred_check_branch
    %28 = sbr.rel (0) target = $region33
  $region32: #{dkmil_forward.4} parent=0 // pred_region
    _
  $region33: #{dkmil_forward.4} parent=0 // pred_fallthru
    _
  %v29 = vld [vmem:[%s4] sm:$0xff]
  %v30 = vld [vmem:[%s4 + $0x8] sm:$0xff]
  %v31 = vld [vmem:[%s4 + $0x10] sm:$0xff]
  %v32 = vld [vmem:[%s4 + $0x18] sm:$0xff]
  %v33 = vld [vmem:[%s4 + $0x20] sm:$0xff]
  %v34 = vld [vmem:[%s4 + $0x28] sm:$0xff]
  %v35 = vld [vmem:[%s4 + $0x30] sm:$0xff]
  %v36 = vld [vmem:[%s4 + $0x38] sm:$0xff]
  %v37 = vld [vmem:[%s4 + $0x40] sm:$0xff]
  %v38 = vld [vmem:[%s4 + $0x48] sm:$0xff]
  %v39 = vld [vmem:[%s4 + $0x50] sm:$0xff]
  %v40 = vld [vmem:[%s4 + $0x58] sm:$0xff]
  %v41 = vld [vmem:[%s4 + $0x60] sm:$0xff]
  %v42 = vld [vmem:[%s4 + $0x68] sm:$0xff]
  %v43 = vld [vmem:[%s4 + $0x70] sm:$0xff]
  %v44 = vld [vmem:[%s4 + $0x78] sm:$0xff]
  %v45 = vld [vmem:[%s4 + $0x80] sm:$0xff]
  %v46 = vld [vmem:[%s4 + $0x88] sm:$0xff]
  %v47 = vld [vmem:[%s4 + $0x90] sm:$0xff]
  %v48 = vld [vmem:[%s4 + $0x98] sm:$0xff]
  %v49 = vld [vmem:[%s4 + $0xa0] sm:$0xff]
  %v50 = vld [vmem:[%s4 + $0xa8] sm:$0xff]
  %v51 = vld [vmem:[%s4 + $0xb0] sm:$0xff]
  %v52 = vld [vmem:[%s4 + $0xb8] sm:$0xff]
  %v53 = vld [vmem:[%s4 + $0xc0] sm:$0xff]
  %v54 = vld [vmem:[%s4 + $0xc8] sm:$0xff]
  %v55 = vld [vmem:[%s4 + $0xd0] sm:$0xff]
  %v56 = vld [vmem:[%s4 + $0xd8] sm:$0xff]
  %v57 = vld [vmem:[%s4 + $0xe0] sm:$0xff]
  %v58 = vld [vmem:[%s4 + $0xe8] sm:$0xff]
  %v59 = vld [vmem:[%s4 + $0xf0] sm:$0xff]
  %v60 = vld [vmem:[%s4 + $0xf8] sm:$0xff]
  %v61 = vld [vmem:[%s4 + $0x100] sm:$0xff]
  %v62 = vld [vmem:[%s4 + $0x108] sm:$0xff]
  %v63 = vld [vmem:[%s4 + $0x110] sm:$0xff]
  %v64 = vld [vmem:[%s4 + $0x118] sm:$0xff]
  %v65 = vld [vmem:[%s4 + $0x120] sm:$0xff]
  %v66 = vld [vmem:[%s4 + $0x128] sm:$0xff]
  %v67 = vld [vmem:[%s4 + $0x130] sm:$0xff]
  %v68 = vld [vmem:[%s4 + $0x138] sm:$0xff]
  %v69 = vld [vmem:[%s4 + $0x140] sm:$0xff]
  %v70 = vld [vmem:[%s4 + $0x148] sm:$0xff]
  %v71 = vld [vmem:[%s4 + $0x150] sm:$0xff]
  %v72 = vld [vmem:[%s4 + $0x158] sm:$0xff]
  %v73 = vld [vmem:[%s4 + $0x160] sm:$0xff]
  %v74 = vld [vmem:[%s4 + $0x168] sm:$0xff]
  %v75 = vld [vmem:[%s4 + $0x170] sm:$0xff]
  %v76 = vld [vmem:[%s4 + $0x178] sm:$0xff]
  %v77 = vld [vmem:[%s4 + $0x180] sm:$0xff]
  %v78 = vld [vmem:[%s4 + $0x188] sm:$0xff]
  %v79 = vld [vmem:[%s4 + $0x190] sm:$0xff]
  %v80 = vld [vmem:[%s4 + $0x198] sm:$0xff]
  %v81 = vld [vmem:[%s4 + $0x1a0] sm:$0xff]
  %v82 = vld [vmem:[%s4 + $0x1a8] sm:$0xff]
  %v83 = vld [vmem:[%s4 + $0x1b0] sm:$0xff]
  %v84 = vld [vmem:[%s4 + $0x1b8] sm:$0xff]
  %v85 = vld [vmem:[%s4 + $0x1c0] sm:$0xff]
  %v86 = vld [vmem:[%s4 + $0x1c8] sm:$0xff]
  %v87 = vld [vmem:[%s4 + $0x1d0] sm:$0xff]
  %v88 = vld [vmem:[%s4 + $0x1d8] sm:$0xff]
  %v89 = vld [vmem:[%s4 + $0x1e0] sm:$0xff]
  %v90 = vld [vmem:[%s4 + $0x1e8] sm:$0xff]
  %v91 = vld [vmem:[%s4 + $0x1f0] sm:$0xf]
  %v92 = vld [vmem:[%s5] sm:$0x1]
  %v93 = vld [vmem:[%s0] sm:$0xff]
  %v94 = vld [vmem:[%s0 + $0x8] sm:$0xff]
  %v95 = vld [vmem:[%s0 + $0x10] sm:$0xff]
  %v96 = vld [vmem:[%s0 + $0x18] sm:$0xff]
  %v97 = vld [vmem:[%s0 + $0x20] sm:$0x3f]
  %v98 = vld [vmem:[%s0 + $0x28] sm:$0x3f]
  %v99 = vld [vmem:[%s0 + $0x30] sm:$0x3f]
  %v100 = vld [vmem:[%s0 + $0x38] sm:$0x3f]
  %v102 = vperm.slane %v92, 0
  %vm104 = vcmask 949248
  %v106 = vsel %vm104, %v96, 0
  %v109 = vsel %vm104, %v100, 0
  %vm111 = vcmask 1043456
  %v113 = vsel %vm111, %v91, 0
  %115 = vmatpush.msra.mxu0 %v44
  %116 = vmatpush.msra.mxu0 %v43
  %117 = vmatpush.msra.mxu0 %v42
  %118 = vmatpush.msra.mxu0 %v41
  %119 = vmatpush.msra.mxu0 %v40
  %120 = vmatpush.msra.mxu0 %v39
  %121 = vmatpush.msra.mxu0 %v38
  %122 = vmatpush.msra.mxu0 %v37
  %123 = vmatpush.msra.mxu0 %v36
  %124 = vmatpush.msra.mxu0 %v35
  %125 = vmatpush.msra.mxu0 %v34
  %126 = vmatpush.msra.mxu0 %v33
  %127 = vmatpush.msra.mxu0 %v32
  %128 = vmatpush.msra.mxu0 %v31
  %129 = vmatpush.msra.mxu0 %v30
  %130 = vmatpush.msra.mxu0 %v29
  %131 = vmatmul.f32.gmra.mxu0 %v93
  %v132 = vpop.f32.mrf.mxu0
  %v133 = vadd.f32 %v102, %v132
  %134 = vmatmul.f32.gmra.mxu0 %v97
  %v135 = vpop.f32.mrf.mxu0
  %v136 = vadd.f32 %v102, %v135
  %137 = vdwg.mxu0
  %138 = vmatpush.msra.mxu0 %v60
  %139 = vmatpush.msra.mxu0 %v59
  %140 = vmatpush.msra.mxu0 %v58
  %141 = vmatpush.msra.mxu0 %v57
  %142 = vmatpush.msra.mxu0 %v56
  %143 = vmatpush.msra.mxu0 %v55
  %144 = vmatpush.msra.mxu0 %v54
  %145 = vmatpush.msra.mxu0 %v53
  %146 = vmatpush.msra.mxu0 %v52
  %147 = vmatpush.msra.mxu0 %v51
  %148 = vmatpush.msra.mxu0 %v50
  %149 = vmatpush.msra.mxu0 %v49
  %150 = vmatpush.msra.mxu0 %v48
  %151 = vmatpush.msra.mxu0 %v47
  %152 = vmatpush.msra.mxu0 %v46
  %153 = vmatpush.msra.mxu0 %v45
  %154 = vmatmul.f32.gmra.mxu0 %v94
  %v155 = vpop.f32.mrf.mxu0
  %v156 = vadd.f32 %v133, %v155
  %157 = vmatmul.f32.gmra.mxu0 %v98
  %v158 = vpop.f32.mrf.mxu0
  %v159 = vadd.f32 %v136, %v158
  %160 = vdwg.mxu0
  %161 = vmatpush.msra.mxu0 %v76
  %162 = vmatpush.msra.mxu0 %v75
  %163 = vmatpush.msra.mxu0 %v74
  %164 = vmatpush.msra.mxu0 %v73
  %165 = vmatpush.msra.mxu0 %v72
  %166 = vmatpush.msra.mxu0 %v71
  %167 = vmatpush.msra.mxu0 %v70
  %168 = vmatpush.msra.mxu0 %v69
  %169 = vmatpush.msra.mxu0 %v68
  %170 = vmatpush.msra.mxu0 %v67
  %171 = vmatpush.msra.mxu0 %v66
  %172 = vmatpush.msra.mxu0 %v65
  %173 = vmatpush.msra.mxu0 %v64
  %174 = vmatpush.msra.mxu0 %v63
  %175 = vmatpush.msra.mxu0 %v62
  %176 = vmatpush.msra.mxu0 %v61
  %177 = vmatmul.f32.gmra.mxu0 %v95
  %v178 = vpop.f32.mrf.mxu0
  %v179 = vadd.f32 %v156, %v178
  %180 = vmatmul.f32.gmra.mxu0 %v99
  %v181 = vpop.f32.mrf.mxu0
  %v182 = vadd.f32 %v159, %v181
  %183 = vdwg.mxu0
  %184 = vmatpush.msra.mxu0 0.0
  %185 = vmatpush.msra.mxu0 %v113
  %186 = vmatpush.msra.mxu0 %v90
  %187 = vmatpush.msra.mxu0 %v89
  %188 = vmatpush.msra.mxu0 %v88
  %189 = vmatpush.msra.mxu0 %v87
  %190 = vmatpush.msra.mxu0 %v86
  %191 = vmatpush.msra.mxu0 %v85
  %192 = vmatpush.msra.mxu0 %v84
  %193 = vmatpush.msra.mxu0 %v83
  %194 = vmatpush.msra.mxu0 %v82
  %195 = vmatpush.msra.mxu0 %v81
  %196 = vmatpush.msra.mxu0 %v80
  %197 = vmatpush.msra.mxu0 %v79
  %198 = vmatpush.msra.mxu0 %v78
  %199 = vmatpush.msra.mxu0 %v77
  %200 = vmatmul.f32.gmra.mxu0 %v106
  %v201 = vpop.f32.mrf.mxu0
  %v202 = vadd.f32 %v179, %v201
  %203 = vmatmul.f32.gmra.mxu0 %v109
  %v204 = vpop.f32.mrf.mxu0
  %v205 = vadd.f32 %v182, %v204
  %206 = vdwg.mxu0
  %v207 = vmax.f32 %v202, 0.0
  %v208 = vmax.f32 %v205, 0.0
  %v209 = vld [vmem:[%s1] sm:$0xff]
  %v210 = vld [vmem:[%s1 + $0x8] sm:$0xff]
  %v211 = vld [vmem:[%s1 + $0x10] sm:$0xff]
  %v212 = vld [vmem:[%s1 + $0x18] sm:$0xff]
  %v213 = vld [vmem:[%s1 + $0x20] sm:$0x3f]
  %v214 = vld [vmem:[%s1 + $0x28] sm:$0x3f]
  %v215 = vld [vmem:[%s1 + $0x30] sm:$0x3f]
  %v216 = vld [vmem:[%s1 + $0x38] sm:$0x3f]
  %v218 = vsel %vm104, %v212, 0
  %v221 = vsel %vm104, %v216, 0
  %223 = vmatpush.msra.mxu0 %v44
  %224 = vmatpush.msra.mxu0 %v43
  %225 = vmatpush.msra.mxu0 %v42
  %226 = vmatpush.msra.mxu0 %v41
  %227 = vmatpush.msra.mxu0 %v40
  %228 = vmatpush.msra.mxu0 %v39
  %229 = vmatpush.msra.mxu0 %v38
  %230 = vmatpush.msra.mxu0 %v37
  %231 = vmatpush.msra.mxu0 %v36
  %232 = vmatpush.msra.mxu0 %v35
  %233 = vmatpush.msra.mxu0 %v34
  %234 = vmatpush.msra.mxu0 %v33
  %235 = vmatpush.msra.mxu0 %v32
  %236 = vmatpush.msra.mxu0 %v31
  %237 = vmatpush.msra.mxu0 %v30
  %238 = vmatpush.msra.mxu0 %v29
  %239 = vmatmul.f32.gmra.mxu0 %v209
  %v240 = vpop.f32.mrf.mxu0
  %v241 = vadd.f32 %v102, %v240
  %242 = vmatmul.f32.gmra.mxu0 %v213
  %v243 = vpop.f32.mrf.mxu0
  %v244 = vadd.f32 %v102, %v243
  %245 = vdwg.mxu0
  %246 = vmatpush.msra.mxu0 %v60
  %247 = vmatpush.msra.mxu0 %v59
  %248 = vmatpush.msra.mxu0 %v58
  %249 = vmatpush.msra.mxu0 %v57
  %250 = vmatpush.msra.mxu0 %v56
  %251 = vmatpush.msra.mxu0 %v55
  %252 = vmatpush.msra.mxu0 %v54
  %253 = vmatpush.msra.mxu0 %v53
  %254 = vmatpush.msra.mxu0 %v52
  %255 = vmatpush.msra.mxu0 %v51
  %256 = vmatpush.msra.mxu0 %v50
  %257 = vmatpush.msra.mxu0 %v49
  %258 = vmatpush.msra.mxu0 %v48
  %259 = vmatpush.msra.mxu0 %v47
  %260 = vmatpush.msra.mxu0 %v46
  %261 = vmatpush.msra.mxu0 %v45
  %262 = vmatmul.f32.gmra.mxu0 %v210
  %v263 = vpop.f32.mrf.mxu0
  %v264 = vadd.f32 %v241, %v263
  %265 = vmatmul.f32.gmra.mxu0 %v214
  %v266 = vpop.f32.mrf.mxu0
  %v267 = vadd.f32 %v244, %v266
  %268 = vdwg.mxu0
  %269 = vmatpush.msra.mxu0 %v76
  %270 = vmatpush.msra.mxu0 %v75
  %271 = vmatpush.msra.mxu0 %v74
  %272 = vmatpush.msra.mxu0 %v73
  %273 = vmatpush.msra.mxu0 %v72
  %274 = vmatpush.msra.mxu0 %v71
  %275 = vmatpush.msra.mxu0 %v70
  %276 = vmatpush.msra.mxu0 %v69
  %277 = vmatpush.msra.mxu0 %v68
  %278 = vmatpush.msra.mxu0 %v67
  %279 = vmatpush.msra.mxu0 %v66
  %280 = vmatpush.msra.mxu0 %v65
  %281 = vmatpush.msra.mxu0 %v64
  %282 = vmatpush.msra.mxu0 %v63
  %283 = vmatpush.msra.mxu0 %v62
  %284 = vmatpush.msra.mxu0 %v61
  %285 = vmatmul.f32.gmra.mxu0 %v211
  %v286 = vpop.f32.mrf.mxu0
  %v287 = vadd.f32 %v264, %v286
  %288 = vmatmul.f32.gmra.mxu0 %v215
  %v289 = vpop.f32.mrf.mxu0
  %v290 = vadd.f32 %v267, %v289
  %291 = vdwg.mxu0
  %292 = vmatpush.msra.mxu0 0.0
  %293 = vmatpush.msra.mxu0 %v113
  %294 = vmatpush.msra.mxu0 %v90
  %295 = vmatpush.msra.mxu0 %v89
  %296 = vmatpush.msra.mxu0 %v88
  %297 = vmatpush.msra.mxu0 %v87
  %298 = vmatpush.msra.mxu0 %v86
  %299 = vmatpush.msra.mxu0 %v85
  %300 = vmatpush.msra.mxu0 %v84
  %301 = vmatpush.msra.mxu0 %v83
  %302 = vmatpush.msra.mxu0 %v82
  %303 = vmatpush.msra.mxu0 %v81
  %304 = vmatpush.msra.mxu0 %v80
  %305 = vmatpush.msra.mxu0 %v79
  %306 = vmatpush.msra.mxu0 %v78
  %307 = vmatpush.msra.mxu0 %v77
  %308 = vmatmul.f32.gmra.mxu0 %v218
  %v309 = vpop.f32.mrf.mxu0
  %v310 = vadd.f32 %v287, %v309
  %311 = vmatmul.f32.gmra.mxu0 %v221
  %v312 = vpop.f32.mrf.mxu0
  %v313 = vadd.f32 %v290, %v312
  %314 = vdwg.mxu0
  %v315 = vmax.f32 %v310, 0.0
  %v316 = vmax.f32 %v313, 0.0
  %v317 = vld [vmem:[%s2] sm:$0xff]
  %v318 = vld [vmem:[%s2 + $0x8] sm:$0xff]
  %v319 = vld [vmem:[%s2 + $0x10] sm:$0xff]
  %v320 = vld [vmem:[%s2 + $0x18] sm:$0xff]
  %v321 = vld [vmem:[%s2 + $0x20] sm:$0x3f]
  %v322 = vld [vmem:[%s2 + $0x28] sm:$0x3f]
  %v323 = vld [vmem:[%s2 + $0x30] sm:$0x3f]
  %v324 = vld [vmem:[%s2 + $0x38] sm:$0x3f]
  %v326 = vsel %vm104, %v320, 0
  %v329 = vsel %vm104, %v324, 0
  %331 = vmatpush.msra.mxu0 %v44
  %332 = vmatpush.msra.mxu0 %v43
  %333 = vmatpush.msra.mxu0 %v42
  %334 = vmatpush.msra.mxu0 %v41
  %335 = vmatpush.msra.mxu0 %v40
  %336 = vmatpush.msra.mxu0 %v39
  %337 = vmatpush.msra.mxu0 %v38
  %338 = vmatpush.msra.mxu0 %v37
  %339 = vmatpush.msra.mxu0 %v36
  %340 = vmatpush.msra.mxu0 %v35
  %341 = vmatpush.msra.mxu0 %v34
  %342 = vmatpush.msra.mxu0 %v33
  %343 = vmatpush.msra.mxu0 %v32
  %344 = vmatpush.msra.mxu0 %v31
  %345 = vmatpush.msra.mxu0 %v30
  %346 = vmatpush.msra.mxu0 %v29
  %347 = vmatmul.f32.gmra.mxu0 %v317
  %v348 = vpop.f32.mrf.mxu0
  %v349 = vadd.f32 %v102, %v348
  %350 = vmatmul.f32.gmra.mxu0 %v321
  %v351 = vpop.f32.mrf.mxu0
  %v352 = vadd.f32 %v102, %v351
  %353 = vdwg.mxu0
  %354 = vmatpush.msra.mxu0 %v60
  %355 = vmatpush.msra.mxu0 %v59
  %356 = vmatpush.msra.mxu0 %v58
  %357 = vmatpush.msra.mxu0 %v57
  %358 = vmatpush.msra.mxu0 %v56
  %359 = vmatpush.msra.mxu0 %v55
  %360 = vmatpush.msra.mxu0 %v54
  %361 = vmatpush.msra.mxu0 %v53
  %362 = vmatpush.msra.mxu0 %v52
  %363 = vmatpush.msra.mxu0 %v51
  %364 = vmatpush.msra.mxu0 %v50
  %365 = vmatpush.msra.mxu0 %v49
  %366 = vmatpush.msra.mxu0 %v48
  %367 = vmatpush.msra.mxu0 %v47
  %368 = vmatpush.msra.mxu0 %v46
  %369 = vmatpush.msra.mxu0 %v45
  %370 = vmatmul.f32.gmra.mxu0 %v318
  %v371 = vpop.f32.mrf.mxu0
  %v372 = vadd.f32 %v349, %v371
  %373 = vmatmul.f32.gmra.mxu0 %v322
  %v374 = vpop.f32.mrf.mxu0
  %v375 = vadd.f32 %v352, %v374
  %376 = vdwg.mxu0
  %377 = vmatpush.msra.mxu0 %v76
  %378 = vmatpush.msra.mxu0 %v75
  %379 = vmatpush.msra.mxu0 %v74
  %380 = vmatpush.msra.mxu0 %v73
  %381 = vmatpush.msra.mxu0 %v72
  %382 = vmatpush.msra.mxu0 %v71
  %383 = vmatpush.msra.mxu0 %v70
  %384 = vmatpush.msra.mxu0 %v69
  %385 = vmatpush.msra.mxu0 %v68
  %386 = vmatpush.msra.mxu0 %v67
  %387 = vmatpush.msra.mxu0 %v66
  %388 = vmatpush.msra.mxu0 %v65
  %389 = vmatpush.msra.mxu0 %v64
  %390 = vmatpush.msra.mxu0 %v63
  %391 = vmatpush.msra.mxu0 %v62
  %392 = vmatpush.msra.mxu0 %v61
  %393 = vmatmul.f32.gmra.mxu0 %v319
  %v394 = vpop.f32.mrf.mxu0
  %v395 = vadd.f32 %v372, %v394
  %396 = vmatmul.f32.gmra.mxu0 %v323
  %v397 = vpop.f32.mrf.mxu0
  %v398 = vadd.f32 %v375, %v397
  %399 = vdwg.mxu0
  %400 = vmatpush.msra.mxu0 0.0
  %401 = vmatpush.msra.mxu0 %v113
  %402 = vmatpush.msra.mxu0 %v90
  %403 = vmatpush.msra.mxu0 %v89
  %404 = vmatpush.msra.mxu0 %v88
  %405 = vmatpush.msra.mxu0 %v87
  %406 = vmatpush.msra.mxu0 %v86
  %407 = vmatpush.msra.mxu0 %v85
  %408 = vmatpush.msra.mxu0 %v84
  %409 = vmatpush.msra.mxu0 %v83
  %410 = vmatpush.msra.mxu0 %v82
  %411 = vmatpush.msra.mxu0 %v81
  %412 = vmatpush.msra.mxu0 %v80
  %413 = vmatpush.msra.mxu0 %v79
  %414 = vmatpush.msra.mxu0 %v78
  %415 = vmatpush.msra.mxu0 %v77
  %416 = vmatmul.f32.gmra.mxu0 %v326
  %v417 = vpop.f32.mrf.mxu0
  %v418 = vadd.f32 %v395, %v417
  %419 = vmatmul.f32.gmra.mxu0 %v329
  %v420 = vpop.f32.mrf.mxu0
  %v421 = vadd.f32 %v398, %v420
  %422 = vdwg.mxu0
  %v423 = vmax.f32 %v418, 0.0
  %v424 = vmax.f32 %v421, 0.0
  %v425 = vld [vmem:[%s3] sm:$0xff]
  %v426 = vld [vmem:[%s3 + $0x8] sm:$0xff]
  %v427 = vld [vmem:[%s3 + $0x10] sm:$0xff]
  %v428 = vld [vmem:[%s3 + $0x18] sm:$0xff]
  %v429 = vld [vmem:[%s3 + $0x20] sm:$0x3f]
  %v430 = vld [vmem:[%s3 + $0x28] sm:$0x3f]
  %v431 = vld [vmem:[%s3 + $0x30] sm:$0x3f]
  %v432 = vld [vmem:[%s3 + $0x38] sm:$0x3f]
  %v434 = vsel %vm104, %v428, 0
  %v437 = vsel %vm104, %v432, 0
  %439 = vmatpush.msra.mxu0 %v44
  %440 = vmatpush.msra.mxu0 %v43
  %441 = vmatpush.msra.mxu0 %v42
  %442 = vmatpush.msra.mxu0 %v41
  %443 = vmatpush.msra.mxu0 %v40
  %444 = vmatpush.msra.mxu0 %v39
  %445 = vmatpush.msra.mxu0 %v38
  %446 = vmatpush.msra.mxu0 %v37
  %447 = vmatpush.msra.mxu0 %v36
  %448 = vmatpush.msra.mxu0 %v35
  %449 = vmatpush.msra.mxu0 %v34
  %450 = vmatpush.msra.mxu0 %v33
  %451 = vmatpush.msra.mxu0 %v32
  %452 = vmatpush.msra.mxu0 %v31
  %453 = vmatpush.msra.mxu0 %v30
  %454 = vmatpush.msra.mxu0 %v29
  %455 = vmatmul.f32.gmra.mxu0 %v425
  %v456 = vpop.f32.mrf.mxu0
  %v457 = vadd.f32 %v102, %v456
  %458 = vmatmul.f32.gmra.mxu0 %v429
  %v459 = vpop.f32.mrf.mxu0
  %v460 = vadd.f32 %v102, %v459
  %461 = vdwg.mxu0
  %462 = vmatpush.msra.mxu0 %v60
  %463 = vmatpush.msra.mxu0 %v59
  %464 = vmatpush.msra.mxu0 %v58
  %465 = vmatpush.msra.mxu0 %v57
  %466 = vmatpush.msra.mxu0 %v56
  %467 = vmatpush.msra.mxu0 %v55
  %468 = vmatpush.msra.mxu0 %v54
  %469 = vmatpush.msra.mxu0 %v53
  %470 = vmatpush.msra.mxu0 %v52
  %471 = vmatpush.msra.mxu0 %v51
  %472 = vmatpush.msra.mxu0 %v50
  %473 = vmatpush.msra.mxu0 %v49
  %474 = vmatpush.msra.mxu0 %v48
  %475 = vmatpush.msra.mxu0 %v47
  %476 = vmatpush.msra.mxu0 %v46
  %477 = vmatpush.msra.mxu0 %v45
  %478 = vmatmul.f32.gmra.mxu0 %v426
  %v479 = vpop.f32.mrf.mxu0
  %v480 = vadd.f32 %v457, %v479
  %481 = vmatmul.f32.gmra.mxu0 %v430
  %v482 = vpop.f32.mrf.mxu0
  %v483 = vadd.f32 %v460, %v482
  %484 = vdwg.mxu0
  %485 = vmatpush.msra.mxu0 %v76
  %486 = vmatpush.msra.mxu0 %v75
  %487 = vmatpush.msra.mxu0 %v74
  %488 = vmatpush.msra.mxu0 %v73
  %489 = vmatpush.msra.mxu0 %v72
  %490 = vmatpush.msra.mxu0 %v71
  %491 = vmatpush.msra.mxu0 %v70
  %492 = vmatpush.msra.mxu0 %v69
  %493 = vmatpush.msra.mxu0 %v68
  %494 = vmatpush.msra.mxu0 %v67
  %495 = vmatpush.msra.mxu0 %v66
  %496 = vmatpush.msra.mxu0 %v65
  %497 = vmatpush.msra.mxu0 %v64
  %498 = vmatpush.msra.mxu0 %v63
  %499 = vmatpush.msra.mxu0 %v62
  %500 = vmatpush.msra.mxu0 %v61
  %501 = vmatmul.f32.gmra.mxu0 %v427
  %v502 = vpop.f32.mrf.mxu0
  %v503 = vadd.f32 %v480, %v502
  %504 = vmatmul.f32.gmra.mxu0 %v431
  %v505 = vpop.f32.mrf.mxu0
  %v506 = vadd.f32 %v483, %v505
  %507 = vdwg.mxu0
  %508 = vmatpush.msra.mxu0 0.0
  %509 = vmatpush.msra.mxu0 %v113
  %510 = vmatpush.msra.mxu0 %v90
  %511 = vmatpush.msra.mxu0 %v89
  %512 = vmatpush.msra.mxu0 %v88
  %513 = vmatpush.msra.mxu0 %v87
  %514 = vmatpush.msra.mxu0 %v86
  %515 = vmatpush.msra.mxu0 %v85
  %516 = vmatpush.msra.mxu0 %v84
  %517 = vmatpush.msra.mxu0 %v83
  %518 = vmatpush.msra.mxu0 %v82
  %519 = vmatpush.msra.mxu0 %v81
  %520 = vmatpush.msra.mxu0 %v80
  %521 = vmatpush.msra.mxu0 %v79
  %522 = vmatpush.msra.mxu0 %v78
  %523 = vmatpush.msra.mxu0 %v77
  %524 = vmatmul.f32.gmra.mxu0 %v434
  %v525 = vpop.f32.mrf.mxu0
  %v526 = vadd.f32 %v503, %v525
  %527 = vmatmul.f32.gmra.mxu0 %v437
  %v528 = vpop.f32.mrf.mxu0
  %v529 = vadd.f32 %v506, %v528
  %530 = vdwg.mxu0
  %v531 = vmax.f32 %v526, 0.0
  %v532 = vmax.f32 %v529, 0.0
  %v533 = vmax.f32 %v207, %v315
  %v534 = vmax.f32 %v208, %v316
  %v535 = vmax.f32 %v423, %v531
  %v536 = vmax.f32 %v424, %v532
  %v537 = vmax.f32 %v533, %v535
  %v538 = vmax.f32 %v534, %v536
  %v539 = vld [vmem:[%s6] sm:$0xff]
  %v540 = vld [vmem:[%s6 + $0x8] sm:$0xff]
  %v541 = vld [vmem:[%s6 + $0x10] sm:$0xff]
  %v542 = vld [vmem:[%s6 + $0x18] sm:$0xff]
  %v543 = vld [vmem:[%s6 + $0x20] sm:$0xff]
  %v544 = vld [vmem:[%s6 + $0x28] sm:$0xff]
  %v545 = vld [vmem:[%s6 + $0x30] sm:$0x3]
  %v546 = vld [vmem:[%s7] sm:$0x1]
  %v548 = vperm.slane %v546, 0
  %vm550 = vcmask 408576
  %v552 = vsel %vm550, %v537, 0
  %v555 = vsel %vm550, %v538, 0
  %vm557 = vcmask 1041408
  %v559 = vsel %vm557, %v545, 0
  %561 = vmatpush.msra.mxu0 0.0
  %562 = vmatpush.msra.mxu0 0.0
  %563 = vmatpush.msra.mxu0 0.0
  %564 = vmatpush.msra.mxu0 0.0
  %565 = vmatpush.msra.mxu0 0.0
  %566 = vmatpush.msra.mxu0 0.0
  %567 = vmatpush.msra.mxu0 0.0
  %568 = vmatpush.msra.mxu0 0.0
  %569 = vmatpush.msra.mxu0 0.0
  %570 = vmatpush.msra.mxu0 %v559
  %571 = vmatpush.msra.mxu0 %v544
  %572 = vmatpush.msra.mxu0 %v543
  %573 = vmatpush.msra.mxu0 %v542
  %574 = vmatpush.msra.mxu0 %v541
  %575 = vmatpush.msra.mxu0 %v540
  %576 = vmatpush.msra.mxu0 %v539
  %577 = vmatmul.f32.gmra.mxu0 %v552
  %v578 = vpop.f32.mrf.mxu0
  %v579 = vadd.f32 %v548, %v578
  %580 = vmatmul.f32.gmra.mxu0 %v555
  %v581 = vpop.f32.mrf.mxu0
  %v582 = vadd.f32 %v548, %v581
  %583 = vdwg.mxu0
  %vm584 = vcmp.ge.f32.partialorder %v579, 0.0
  %vm585 = vcmp.ge.f32.partialorder %v582, 0.0
  %v586 = vmul.f32 %v579, 0.01
  %v587 = vmul.f32 %v582, 0.01
  %v588 = vsel %vm584, %v579, %v586
  %v589 = vsel %vm585, %v582, %v587
  %vm590 = vcmask 261120
  %591 = vst.msk [vmem:[%s8] sm:$0xff] %vm590, %v588
  %vm592 = vcmask 259072
  %593 = vst.msk [vmem:[%s8 + $0x8] sm:$0x3f] %vm592, %v589
  // Predicated region
  $region34: #{dkmil_forward.4} parent=0 // pred_check
    _
  $region35: #{dkmil_forward.4} parent=0 // pred_check_branch
    %595 = sbr.rel (0) target = $region37
  $region36: #{dkmil_forward.4} parent=0 // pred_region
    _
  $region37: #{dkmil_forward.4} parent=0 // pred_fallthru
    _
  // Predicated region
  $region38: #{dkmil_forward.4} parent=0 // pred_check
    _
  $region39: #{dkmil_forward.4} parent=0 // pred_check_branch
    %597 = sbr.rel (0) target = $region41
  $region40: #{dkmil_forward.4} parent=0 // pred_region
    _
  $region41: #{dkmil_forward.4} parent=0 // pred_fallthru
    _

// kernel: dkmil_forward.5
$region0: #{dkmil_forward.5}
  #allocation0 [shape = 'u32[]', space=smem, size = 0x4, offset = 0x4, fixed_abs, tag = 'smem constant byte address 0x4 - core index']
  #allocation1 [shape = 'u32[72,128]{1,0:T(1,128)}', space=vmem, size = 0x9000, scoped, tag = 'internal scratch']
  #allocation2 [shape = 'f32[1,1]{1,0:T(1,128)S(1)}', space=vmem, size = 0x200, scoped, tag = 'scoped memory for dkmil_forward.5']
  #allocation3 [shape = 'f32[1,1]{1,0:T(1,128)S(1)}', space=vmem, size = 0x200, scoped, tag = 'scoped memory for dkmil_forward.5']
  #allocation4 [shape = 'f32[1,1]{1,0:T(1,128)S(1)}', space=vmem, size = 0x200, scoped, tag = 'scoped memory for dkmil_forward.5']
  #allocation5 [shape = 'f32[1,1]{1,0:T(1,128)S(1)}', space=vmem, size = 0x200, scoped, tag = 'scoped memory for dkmil_forward.5']
  %s0 = inlined_call_operand.smem [shape: u32[58], index: -1, kind: input, shape index: {}]
  %s1 = sld [smem:[%s0]]
  %s2 = scalar_lea.smem %s0, 1
  %s3 = sld [smem:[%s2]]
  %s4 = scalar_lea.smem %s0, 2
  %s5 = sld [smem:[%s4]]
  %s6 = scalar_lea.smem %s0, 3
  %s7 = sld [smem:[%s6]]
  %s8 = scalar_lea.smem %s0, 4
  %s9 = sld [smem:[%s8]]
  %s10 = scalar_lea.smem %s0, 5
  %s11 = sld [smem:[%s10]]
  %s12 = scalar_lea.smem %s0, 6
  %s13 = sld [smem:[%s12]]
  %s14 = scalar_lea.smem %s0, 7
  %s15 = sld [smem:[%s14]]
  %s16 = scalar_lea.smem %s0, 8
  %s17 = sld [smem:[%s16]]
  %s18 = scalar_lea.smem %s0, 9
  %s19 = sld [smem:[%s18]]
  %s20 = scalar_lea.smem %s0, 10
  %s21 = sld [smem:[%s20]]
  %s22 = scalar_lea.smem %s0, 11
  %s23 = sld [smem:[%s22]]
  %s24 = scalar_lea.smem %s0, 12
  %s25 = sld [smem:[%s24]]
  %s26 = scalar_lea.smem %s0, 13
  %s27 = sld [smem:[%s26]]
  %s28 = scalar_lea.smem %s0, 14
  %s29 = sld [smem:[%s28]]
  %s30 = scalar_lea.smem %s0, 15
  %s31 = sld [smem:[%s30]]
  %s32 = scalar_lea.smem %s0, 16
  %s33 = sld [smem:[%s32]]
  %s34 = scalar_lea.smem %s0, 17
  %s35 = sld [smem:[%s34]]
  %s36 = scalar_lea.smem %s0, 18
  %s37 = sld [smem:[%s36]]
  %s38 = scalar_lea.smem %s0, 19
  %s39 = sld [smem:[%s38]]
  %s40 = scalar_lea.smem %s0, 20
  %s41 = sld [smem:[%s40]]
  %s42 = scalar_lea.smem %s0, 21
  %s43 = sld [smem:[%s42]]
  %s44 = scalar_lea.smem %s0, 22
  %s45 = sld [smem:[%s44]]
  %s46 = scalar_lea.smem %s0, 23
  %s47 = sld [smem:[%s46]]
  %s48 = scalar_lea.smem %s0, 24
  %s49 = sld [smem:[%s48]]
  %s50 = scalar_lea.smem %s0, 25
  %s51 = sld [smem:[%s50]]
  %s52 = scalar_lea.smem %s0, 26
  %s53 = sld [smem:[%s52]]
  %s54 = scalar_lea.smem %s0, 27
  %s55 = sld [smem:[%s54]]
  %s56 = scalar_lea.smem %s0, 28
  %s57 = sld [smem:[%s56]]
  %s58 = scalar_lea.smem %s0, 29
  %s59 = sld [smem:[%s58]]
  %s60 = scalar_lea.smem %s0, 30
  %s61 = sld [smem:[%s60]]
  %s62 = scalar_lea.smem %s0, 31
  %s63 = sld [smem:[%s62]]
  %s64 = scalar_lea.smem %s0, 32
  %s65 = sld [smem:[%s64]]
  %s66 = scalar_lea.smem %s0, 33
  %s67 = sld [smem:[%s66]]
  %s68 = scalar_lea.smem %s0, 34
  %s69 = sld [smem:[%s68]]
  %s70 = scalar_lea.smem %s0, 35
  %s71 = sld [smem:[%s70]]
  %s72 = scalar_lea.smem %s0, 36
  %s73 = sld [smem:[%s72]]
  %s74 = scalar_lea.smem %s0, 37
  %s75 = sld [smem:[%s74]]
  %s76 = scalar_lea.smem %s0, 38
  %s77 = sld [smem:[%s76]]
  %s78 = scalar_lea.smem %s0, 39
  %s79 = sld [smem:[%s78]]
  %s80 = scalar_lea.smem %s0, 40
  %s81 = sld [smem:[%s80]]
  %s82 = scalar_lea.smem %s0, 41
  %s83 = sld [smem:[%s82]]
  %s84 = scalar_lea.smem %s0, 42
  %s85 = sld [smem:[%s84]]
  %s86 = scalar_lea.smem %s0, 43
  %s87 = sld [smem:[%s86]]
  %s88 = scalar_lea.smem %s0, 44
  %s89 = sld [smem:[%s88]]
  %s90 = scalar_lea.smem %s0, 45
  %s91 = sld [smem:[%s90]]
  %s92 = scalar_lea.smem %s0, 46
  %s93 = sld [smem:[%s92]]
  %s94 = scalar_lea.smem %s0, 47
  %s95 = sld [smem:[%s94]]
  %s96 = scalar_lea.smem %s0, 48
  %s97 = sld [smem:[%s96]]
  %s98 = scalar_lea.smem %s0, 49
  %s99 = sld [smem:[%s98]]
  %s100 = scalar_lea.smem %s0, 50
  %s101 = sld [smem:[%s100]]
  %s102 = scalar_lea.smem %s0, 51
  %s103 = sld [smem:[%s102]]
  %s104 = scalar_lea.smem %s0, 52
  %s105 = sld [smem:[%s104]]
  %s106 = scalar_lea.smem %s0, 53
  %s107 = sld [smem:[%s106]]
  %s108 = scalar_lea.smem %s0, 54
  %s109 = sld [smem:[%s108]]
  %s110 = scalar_lea.smem %s0, 55
  %s111 = sld [smem:[%s110]]
  %s112 = scalar_lea.smem %s0, 56
  %s113 = sld [smem:[%s112]]
  %s114 = scalar_lea.smem %s0, 57
  %s115 = sld [smem:[%s114]]
  %116 = xla_tuple %s113, %s115
  %s117 = sld [smem:[#allocation0]]
  $region242: #{dkmil_forward.5} parent=0
    _
  %s119 = ssub.s32 1, %s117
  %s120 = scalar_select 0, %s119, %s117
  %v121 = vstv %s55
  %122 = vst [vmem:[#allocation2] sm:$0x1] %v121
  %v123 = vstv %s77
  %124 = vst [vmem:[#allocation3] sm:$0x1] %v123
  %v125 = vstv %s99
  %126 = vst [vmem:[#allocation4] sm:$0x1] %v125
  %v127 = vstv %s111
  %128 = vst [vmem:[#allocation5] sm:$0x1] %v127
  $region1: #{dkmil_forward.5} parent=0
    #allocation6 [shape = 'u8[512]{0}', space=vmem, size = 0x400, scoped, tag = 'output window, operand 0, single buffered']
    #allocation7 [shape = 's32[1]{0}', space=sflag, size = 0x4, scoped, tag = 'scoped memory for dkmil_forward.5']
    %129 = vsyncpa [#allocation7], 0
    // Predicated region
    $region2: #{dkmil_forward.5} parent=1 // pred_check
      _
    $region3: #{dkmil_forward.5} parent=1 // pred_check_branch
      %131 = sbr.rel (0) target = $region5
    $region4: #{dkmil_forward.5} parent=1 // pred_region
      _
    $region5: #{dkmil_forward.5} parent=1 // pred_fallthru
      _
    // Predicated region
    $region6: #{dkmil_forward.5} parent=1 // pred_check
      _
    $region7: #{dkmil_forward.5} parent=1 // pred_check_branch
      %133 = sbr.rel (0) target = $region9
    $region8: #{dkmil_forward.5} parent=1 // pred_region
      _
    $region9: #{dkmil_forward.5} parent=1 // pred_fallthru
      _
    // Predicated region
    $region10: #{dkmil_forward.5} parent=1 // pred_check
      _
    $region11: #{dkmil_forward.5} parent=1 // pred_check_branch
      %135 = sbr.rel (0) target = $region13
    $region12: #{dkmil_forward.5} parent=1 // pred_region
      _
    $region13: #{dkmil_forward.5} parent=1 // pred_fallthru
      _
    // Predicated region
    $region14: #{dkmil_forward.5} parent=1 // pred_check
      _
    $region15: #{dkmil_forward.5} parent=1 // pred_check_branch
      %137 = sbr.rel (0) target = $region17
    $region16: #{dkmil_forward.5} parent=1 // pred_region
      _
    $region17: #{dkmil_forward.5} parent=1 // pred_fallthru
      _
    // Predicated region
    $region18: #{dkmil_forward.5} parent=1 // pred_check
      _
    $region19: #{dkmil_forward.5} parent=1 // pred_check_branch
      %139 = sbr.rel (0) target = $region21
    $region20: #{dkmil_forward.5} parent=1 // pred_region
      _
    $region21: #{dkmil_forward.5} parent=1 // pred_fallthru
      _
    // Predicated region
    $region22: #{dkmil_forward.5} parent=1 // pred_check
      _
    $region23: #{dkmil_forward.5} parent=1 // pred_check_branch
      %141 = sbr.rel (0) target = $region25
    $region24: #{dkmil_forward.5} parent=1 // pred_region
      _
    $region25: #{dkmil_forward.5} parent=1 // pred_fallthru
      _
    // Predicated region
    $region26: #{dkmil_forward.5} parent=1 // pred_check
      _
    $region27: #{dkmil_forward.5} parent=1 // pred_check_branch
      %143 = sbr.rel (0) target = $region29
    $region28: #{dkmil_forward.5} parent=1 // pred_region
      _
    $region29: #{dkmil_forward.5} parent=1 // pred_fallthru
      _
    // Predicated region
    $region30: #{dkmil_forward.5} parent=1 // pred_check
      _
    $region31: #{dkmil_forward.5} parent=1 // pred_check_branch
      %145 = sbr.rel (0) target = $region33
    $region32: #{dkmil_forward.5} parent=1 // pred_region
      _
    $region33: #{dkmil_forward.5} parent=1 // pred_fallthru
      _
    // Predicated region
    $region34: #{dkmil_forward.5} parent=1 // pred_check
      _
    $region35: #{dkmil_forward.5} parent=1 // pred_check_branch
      %147 = sbr.rel (0) target = $region37
    $region36: #{dkmil_forward.5} parent=1 // pred_region
      _
    $region37: #{dkmil_forward.5} parent=1 // pred_fallthru
      _
    // Predicated region
    $region38: #{dkmil_forward.5} parent=1 // pred_check
      _
    $region39: #{dkmil_forward.5} parent=1 // pred_check_branch
      %149 = sbr.rel (0) target = $region41
    $region40: #{dkmil_forward.5} parent=1 // pred_region
      _
    $region41: #{dkmil_forward.5} parent=1 // pred_fallthru
      _
    // Predicated region
    $region42: #{dkmil_forward.5} parent=1 // pred_check
      _
    $region43: #{dkmil_forward.5} parent=1 // pred_check_branch
      %151 = sbr.rel (0) target = $region45
    $region44: #{dkmil_forward.5} parent=1 // pred_region
      _
    $region45: #{dkmil_forward.5} parent=1 // pred_fallthru
      _
    // Predicated region
    $region46: #{dkmil_forward.5} parent=1 // pred_check
      _
    $region47: #{dkmil_forward.5} parent=1 // pred_check_branch
      %153 = sbr.rel (0) target = $region49
    $region48: #{dkmil_forward.5} parent=1 // pred_region
      _
    $region49: #{dkmil_forward.5} parent=1 // pred_fallthru
      _
    // Predicated region
    $region50: #{dkmil_forward.5} parent=1 // pred_check
      _
    $region51: #{dkmil_forward.5} parent=1 // pred_check_branch
      %155 = sbr.rel (0) target = $region53
    $region52: #{dkmil_forward.5} parent=1 // pred_region
      _
    $region53: #{dkmil_forward.5} parent=1 // pred_fallthru
      _
    // Predicated region
    $region54: #{dkmil_forward.5} parent=1 // pred_check
      _
    $region55: #{dkmil_forward.5} parent=1 // pred_check_branch
      %157 = sbr.rel (0) target = $region57
    $region56: #{dkmil_forward.5} parent=1 // pred_region
      _
    $region57: #{dkmil_forward.5} parent=1 // pred_fallthru
      _
    // Predicated region
    $region58: #{dkmil_forward.5} parent=1 // pred_check
      _
    $region59: #{dkmil_forward.5} parent=1 // pred_check_branch
      %159 = sbr.rel (0) target = $region61
    $region60: #{dkmil_forward.5} parent=1 // pred_region
      _
    $region61: #{dkmil_forward.5} parent=1 // pred_fallthru
      _
    // Predicated region
    $region62: #{dkmil_forward.5} parent=1 // pred_check
      _
    $region63: #{dkmil_forward.5} parent=1 // pred_check_branch
      %161 = sbr.rel (0) target = $region65
    $region64: #{dkmil_forward.5} parent=1 // pred_region
      _
    $region65: #{dkmil_forward.5} parent=1 // pred_fallthru
      _
    // Predicated region
    $region66: #{dkmil_forward.5} parent=1 // pred_check
      _
    $region67: #{dkmil_forward.5} parent=1 // pred_check_branch
      %163 = sbr.rel (0) target = $region69
    $region68: #{dkmil_forward.5} parent=1 // pred_region
      _
    $region69: #{dkmil_forward.5} parent=1 // pred_fallthru
      _
    // Predicated region
    $region70: #{dkmil_forward.5} parent=1 // pred_check
      _
    $region71: #{dkmil_forward.5} parent=1 // pred_check_branch
      %165 = sbr.rel (0) target = $region73
    $region72: #{dkmil_forward.5} parent=1 // pred_region
      _
    $region73: #{dkmil_forward.5} parent=1 // pred_fallthru
      _
    // Predicated region
    $region74: #{dkmil_forward.5} parent=1 // pred_check
      _
    $region75: #{dkmil_forward.5} parent=1 // pred_check_branch
      %167 = sbr.rel (0) target = $region77
    $region76: #{dkmil_forward.5} parent=1 // pred_region
      _
    $region77: #{dkmil_forward.5} parent=1 // pred_fallthru
      _
    // Predicated region
    $region78: #{dkmil_forward.5} parent=1 // pred_check
      _
    $region79: #{dkmil_forward.5} parent=1 // pred_check_branch
      %169 = sbr.rel (0) target = $region81
    $region80: #{dkmil_forward.5} parent=1 // pred_region
      _
    $region81: #{dkmil_forward.5} parent=1 // pred_fallthru
      _
    // Predicated region
    $region82: #{dkmil_forward.5} parent=1 // pred_check
      _
    $region83: #{dkmil_forward.5} parent=1 // pred_check_branch
      %171 = sbr.rel (0) target = $region85
    $region84: #{dkmil_forward.5} parent=1 // pred_region
      _
    $region85: #{dkmil_forward.5} parent=1 // pred_fallthru
      _
    // Predicated region
    $region86: #{dkmil_forward.5} parent=1 // pred_check
      _
    $region87: #{dkmil_forward.5} parent=1 // pred_check_branch
      %173 = sbr.rel (0) target = $region89
    $region88: #{dkmil_forward.5} parent=1 // pred_region
      _
    $region89: #{dkmil_forward.5} parent=1 // pred_fallthru
      _
    // Predicated region
    $region90: #{dkmil_forward.5} parent=1 // pred_check
      _
    $region91: #{dkmil_forward.5} parent=1 // pred_check_branch
      %175 = sbr.rel (0) target = $region93
    $region92: #{dkmil_forward.5} parent=1 // pred_region
      _
    $region93: #{dkmil_forward.5} parent=1 // pred_fallthru
      _
    // Predicated region
    $region94: #{dkmil_forward.5} parent=1 // pred_check
      _
    $region95: #{dkmil_forward.5} parent=1 // pred_check_branch
      %177 = sbr.rel (0) target = $region97
    $region96: #{dkmil_forward.5} parent=1 // pred_region
      _
    $region97: #{dkmil_forward.5} parent=1 // pred_fallthru
      _
    // Predicated region
    $region98: #{dkmil_forward.5} parent=1 // pred_check
      _
    $region99: #{dkmil_forward.5} parent=1 // pred_check_branch
      %179 = sbr.rel (0) target = $region101
    $region100: #{dkmil_forward.5} parent=1 // pred_region
      _
    $region101: #{dkmil_forward.5} parent=1 // pred_fallthru
      _
    // Predicated region
    $region102: #{dkmil_forward.5} parent=1 // pred_check
      _
    $region103: #{dkmil_forward.5} parent=1 // pred_check_branch
      %181 = sbr.rel (0) target = $region105
    $region104: #{dkmil_forward.5} parent=1 // pred_region
      _
    $region105: #{dkmil_forward.5} parent=1 // pred_fallthru
      _
    // Predicated region
    $region106: #{dkmil_forward.5} parent=1 // pred_check
      _
    $region107: #{dkmil_forward.5} parent=1 // pred_check_branch
      %183 = sbr.rel (0) target = $region109
    $region108: #{dkmil_forward.5} parent=1 // pred_region
      _
    $region109: #{dkmil_forward.5} parent=1 // pred_fallthru
      _
    // Predicated region
    $region110: #{dkmil_forward.5} parent=1 // pred_check
      _
    $region111: #{dkmil_forward.5} parent=1 // pred_check_branch
      %185 = sbr.rel (0) target = $region113
    $region112: #{dkmil_forward.5} parent=1 // pred_region
      _
    $region113: #{dkmil_forward.5} parent=1 // pred_fallthru
      _
    // Predicated region
    $region114: #{dkmil_forward.5} parent=1 // pred_check
      _
    $region115: #{dkmil_forward.5} parent=1 // pred_check_branch
      %187 = sbr.rel (0) target = $region117
    $region116: #{dkmil_forward.5} parent=1 // pred_region
      _
    $region117: #{dkmil_forward.5} parent=1 // pred_fallthru
      _
    // Predicated region
    $region118: #{dkmil_forward.5} parent=1 // pred_check
      _
    $region119: #{dkmil_forward.5} parent=1 // pred_check_branch
      %189 = sbr.rel (0) target = $region121
    $region120: #{dkmil_forward.5} parent=1 // pred_region
      _
    $region121: #{dkmil_forward.5} parent=1 // pred_fallthru
      _
    // Predicated region
    $region122: #{dkmil_forward.5} parent=1 // pred_check
      _
    $region123: #{dkmil_forward.5} parent=1 // pred_check_branch
      %191 = sbr.rel (0) target = $region125
    $region124: #{dkmil_forward.5} parent=1 // pred_region
      _
    $region125: #{dkmil_forward.5} parent=1 // pred_fallthru
      _
    // Predicated region
    $region126: #{dkmil_forward.5} parent=1 // pred_check
      _
    $region127: #{dkmil_forward.5} parent=1 // pred_check_branch
      %193 = sbr.rel (0) target = $region129
    $region128: #{dkmil_forward.5} parent=1 // pred_region
      _
    $region129: #{dkmil_forward.5} parent=1 // pred_fallthru
      _
    // Predicated region
    $region130: #{dkmil_forward.5} parent=1 // pred_check
      _
    $region131: #{dkmil_forward.5} parent=1 // pred_check_branch
      %195 = sbr.rel (0) target = $region133
    $region132: #{dkmil_forward.5} parent=1 // pred_region
      _
    $region133: #{dkmil_forward.5} parent=1 // pred_fallthru
      _
    // Predicated region
    $region134: #{dkmil_forward.5} parent=1 // pred_check
      _
    $region135: #{dkmil_forward.5} parent=1 // pred_check_branch
      %197 = sbr.rel (0) target = $region137
    $region136: #{dkmil_forward.5} parent=1 // pred_region
      _
    $region137: #{dkmil_forward.5} parent=1 // pred_fallthru
      _
    // Predicated region
    $region138: #{dkmil_forward.5} parent=1 // pred_check
      _
    $region139: #{dkmil_forward.5} parent=1 // pred_check_branch
      %199 = sbr.rel (0) target = $region141
    $region140: #{dkmil_forward.5} parent=1 // pred_region
      _
    $region141: #{dkmil_forward.5} parent=1 // pred_fallthru
      _
    // Predicated region
    $region142: #{dkmil_forward.5} parent=1 // pred_check
      _
    $region143: #{dkmil_forward.5} parent=1 // pred_check_branch
      %201 = sbr.rel (0) target = $region145
    $region144: #{dkmil_forward.5} parent=1 // pred_region
      _
    $region145: #{dkmil_forward.5} parent=1 // pred_fallthru
      _
    // Predicated region
    $region146: #{dkmil_forward.5} parent=1 // pred_check
      _
    $region147: #{dkmil_forward.5} parent=1 // pred_check_branch
      %203 = sbr.rel (0) target = $region149
    $region148: #{dkmil_forward.5} parent=1 // pred_region
      _
    $region149: #{dkmil_forward.5} parent=1 // pred_fallthru
      _
    // Predicated region
    $region150: #{dkmil_forward.5} parent=1 // pred_check
      _
    $region151: #{dkmil_forward.5} parent=1 // pred_check_branch
      %205 = sbr.rel (0) target = $region153
    $region152: #{dkmil_forward.5} parent=1 // pred_region
      _
    $region153: #{dkmil_forward.5} parent=1 // pred_fallthru
      _
    // Predicated region
    $region154: #{dkmil_forward.5} parent=1 // pred_check
      _
    $region155: #{dkmil_forward.5} parent=1 // pred_check_branch
      %207 = sbr.rel (0) target = $region157
    $region156: #{dkmil_forward.5} parent=1 // pred_region
      _
    $region157: #{dkmil_forward.5} parent=1 // pred_fallthru
      _
    // Predicated region
    $region158: #{dkmil_forward.5} parent=1 // pred_check
      _
    $region159: #{dkmil_forward.5} parent=1 // pred_check_branch
      %209 = sbr.rel (0) target = $region161
    $region160: #{dkmil_forward.5} parent=1 // pred_region
      _
    $region161: #{dkmil_forward.5} parent=1 // pred_fallthru
      _
    // Predicated region
    $region162: #{dkmil_forward.5} parent=1 // pred_check
      _
    $region163: #{dkmil_forward.5} parent=1 // pred_check_branch
      %211 = sbr.rel (0) target = $region165
    $region164: #{dkmil_forward.5} parent=1 // pred_region
      _
    $region165: #{dkmil_forward.5} parent=1 // pred_fallthru
      _
    // Predicated region
    $region166: #{dkmil_forward.5} parent=1 // pred_check
      _
    $region167: #{dkmil_forward.5} parent=1 // pred_check_branch
      %213 = sbr.rel (0) target = $region169
    $region168: #{dkmil_forward.5} parent=1 // pred_region
      _
    $region169: #{dkmil_forward.5} parent=1 // pred_fallthru
      _
    // Predicated region
    $region170: #{dkmil_forward.5} parent=1 // pred_check
      _
    $region171: #{dkmil_forward.5} parent=1 // pred_check_branch
      %215 = sbr.rel (0) target = $region173
    $region172: #{dkmil_forward.5} parent=1 // pred_region
      _
    $region173: #{dkmil_forward.5} parent=1 // pred_fallthru
      _
    // Predicated region
    $region174: #{dkmil_forward.5} parent=1 // pred_check
      _
    $region175: #{dkmil_forward.5} parent=1 // pred_check_branch
      %217 = sbr.rel (0) target = $region177
    $region176: #{dkmil_forward.5} parent=1 // pred_region
      _
    $region177: #{dkmil_forward.5} parent=1 // pred_fallthru
      _
    // Predicated region
    $region178: #{dkmil_forward.5} parent=1 // pred_check
      _
    $region179: #{dkmil_forward.5} parent=1 // pred_check_branch
      %219 = sbr.rel (0) target = $region181
    $region180: #{dkmil_forward.5} parent=1 // pred_region
      _
    $region181: #{dkmil_forward.5} parent=1 // pred_fallthru
      _
    // Predicated region
    $region182: #{dkmil_forward.5} parent=1 // pred_check
      _
    $region183: #{dkmil_forward.5} parent=1 // pred_check_branch
      %221 = sbr.rel (0) target = $region185
    $region184: #{dkmil_forward.5} parent=1 // pred_region
      _
    $region185: #{dkmil_forward.5} parent=1 // pred_fallthru
      _
    // Predicated region
    $region186: #{dkmil_forward.5} parent=1 // pred_check
      _
    $region187: #{dkmil_forward.5} parent=1 // pred_check_branch
      %223 = sbr.rel (0) target = $region189
    $region188: #{dkmil_forward.5} parent=1 // pred_region
      _
    $region189: #{dkmil_forward.5} parent=1 // pred_fallthru
      _
    // Predicated region
    $region190: #{dkmil_forward.5} parent=1 // pred_check
      _
    $region191: #{dkmil_forward.5} parent=1 // pred_check_branch
      %225 = sbr.rel (0) target = $region193
    $region192: #{dkmil_forward.5} parent=1 // pred_region
      _
    $region193: #{dkmil_forward.5} parent=1 // pred_fallthru
      _
    // Predicated region
    $region194: #{dkmil_forward.5} parent=1 // pred_check
      _
    $region195: #{dkmil_forward.5} parent=1 // pred_check_branch
      %227 = sbr.rel (0) target = $region197
    $region196: #{dkmil_forward.5} parent=1 // pred_region
      _
    $region197: #{dkmil_forward.5} parent=1 // pred_fallthru
      _
    // Predicated region
    $region198: #{dkmil_forward.5} parent=1 // pred_check
      _
    $region199: #{dkmil_forward.5} parent=1 // pred_check_branch
      %229 = sbr.rel (0) target = $region201
    $region200: #{dkmil_forward.5} parent=1 // pred_region
      _
    $region201: #{dkmil_forward.5} parent=1 // pred_fallthru
      _
    // Predicated region
    $region202: #{dkmil_forward.5} parent=1 // pred_check
      _
    $region203: #{dkmil_forward.5} parent=1 // pred_check_branch
      %231 = sbr.rel (0) target = $region205
    $region204: #{dkmil_forward.5} parent=1 // pred_region
      _
    $region205: #{dkmil_forward.5} parent=1 // pred_fallthru
      _
    // Predicated region
    $region206: #{dkmil_forward.5} parent=1 // pred_check
      _
    $region207: #{dkmil_forward.5} parent=1 // pred_check_branch
      %233 = sbr.rel (0) target = $region209
    $region208: #{dkmil_forward.5} parent=1 // pred_region
      _
    $region209: #{dkmil_forward.5} parent=1 // pred_fallthru
      _
    // Predicated region
    $region210: #{dkmil_forward.5} parent=1 // pred_check
      _
    $region211: #{dkmil_forward.5} parent=1 // pred_check_branch
      %235 = sbr.rel (0) target = $region213
    $region212: #{dkmil_forward.5} parent=1 // pred_region
      _
    $region213: #{dkmil_forward.5} parent=1 // pred_fallthru
      _
    // Predicated region
    $region214: #{dkmil_forward.5} parent=1 // pred_check
      _
    $region215: #{dkmil_forward.5} parent=1 // pred_check_branch
      %237 = sbr.rel (0) target = $region217
    $region216: #{dkmil_forward.5} parent=1 // pred_region
      _
    $region217: #{dkmil_forward.5} parent=1 // pred_fallthru
      _
    // Predicated region
    $region218: #{dkmil_forward.5} parent=1 // pred_check
      _
    $region219: #{dkmil_forward.5} parent=1 // pred_check_branch
      %239 = sbr.rel (0) target = $region221
    $region220: #{dkmil_forward.5} parent=1 // pred_region
      _
    $region221: #{dkmil_forward.5} parent=1 // pred_fallthru
      _
    // Predicated region
    $region222: #{dkmil_forward.5} parent=1 // pred_check
      _
    $region223: #{dkmil_forward.5} parent=1 // pred_check_branch
      %241 = sbr.rel (0) target = $region225
    $region224: #{dkmil_forward.5} parent=1 // pred_region
      _
    $region225: #{dkmil_forward.5} parent=1 // pred_fallthru
      _
    %v242 = vld [vmem:[%s1] sm:$0xff]
    %v243 = vld [vmem:[%s3] sm:$0x3f]
    %v244 = vld [vmem:[%s5] sm:$0xff]
    %v245 = vld [vmem:[%s5 + $0x8] sm:$0xff]
    %v246 = vld [vmem:[%s5 + $0x10] sm:$0xff]
    %v247 = vld [vmem:[%s5 + $0x18] sm:$0xff]
    %v248 = vld [vmem:[%s7] sm:$0x1]
    %v249 = vld [vmem:[%s9] sm:$0xff]
    %v250 = vld [vmem:[%s9 + $0x8] sm:$0xff]
    %v251 = vld [vmem:[%s9 + $0x10] sm:$0xff]
    %v252 = vld [vmem:[%s9 + $0x18] sm:$0xff]
    %v253 = vld [vmem:[%s11] sm:$0x1]
    %v254 = vld [vmem:[%s13] sm:$0xff]
    %v255 = vld [vmem:[%s13 + $0x8] sm:$0xff]
    %v256 = vld [vmem:[%s13 + $0x10] sm:$0xff]
    %v257 = vld [vmem:[%s13 + $0x18] sm:$0xff]
    %v258 = vld [vmem:[%s15] sm:$0x1]
    %v260 = vperm.slane %v248, 0
    %vm262 = vcmask 261120
    %v264 = vsel %vm262, %v242, 0
    %266 = vmatpush.msra.mxu0 0.0
    %267 = vmatpush.msra.mxu0 0.0
    %268 = vmatpush.msra.mxu0 0.0
    %269 = vmatpush.msra.mxu0 0.0
    %270 = vmatpush.msra.mxu0 0.0
    %271 = vmatpush.msra.mxu0 0.0
    %272 = vmatpush.msra.mxu0 0.0
    %273 = vmatpush.msra.mxu0 0.0
    %274 = vmatpush.msra.mxu0 0.0
    %275 = vmatpush.msra.mxu0 0.0
    %276 = vmatpush.msra.mxu0 0.0
    %277 = vmatpush.msra.mxu0 0.0
    %278 = vmatpush.msra.mxu0 %v247
    %279 = vmatpush.msra.mxu0 %v246
    %280 = vmatpush.msra.mxu0 %v245
    %281 = vmatpush.msra.mxu0 %v244
    %282 = vmatmul.f32.gmra.mxu0 %v264
    %v283 = vpop.f32.mrf.mxu0
    %v284 = vadd.f32 %v260, %v283
    %285 = vdwg.mxu0
    %vm286 = vcmp.ge.f32.partialorder %v284, 0.0
    %v287 = vmul.f32 %v284, 0.01
    %v288 = vsel %vm286, %v284, %v287
    %v289 = vmul.f32 %v288, 0.999995
    %v291 = vperm.slane %v253, 0
    %293 = vmatpush.msra.mxu0 0.0
    %294 = vmatpush.msra.mxu0 0.0
    %295 = vmatpush.msra.mxu0 0.0
    %296 = vmatpush.msra.mxu0 0.0
    %297 = vmatpush.msra.mxu0 0.0
    %298 = vmatpush.msra.mxu0 0.0
    %299 = vmatpush.msra.mxu0 0.0
    %300 = vmatpush.msra.mxu0 0.0
    %301 = vmatpush.msra.mxu0 0.0
    %302 = vmatpush.msra.mxu0 0.0
    %303 = vmatpush.msra.mxu0 0.0
    %304 = vmatpush.msra.mxu0 0.0
    %305 = vmatpush.msra.mxu0 %v252
    %306 = vmatpush.msra.mxu0 %v251
    %307 = vmatpush.msra.mxu0 %v250
    %308 = vmatpush.msra.mxu0 %v249
    %309 = vmatmul.f32.gmra.mxu0 %v264
    %v310 = vpop.f32.mrf.mxu0
    %v311 = vadd.f32 %v291, %v310
    %312 = vdwg.mxu0
    %vm313 = vcmp.ge.f32.partialorder %v311, 0.0
    %v314 = vmul.f32 %v311, 0.01
    %v315 = vsel %vm313, %v311, %v314
    %v316 = vmul.f32 %v315, 0.999995
    %v318 = vperm.slane %v258, 0
    %320 = vmatpush.msra.mxu0 0.0
    %321 = vmatpush.msra.mxu0 0.0
    %322 = vmatpush.msra.mxu0 0.0
    %323 = vmatpush.msra.mxu0 0.0
    %324 = vmatpush.msra.mxu0 0.0
    %325 = vmatpush.msra.mxu0 0.0
    %326 = vmatpush.msra.mxu0 0.0
    %327 = vmatpush.msra.mxu0 0.0
    %328 = vmatpush.msra.mxu0 0.0
    %329 = vmatpush.msra.mxu0 0.0
    %330 = vmatpush.msra.mxu0 0.0
    %331 = vmatpush.msra.mxu0 0.0
    %332 = vmatpush.msra.mxu0 %v257
    %333 = vmatpush.msra.mxu0 %v256
    %334 = vmatpush.msra.mxu0 %v255
    %335 = vmatpush.msra.mxu0 %v254
    %336 = vmatmul.f32.gmra.mxu0 %v264
    %v337 = vpop.f32.mrf.mxu0
    %v338 = vadd.f32 %v318, %v337
    %339 = vdwg.mxu0
    %vm340 = vcmp.ge.f32.partialorder %v338, 0.0
    %v341 = vmul.f32 %v338, 0.01
    %v342 = vsel %vm340, %v338, %v341
    %v343 = vmul.f32 %v342, 0.999995
    %vm344 = vcmask 130048
    %v346 = vsel %vm344, %v289, 0
    %v349 = vsel %vm344, %v316, 0
    %351 = vmatpush.xpose.msra.mxu0 0.0
    %352 = vmatpush.xpose.msra.mxu0 0.0
    %353 = vmatpush.xpose.msra.mxu0 0.0
    %354 = vmatpush.xpose.msra.mxu0 0.0
    %355 = vmatpush.xpose.msra.mxu0 0.0
    %356 = vmatpush.xpose.msra.mxu0 0.0
    %357 = vmatpush.xpose.msra.mxu0 0.0
    %358 = vmatpush.xpose.msra.mxu0 0.0
    %359 = vmatpush.xpose.msra.mxu0 0.0
    %360 = vmatpush.xpose.msra.mxu0 0.0
    %361 = vmatpush.xpose.msra.mxu0 0.0
    %362 = vmatpush.xpose.msra.mxu0 0.0
    %363 = vmatpush.xpose.msra.mxu0 0.0
    %364 = vmatpush.xpose.msra.mxu0 0.0
    %365 = vmatpush.xpose.msra.mxu0 0.0
    %366 = vmatpush.xpose.msra.mxu0 %v349
    %367 = vmatmul.f32.gmra.mxu0 %v346
    %v368 = vpop.f32.mrf.mxu0
    %v369 = vadd.f32 0.0, %v368
    %370 = vdwg.mxu0
    %vm371 = vcmask 64512
    %v372 = vsel %vm371, %v369, -inf
    %v373 = vrot.slane %v372, 4
    %v374 = vmax.f32 %v372, %v373
    %v375 = vrot.slane %v374, 2
    %v376 = vmax.f32 %v374, %v375
    %v377 = vrot.slane %v376, 1
    %v378 = vmax.f32 %v376, %v377
    %v379 = vsub.f32 %v369, %v378
    %v380 = vmul.f32 %v379, 1.442695
    %v381 = vpow.pop %v380
    %v382 = vsel %vm371, %v381, 0.0
    %v383 = vrot.slane %v382, 4
    %v384 = vadd.f32 %v382, %v383
    %v385 = vrot.slane %v384, 2
    %v386 = vadd.f32 %v384, %v385
    %v387 = vrot.slane %v386, 1
    %v388 = vadd.f32 %v386, %v387
    %v389 = vrcp.pop %v388
    %v390 = vmul.f32 %v381, %v389
    %v392 = vsel %vm371, %v390, 0
    %394 = vmatpush.msra.mxu0 0.0
    %395 = vmatpush.msra.mxu0 0.0
    %396 = vmatpush.msra.mxu0 0.0
    %397 = vmatpush.msra.mxu0 0.0
    %398 = vmatpush.msra.mxu0 0.0
    %399 = vmatpush.msra.mxu0 0.0
    %400 = vmatpush.msra.mxu0 0.0
    %401 = vmatpush.msra.mxu0 0.0
    %402 = vmatpush.msra.mxu0 0.0
    %403 = vmatpush.msra.mxu0 0.0
    %404 = vmatpush.msra.mxu0 0.0
    %405 = vmatpush.msra.mxu0 0.0
    %406 = vmatpush.msra.mxu0 0.0
    %407 = vmatpush.msra.mxu0 0.0
    %408 = vmatpush.msra.mxu0 0.0
    %409 = vmatpush.msra.mxu0 %v343
    %410 = vmatmul.f32.gmra.mxu0 %v392
    %v411 = vpop.f32.mrf.mxu0
    %v412 = vadd.f32 %v242, %v411
    %413 = vdwg.mxu0
    %v414 = vld [vmem:[%s17] sm:$0xff]
    %v415 = vld [vmem:[%s17 + $0x8] sm:$0xff]
    %v416 = vld [vmem:[%s17 + $0x10] sm:$0xff]
    %v417 = vld [vmem:[%s17 + $0x18] sm:$0xff]
    %v418 = vld [vmem:[%s19] sm:$0x1]
    %v419 = vld [vmem:[%s21] sm:$0xff]
    %v420 = vld [vmem:[%s21 + $0x8] sm:$0xff]
    %v421 = vld [vmem:[%s21 + $0x10] sm:$0xff]
    %v422 = vld [vmem:[%s21 + $0x18] sm:$0xff]
    %v423 = vld [vmem:[%s23] sm:$0x1]
    %v424 = vld [vmem:[%s25] sm:$0xff]
    %v425 = vld [vmem:[%s25 + $0x8] sm:$0xff]
    %v426 = vld [vmem:[%s25 + $0x10] sm:$0xff]
    %v427 = vld [vmem:[%s25 + $0x18] sm:$0xff]
    %v428 = vld [vmem:[%s27] sm:$0x1]
    %v430 = vperm.slane %v418, 0
    %v433 = vsel %vm262, %v243, 0
    %435 = vmatpush.msra.mxu0 0.0
    %436 = vmatpush.msra.mxu0 0.0
    %437 = vmatpush.msra.mxu0 0.0
    %438 = vmatpush.msra.mxu0 0.0
    %439 = vmatpush.msra.mxu0 0.0
    %440 = vmatpush.msra.mxu0 0.0
    %441 = vmatpush.msra.mxu0 0.0
    %442 = vmatpush.msra.mxu0 0.0
    %443 = vmatpush.msra.mxu0 0.0
    %444 = vmatpush.msra.mxu0 0.0
    %445 = vmatpush.msra.mxu0 0.0
    %446 = vmatpush.msra.mxu0 0.0
    %447 = vmatpush.msra.mxu0 %v417
    %448 = vmatpush.msra.mxu0 %v416
    %449 = vmatpush.msra.mxu0 %v415
    %450 = vmatpush.msra.mxu0 %v414
    %451 = vmatmul.f32.gmra.mxu0 %v433
    %v452 = vpop.f32.mrf.mxu0
    %v453 = vadd.f32 %v430, %v452
    %454 = vdwg.mxu0
    %vm455 = vcmp.ge.f32.partialorder %v453, 0.0
    %v456 = vmul.f32 %v453, 0.01
    %v457 = vsel %vm455, %v453, %v456
    %v458 = vmul.f32 %v457, 0.999995
    %v460 = vperm.slane %v423, 0
    %462 = vmatpush.msra.mxu0 0.0
    %463 = vmatpush.msra.mxu0 0.0
    %464 = vmatpush.msra.mxu0 0.0
    %465 = vmatpush.msra.mxu0 0.0
    %466 = vmatpush.msra.mxu0 0.0
    %467 = vmatpush.msra.mxu0 0.0
    %468 = vmatpush.msra.mxu0 0.0
    %469 = vmatpush.msra.mxu0 0.0
    %470 = vmatpush.msra.mxu0 0.0
    %471 = vmatpush.msra.mxu0 0.0
    %472 = vmatpush.msra.mxu0 0.0
    %473 = vmatpush.msra.mxu0 0.0
    %474 = vmatpush.msra.mxu0 %v422
    %475 = vmatpush.msra.mxu0 %v421
    %476 = vmatpush.msra.mxu0 %v420
    %477 = vmatpush.msra.mxu0 %v419
    %478 = vmatmul.f32.gmra.mxu0 %v433
    %v479 = vpop.f32.mrf.mxu0
    %v480 = vadd.f32 %v460, %v479
    %481 = vdwg.mxu0
    %vm482 = vcmp.ge.f32.partialorder %v480, 0.0
    %v483 = vmul.f32 %v480, 0.01
    %v484 = vsel %vm482, %v480, %v483
    %v485 = vmul.f32 %v484, 0.999995
    %v487 = vperm.slane %v428, 0
    %489 = vmatpush.msra.mxu0 0.0
    %490 = vmatpush.msra.mxu0 0.0
    %491 = vmatpush.msra.mxu0 0.0
    %492 = vmatpush.msra.mxu0 0.0
    %493 = vmatpush.msra.mxu0 0.0
    %494 = vmatpush.msra.mxu0 0.0
    %495 = vmatpush.msra.mxu0 0.0
    %496 = vmatpush.msra.mxu0 0.0
    %497 = vmatpush.msra.mxu0 0.0
    %498 = vmatpush.msra.mxu0 0.0
    %499 = vmatpush.msra.mxu0 0.0
    %500 = vmatpush.msra.mxu0 0.0
    %501 = vmatpush.msra.mxu0 %v427
    %502 = vmatpush.msra.mxu0 %v426
    %503 = vmatpush.msra.mxu0 %v425
    %504 = vmatpush.msra.mxu0 %v424
    %505 = vmatmul.f32.gmra.mxu0 %v433
    %v506 = vpop.f32.mrf.mxu0
    %v507 = vadd.f32 %v487, %v506
    %508 = vdwg.mxu0
    %vm509 = vcmp.ge.f32.partialorder %v507, 0.0
    %v510 = vmul.f32 %v507, 0.01
    %v511 = vsel %vm509, %v507, %v510
    %v512 = vmul.f32 %v511, 0.999995
    %v514 = vsel %vm344, %v458, 0
    %v517 = vsel %vm344, %v485, 0
    %519 = vmatpush.xpose.msra.mxu0 0.0
    %520 = vmatpush.xpose.msra.mxu0 0.0
    %521 = vmatpush.xpose.msra.mxu0 0.0
    %522 = vmatpush.xpose.msra.mxu0 0.0
    %523 = vmatpush.xpose.msra.mxu0 0.0
    %524 = vmatpush.xpose.msra.mxu0 0.0
    %525 = vmatpush.xpose.msra.mxu0 0.0
    %526 = vmatpush.xpose.msra.mxu0 0.0
    %527 = vmatpush.xpose.msra.mxu0 0.0
    %528 = vmatpush.xpose.msra.mxu0 0.0
    %529 = vmatpush.xpose.msra.mxu0 0.0
    %530 = vmatpush.xpose.msra.mxu0 0.0
    %531 = vmatpush.xpose.msra.mxu0 0.0
    %532 = vmatpush.xpose.msra.mxu0 0.0
    %533 = vmatpush.xpose.msra.mxu0 0.0
    %534 = vmatpush.xpose.msra.mxu0 %v517
    %535 = vmatmul.f32.gmra.mxu0 %v514
    %v536 = vpop.f32.mrf.mxu0
    %v537 = vadd.f32 0.0, %v536
    %538 = vdwg.mxu0
    %vm539 = vcmask 46080
    %v540 = vsel %vm539, %v537, -inf
    %v541 = vrot.slane %v540, 4
    %v542 = vmax.f32 %v540, %v541
    %v543 = vrot.slane %v542, 2
    %v544 = vmax.f32 %v542, %v543
    %v545 = vrot.slane %v544, 1
    %v546 = vmax.f32 %v544, %v545
    %v547 = vsub.f32 %v537, %v546
    %v548 = vmul.f32 %v547, 1.442695
    %v549 = vpow.pop %v548
    %v550 = vsel %vm539, %v549, 0.0
    %v551 = vrot.slane %v550, 4
    %v552 = vadd.f32 %v550, %v551
    %v553 = vrot.slane %v552, 2
    %v554 = vadd.f32 %v552, %v553
    %v555 = vrot.slane %v554, 1
    %v556 = vadd.f32 %v554, %v555
    %v557 = vrcp.pop %v556
    %v558 = vmul.f32 %v549, %v557
    %vm559 = vcmask 48128
    %v561 = vsel %vm559, %v558, 0
    %vm563 = vcmask 1045504
    %v565 = vsel %vm563, %v512, 0
    %567 = vmatpush.msra.mxu0 0.0
    %568 = vmatpush.msra.mxu0 0.0
    %569 = vmatpush.msra.mxu0 0.0
    %570 = vmatpush.msra.mxu0 0.0
    %571 = vmatpush.msra.mxu0 0.0
    %572 = vmatpush.msra.mxu0 0.0
    %573 = vmatpush.msra.mxu0 0.0
    %574 = vmatpush.msra.mxu0 0.0
    %575 = vmatpush.msra.mxu0 0.0
    %576 = vmatpush.msra.mxu0 0.0
    %577 = vmatpush.msra.mxu0 0.0
    %578 = vmatpush.msra.mxu0 0.0
    %579 = vmatpush.msra.mxu0 0.0
    %580 = vmatpush.msra.mxu0 0.0
    %581 = vmatpush.msra.mxu0 0.0
    %582 = vmatpush.msra.mxu0 %v565
    %583 = vmatmul.f32.gmra.mxu0 %v561
    %v584 = vpop.f32.mrf.mxu0
    %v585 = vadd.f32 %v243, %v584
    %586 = vdwg.mxu0
    %v588 = vsel %vm262, %v412, 0
    %v591 = vsel %vm262, %v585, 0
    %593 = vmatpush.xpose.msra.mxu0 0.0
    %594 = vmatpush.xpose.msra.mxu0 0.0
    %595 = vmatpush.xpose.msra.mxu0 0.0
    %596 = vmatpush.xpose.msra.mxu0 0.0
    %597 = vmatpush.xpose.msra.mxu0 0.0
    %598 = vmatpush.xpose.msra.mxu0 0.0
    %599 = vmatpush.xpose.msra.mxu0 0.0
    %600 = vmatpush.xpose.msra.mxu0 0.0
    %601 = vmatpush.xpose.msra.mxu0 0.0
    %602 = vmatpush.xpose.msra.mxu0 0.0
    %603 = vmatpush.xpose.msra.mxu0 0.0
    %604 = vmatpush.xpose.msra.mxu0 0.0
    %605 = vmatpush.xpose.msra.mxu0 0.0
    %606 = vmatpush.xpose.msra.mxu0 0.0
    %607 = vmatpush.xpose.msra.mxu0 0.0
    %608 = vmatpush.xpose.msra.mxu0 %v591
    %609 = vmatmul.f32.gmra.mxu0 %v588
    %v610 = vpop.f32.mrf.mxu0
    %v611 = vadd.f32 0.0, %v610
    %612 = vdwg.mxu0
    %v613 = vmul.f32 %v412, %v412
    %v614 = vsel %vm262, %v613, 0.0
    %615 = vadd.xlane.f32.xlu0 %v614
    %v616 = vpop.xlane.xlu0 %615
    %v617 = vmul.f32 %v585, %v585
    %v619 = vsel %vm262, 1.0, 0
    %v622 = vsel %vm262, %v617, 0
    %624 = vmatpush.xpose.msra.mxu0 0.0
    %625 = vmatpush.xpose.msra.mxu0 0.0
    %626 = vmatpush.xpose.msra.mxu0 0.0
    %627 = vmatpush.xpose.msra.mxu0 0.0
    %628 = vmatpush.xpose.msra.mxu0 0.0
    %629 = vmatpush.xpose.msra.mxu0 0.0
    %630 = vmatpush.xpose.msra.mxu0 0.0
    %631 = vmatpush.xpose.msra.mxu0 0.0
    %632 = vmatpush.xpose.msra.mxu0 0.0
    %633 = vmatpush.xpose.msra.mxu0 0.0
    %634 = vmatpush.xpose.msra.mxu0 0.0
    %635 = vmatpush.xpose.msra.mxu0 0.0
    %636 = vmatpush.xpose.msra.mxu0 0.0
    %637 = vmatpush.xpose.msra.mxu0 0.0
    %638 = vmatpush.xpose.msra.mxu0 0.0
    %639 = vmatpush.xpose.msra.mxu0 %v622
    %640 = vmatmul.f32.gmra.mxu0 %v619
    %v641 = vpop.f32.mrf.mxu0
    %v642 = vadd.f32 0.0, %v641
    %643 = vdwg.mxu0
    %v644 = vperm.slane %v642, 0
    %v645 = vadd.f32 %v616, %v644
    %v646 = vmul.f32 %v611, 2.0
    %v647 = vsub.f32 %v645, %v646
    %v648 = vmax.f32 %v647, 0.0
    %v649 = vrsqrt.pop %v648
    %v650 = vmul.f32 %v649, %v648
    %v651 = vmul.f32 %v650, %v649
    %v652 = vmul.f32 0.5, %v651
    %v653 = vsub.f32 1.5, %v652
    %v654 = vmul.f32 %v649, %v653
    %v655 = vmul.f32 %v648, %v654
    %vm656 = vcmp.eq.f32.partialorder %v648, inf
    %v657 = vsel %vm656, %v648, %v655
    %vm658 = vcmp.eq.f32.partialorder %v648, 0.0
    %v659 = vand.u32 %v648, 2147483648
    %v660 = vsel %vm658, %v659, %v657
    %v661 = vld [vmem:[%s29] sm:$0x3f]
    %v662 = vld [vmem:[%s31] sm:$0x1]
    %v663 = vld [vmem:[%s33] sm:$0x3f]
    %v664 = vld [vmem:[%s35] sm:$0x1]
    %v665 = vld [vmem:[%s37] sm:$0x3f]
    %v666 = vld [vmem:[%s39] sm:$0x1]
    %v668 = vperm.slane %v662, 0
    %v671 = vsel %vm559, %v660, 0
    %v674 = vsel %vm563, %v661, 0
    %676 = vmatpush.msra.mxu0 0.0
    %677 = vmatpush.msra.mxu0 0.0
    %678 = vmatpush.msra.mxu0 0.0
    %679 = vmatpush.msra.mxu0 0.0
    %680 = vmatpush.msra.mxu0 0.0
    %681 = vmatpush.msra.mxu0 0.0
    %682 = vmatpush.msra.mxu0 0.0
    %683 = vmatpush.msra.mxu0 0.0
    %684 = vmatpush.msra.mxu0 0.0
    %685 = vmatpush.msra.mxu0 0.0
    %686 = vmatpush.msra.mxu0 0.0
    %687 = vmatpush.msra.mxu0 0.0
    %688 = vmatpush.msra.mxu0 0.0
    %689 = vmatpush.msra.mxu0 0.0
    %690 = vmatpush.msra.mxu0 0.0
    %691 = vmatpush.msra.mxu0 %v674
    %692 = vmatmul.f32.gmra.mxu0 %v671
    %v693 = vpop.f32.mrf.mxu0
    %v694 = vadd.f32 %v668, %v693
    %695 = vdwg.mxu0
    %vm696 = vcmp.ge.f32.partialorder %v694, 0.0
    %v697 = vmul.f32 %v694, 0.01
    %v698 = vsel %vm696, %v694, %v697
    %v699 = vmul.f32 %v698, 0.999995
    %v701 = vperm.slane %v664, 0
    %v704 = vsel %vm563, %v663, 0
    %706 = vmatpush.msra.mxu0 0.0
    %707 = vmatpush.msra.mxu0 0.0
    %708 = vmatpush.msra.mxu0 0.0
    %709 = vmatpush.msra.mxu0 0.0
    %710 = vmatpush.msra.mxu0 0.0
    %711 = vmatpush.msra.mxu0 0.0
    %712 = vmatpush.msra.mxu0 0.0
    %713 = vmatpush.msra.mxu0 0.0
    %714 = vmatpush.msra.mxu0 0.0
    %715 = vmatpush.msra.mxu0 0.0
    %716 = vmatpush.msra.mxu0 0.0
    %717 = vmatpush.msra.mxu0 0.0
    %718 = vmatpush.msra.mxu0 0.0
    %719 = vmatpush.msra.mxu0 0.0
    %720 = vmatpush.msra.mxu0 0.0
    %721 = vmatpush.msra.mxu0 %v704
    %722 = vmatmul.f32.gmra.mxu0 %v671
    %v723 = vpop.f32.mrf.mxu0
    %v724 = vadd.f32 %v701, %v723
    %725 = vdwg.mxu0
    %vm726 = vcmp.ge.f32.partialorder %v724, 0.0
    %v727 = vmul.f32 %v724, 0.01
    %v728 = vsel %vm726, %v724, %v727
    %v729 = vmul.f32 %v728, 0.999995
    %v731 = vperm.slane %v666, 0
    %v734 = vsel %vm563, %v665, 0
    %736 = vmatpush.msra.mxu0 0.0
    %737 = vmatpush.msra.mxu0 0.0
    %738 = vmatpush.msra.mxu0 0.0
    %739 = vmatpush.msra.mxu0 0.0
    %740 = vmatpush.msra.mxu0 0.0
    %741 = vmatpush.msra.mxu0 0.0
    %742 = vmatpush.msra.mxu0 0.0
    %743 = vmatpush.msra.mxu0 0.0
    %744 = vmatpush.msra.mxu0 0.0
    %745 = vmatpush.msra.mxu0 0.0
    %746 = vmatpush.msra.mxu0 0.0
    %747 = vmatpush.msra.mxu0 0.0
    %748 = vmatpush.msra.mxu0 0.0
    %749 = vmatpush.msra.mxu0 0.0
    %750 = vmatpush.msra.mxu0 0.0
    %751 = vmatpush.msra.mxu0 %v734
    %752 = vmatmul.f32.gmra.mxu0 %v671
    %v753 = vpop.f32.mrf.mxu0
    %v754 = vadd.f32 %v731, %v753
    %755 = vdwg.mxu0
    %vm756 = vcmp.ge.f32.partialorder %v754, 0.0
    %v757 = vmul.f32 %v754, 0.01
    %v758 = vsel %vm756, %v754, %v757
    %v759 = vmul.f32 %v758, 0.999995
    %v761 = vsel %vm344, %v699, 0
    %v764 = vsel %vm344, %v729, 0
    %766 = vmatpush.xpose.msra.mxu0 0.0
    %767 = vmatpush.xpose.msra.mxu0 0.0
    %768 = vmatpush.xpose.msra.mxu0 0.0
    %769 = vmatpush.xpose.msra.mxu0 0.0
    %770 = vmatpush.xpose.msra.mxu0 0.0
    %771 = vmatpush.xpose.msra.mxu0 0.0
    %772 = vmatpush.xpose.msra.mxu0 0.0
    %773 = vmatpush.xpose.msra.mxu0 0.0
    %774 = vmatpush.xpose.msra.mxu0 0.0
    %775 = vmatpush.xpose.msra.mxu0 0.0
    %776 = vmatpush.xpose.msra.mxu0 0.0
    %777 = vmatpush.xpose.msra.mxu0 0.0
    %778 = vmatpush.xpose.msra.mxu0 0.0
    %779 = vmatpush.xpose.msra.mxu0 0.0
    %780 = vmatpush.xpose.msra.mxu0 0.0
    %781 = vmatpush.xpose.msra.mxu0 %v764
    %782 = vmatmul.f32.gmra.mxu0 %v761
    %v783 = vpop.f32.mrf.mxu0
    %v784 = vadd.f32 0.0, %v783
    %785 = vdwg.mxu0
    %v786 = vsel %vm371, %v784, -inf
    %v787 = vrot.slane %v786, 4
    %v788 = vmax.f32 %v786, %v787
    %v789 = vrot.slane %v788, 2
    %v790 = vmax.f32 %v788, %v789
    %v791 = vrot.slane %v790, 1
    %v792 = vmax.f32 %v790, %v791
    %v793 = vsub.f32 %v784, %v792
    %v794 = vmul.f32 %v793, 1.442695
    %v795 = vpow.pop %v794
    %v796 = vsel %vm371, %v795, 0.0
    %v797 = vrot.slane %v796, 4
    %v798 = vadd.f32 %v796, %v797
    %v799 = vrot.slane %v798, 2
    %v800 = vadd.f32 %v798, %v799
    %v801 = vrot.slane %v800, 1
    %v802 = vadd.f32 %v800, %v801
    %v803 = vrcp.pop %v802
    %v804 = vmul.f32 %v795, %v803
    %v806 = vsel %vm371, %v804, 0
    %808 = vmatpush.msra.mxu0 0.0
    %809 = vmatpush.msra.mxu0 0.0
    %810 = vmatpush.msra.mxu0 0.0
    %811 = vmatpush.msra.mxu0 0.0
    %812 = vmatpush.msra.mxu0 0.0
    %813 = vmatpush.msra.mxu0 0.0
    %814 = vmatpush.msra.mxu0 0.0
    %815 = vmatpush.msra.mxu0 0.0
    %816 = vmatpush.msra.mxu0 0.0
    %817 = vmatpush.msra.mxu0 0.0
    %818 = vmatpush.msra.mxu0 0.0
    %819 = vmatpush.msra.mxu0 0.0
    %820 = vmatpush.msra.mxu0 0.0
    %821 = vmatpush.msra.mxu0 0.0
    %822 = vmatpush.msra.mxu0 0.0
    %823 = vmatpush.msra.mxu0 %v759
    %824 = vmatmul.f32.gmra.mxu0 %v806
    %v825 = vpop.f32.mrf.mxu0
    %v826 = vadd.f32 %v660, %v825
    %827 = vdwg.mxu0
    %v828 = vld [vmem:[%s41] sm:$0x3f]
    %v829 = vld [vmem:[%s43] sm:$0x1]
    %v831 = vperm.slane %v829, 0
    %v834 = vsel %vm559, %v826, 0
    %v837 = vsel %vm563, %v828, 0
    %839 = vmatpush.msra.mxu0 0.0
    %840 = vmatpush.msra.mxu0 0.0
    %841 = vmatpush.msra.mxu0 0.0
    %842 = vmatpush.msra.mxu0 0.0
    %843 = vmatpush.msra.mxu0 0.0
    %844 = vmatpush.msra.mxu0 0.0
    %845 = vmatpush.msra.mxu0 0.0
    %846 = vmatpush.msra.mxu0 0.0
    %847 = vmatpush.msra.mxu0 0.0
    %848 = vmatpush.msra.mxu0 0.0
    %849 = vmatpush.msra.mxu0 0.0
    %850 = vmatpush.msra.mxu0 0.0
    %851 = vmatpush.msra.mxu0 0.0
    %852 = vmatpush.msra.mxu0 0.0
    %853 = vmatpush.msra.mxu0 0.0
    %854 = vmatpush.msra.mxu0 %v837
    %855 = vmatmul.f32.gmra.mxu0 %v834
    %v856 = vpop.f32.mrf.mxu0
    %v857 = vadd.f32 %v831, %v856
    %858 = vdwg.mxu0
    %vm859 = vcmp.ge.f32.partialorder %v857, 0.0
    %v860 = vmul.f32 %v857, 0.01
    %v861 = vsel %vm859, %v857, %v860
    %v862 = vld [vmem:[%s45] sm:$0x3f]
    %v863 = vld [vmem:[%s47] sm:$0x1]
    %v865 = vperm.slane %v863, 0
    %v868 = vsel %vm563, %v862, 0
    %870 = vmatpush.msra.mxu0 0.0
    %871 = vmatpush.msra.mxu0 0.0
    %872 = vmatpush.msra.mxu0 0.0
    %873 = vmatpush.msra.mxu0 0.0
    %874 = vmatpush.msra.mxu0 0.0
    %875 = vmatpush.msra.mxu0 0.0
    %876 = vmatpush.msra.mxu0 0.0
    %877 = vmatpush.msra.mxu0 0.0
    %878 = vmatpush.msra.mxu0 0.0
    %879 = vmatpush.msra.mxu0 0.0
    %880 = vmatpush.msra.mxu0 0.0
    %881 = vmatpush.msra.mxu0 0.0
    %882 = vmatpush.msra.mxu0 0.0
    %883 = vmatpush.msra.mxu0 0.0
    %884 = vmatpush.msra.mxu0 0.0
    %885 = vmatpush.msra.mxu0 %v868
    %886 = vmatmul.f32.gmra.mxu0 %v834
    %v887 = vpop.f32.mrf.mxu0
    %v888 = vadd.f32 %v865, %v887
    %889 = vdwg.mxu0
    %v890 = vtanh.pop %v888
    %891 = vxpose.xlu0.b32.start [1/16] %v861, 128
    %892 = vxpose.xlu0.b32.cont [2/16] 0.0, 128
    %893 = vxpose.xlu0.b32.cont [3/16] 0.0, 128
    %894 = vxpose.xlu0.b32.cont [4/16] 0.0, 128
    %895 = vxpose.xlu0.b32.cont [5/16] 0.0, 128
    %896 = vxpose.xlu0.b32.cont [6/16] 0.0, 128
    %897 = vxpose.xlu0.b32.cont [7/16] 0.0, 128
    %898 = vxpose.xlu0.b32.cont [8/16] 0.0, 128
    %899 = vxpose.xlu0.b32.cont [9/16] 0.0, 128
    %900 = vxpose.xlu0.b32.cont [10/16] 0.0, 128
    %901 = vxpose.xlu0.b32.cont [11/16] 0.0, 128
    %902 = vxpose.xlu0.b32.cont [12/16] 0.0, 128
    %903 = vxpose.xlu0.b32.cont [13/16] 0.0, 128
    %904 = vxpose.xlu0.b32.cont [14/16] 0.0, 128
    %905 = vxpose.xlu0.b32.cont [15/16] 0.0, 128
    %906 = vxpose.xlu0.b32.end [16/16] 0.0, 128
    %v907 = vpop.trf.xlu0
    %v908 = vpop.trf.xlu0
    %v909 = vpop.trf.xlu0
    %v910 = vpop.trf.xlu0
    %v911 = vpop.trf.xlu0
    %v912 = vpop.trf.xlu0
    %v913 = vpop.trf.xlu0
    %v914 = vpop.trf.xlu0
    %v915 = vpop.trf.xlu0
    %v916 = vpop.trf.xlu0
    %v917 = vpop.trf.xlu0
    %v918 = vpop.trf.xlu0
    %v919 = vpop.trf.xlu0
    %v920 = vpop.trf.xlu0
    %v921 = vpop.trf.xlu0
    %v922 = vpop.trf.xlu0
    %v924 = vsel %vm371, %v907, 0
    %v927 = vsel %vm371, %v908, 0
    %929 = vmatpush.msra.mxu0 0.0
    %930 = vmatpush.msra.mxu0 0.0
    %931 = vmatpush.msra.mxu0 0.0
    %932 = vmatpush.msra.mxu0 0.0
    %933 = vmatpush.msra.mxu0 0.0
    %934 = vmatpush.msra.mxu0 0.0
    %935 = vmatpush.msra.mxu0 0.0
    %936 = vmatpush.msra.mxu0 0.0
    %937 = vmatpush.msra.mxu0 0.0
    %938 = vmatpush.msra.mxu0 0.0
    %939 = vmatpush.msra.mxu0 0.0
    %940 = vmatpush.msra.mxu0 0.0
    %941 = vmatpush.msra.mxu0 0.0
    %942 = vmatpush.msra.mxu0 0.0
    %943 = vmatpush.msra.mxu0 0.0
    %944 = vmatpush.msra.mxu0 %v890
    %945 = vmatmul.f32.gmra.mxu0 %v924
    %v946 = vpop.f32.mrf.mxu0
    %v947 = vadd.f32 0.0, %v946
    %948 = vmatmul.f32.gmra.mxu0 %v927
    %v949 = vpop.f32.mrf.mxu0
    %v950 = vadd.f32 0.0, %v949
    %951 = vdwg.mxu0
    %v952 = vld [vmem:[%s49] sm:$0xff]
    %v953 = vld [vmem:[%s49 + $0x8] sm:$0xff]
    %v954 = vld [vmem:[%s51] sm:$0x1]
    %v956 = vperm.slane %v954, 0
    %v959 = vsel %vm344, %v947, 0
    %v962 = vsel %vm344, %v950, 0
    %964 = vmatpush.msra.mxu0 0.0
    %965 = vmatpush.msra.mxu0 0.0
    %966 = vmatpush.msra.mxu0 0.0
    %967 = vmatpush.msra.mxu0 0.0
    %968 = vmatpush.msra.mxu0 0.0
    %969 = vmatpush.msra.mxu0 0.0
    %970 = vmatpush.msra.mxu0 0.0
    %971 = vmatpush.msra.mxu0 0.0
    %972 = vmatpush.msra.mxu0 0.0
    %973 = vmatpush.msra.mxu0 0.0
    %974 = vmatpush.msra.mxu0 0.0
    %975 = vmatpush.msra.mxu0 0.0
    %976 = vmatpush.msra.mxu0 0.0
    %977 = vmatpush.msra.mxu0 0.0
    %978 = vmatpush.msra.mxu0 %v953
    %979 = vmatpush.msra.mxu0 %v952
    %980 = vmatmul.f32.gmra.mxu0 %v959
    %v981 = vpop.f32.mrf.mxu0
    %v982 = vadd.f32 %v956, %v981
    %983 = vmatmul.f32.gmra.mxu0 %v962
    %v984 = vpop.f32.mrf.mxu0
    %v985 = vadd.f32 %v956, %v984
    %986 = vdwg.mxu0
    %vm987 = vcmp.ge.f32.partialorder %v982, 0.0
    %vm988 = vcmp.ge.f32.partialorder %v985, 0.0
    %v989 = vmul.f32 %v982, 0.01
    %v990 = vmul.f32 %v985, 0.01
    %v991 = vsel %vm987, %v982, %v989
    %v992 = vsel %vm988, %v985, %v990
    %v993 = vld [vmem:[%s53] sm:$0xff]
    %v994 = vld [vmem:[%s53 + $0x8] sm:$0xff]
    %v995 = vld [vmem:[#allocation2] sm:$0x1]
    %997 = vset.pattern.permute.xlu0 0
    %998 = vperm.xlu0 %997, %v995
    %v999 = vpop.permute.xlu0 %998
    %v1001 = vperm.slane %v999, 0
    %1002 = vxpose.xlu0.b32.start [1/16] %v993, 128
    %1003 = vxpose.xlu0.b32.cont [2/16] %v994, 128
    %1004 = vxpose.xlu0.b32.cont [3/16] 0.0, 128
    %1005 = vxpose.xlu0.b32.cont [4/16] 0.0, 128
    %1006 = vxpose.xlu0.b32.cont [5/16] 0.0, 128
    %1007 = vxpose.xlu0.b32.cont [6/16] 0.0, 128
    %1008 = vxpose.xlu0.b32.cont [7/16] 0.0, 128
    %1009 = vxpose.xlu0.b32.cont [8/16] 0.0, 128
    %1010 = vxpose.xlu0.b32.cont [9/16] 0.0, 128
    %1011 = vxpose.xlu0.b32.cont [10/16] 0.0, 128
    %1012 = vxpose.xlu0.b32.cont [11/16] 0.0, 128
    %1013 = vxpose.xlu0.b32.cont [12/16] 0.0, 128
    %1014 = vxpose.xlu0.b32.cont [13/16] 0.0, 128
    %1015 = vxpose.xlu0.b32.cont [14/16] 0.0, 128
    %1016 = vxpose.xlu0.b32.cont [15/16] 0.0, 128
    %1017 = vxpose.xlu0.b32.end [16/16] 0.0, 128
    %v1018 = vpop.trf.xlu0
    %v1019 = vpop.trf.xlu0
    %v1020 = vpop.trf.xlu0
    %v1021 = vpop.trf.xlu0
    %v1022 = vpop.trf.xlu0
    %v1023 = vpop.trf.xlu0
    %v1024 = vpop.trf.xlu0
    %v1025 = vpop.trf.xlu0
    %v1026 = vpop.trf.xlu0
    %v1027 = vpop.trf.xlu0
    %v1028 = vpop.trf.xlu0
    %v1029 = vpop.trf.xlu0
    %v1030 = vpop.trf.xlu0
    %v1031 = vpop.trf.xlu0
    %v1032 = vpop.trf.xlu0
    %v1033 = vpop.trf.xlu0
    %v1035 = vsel %vm344, %v1018, 0
    %1037 = vmatpush.msra.mxu0 0.0
    %1038 = vmatpush.msra.mxu0 0.0
    %1039 = vmatpush.msra.mxu0 0.0
    %1040 = vmatpush.msra.mxu0 0.0
    %1041 = vmatpush.msra.mxu0 0.0
    %1042 = vmatpush.msra.mxu0 0.0
    %1043 = vmatpush.msra.mxu0 0.0
    %1044 = vmatpush.msra.mxu0 0.0
    %1045 = vmatpush.msra.mxu0 0.0
    %1046 = vmatpush.msra.mxu0 0.0
    %1047 = vmatpush.msra.mxu0 0.0
    %1048 = vmatpush.msra.mxu0 0.0
    %1049 = vmatpush.msra.mxu0 0.0
    %1050 = vmatpush.msra.mxu0 0.0
    %1051 = vmatpush.msra.mxu0 %v992
    %1052 = vmatpush.msra.mxu0 %v991
    %1053 = vmatmul.f32.gmra.mxu0 %v1035
    %v1054 = vpop.f32.mrf.mxu0
    %v1055 = vadd.f32 %v1001, %v1054
    %1056 = vdwg.mxu0
    %v1057 = vlaneseq
    %v1058 = vshrl.u32 %v1057, 7
    %v1059 = vlaneseq
    %v1060 = vand.u32 %v1059, 127
    %vm1061 = vcmp.eq.s32.totalorder %v1058, %v1060
    %v1062 = vsel %vm1061, 1, 0
    %v1063 = vcvt.s32.f32 %v1062
    %v1064 = vperm.slane %v1055, 0
    %v1065 = vmul.f32 %v1064, %v1063
    %v1066 = vsel %vm539, %v1065, 0.0
    %1067 = vadd.xlane.f32.xlu0 %v1066
    %v1068 = vpop.xlane.xlu0 %1067
    %vm1069 = vcmp.gt.f32.partialorder %v1064, %v1068
    %v1070 = vsel %vm1069, 1, 0
    %v1071 = vcvt.s32.f32 %v1070
    %vm1072 = vcmp.eq.f32.partialorder %v1064, %v1068
    %vm1073 = vcmp.lt.s32.totalorder %v1060, %v1058
    %vm1074 = vmand %vm1072, %vm1073
    %v1075 = vsel %vm1074, 1, 0
    %v1076 = vcvt.s32.f32 %v1075
    %v1077 = vadd.f32 %v1071, %v1076
    %v1078 = vsel %vm539, %v1077, 0.0
    %1079 = vadd.xlane.f32.xlu0 %v1078
    %v1080 = vpop.xlane.xlu0 %1079
    %v1081 = vcvt.s32.f32 %v1060
    %vm1082 = vcmp.eq.f32.partialorder %v1080, %v1081
    %v1083 = vsel %vm1082, 1, 0
    %v1084 = vcvt.s32.f32 %v1083
    %v1086 = vsel %vm563, %v1084, 0
    %1088 = vmatpush.msra.mxu0 0.0
    %1089 = vmatpush.msra.mxu0 0.0
    %1090 = vmatpush.msra.mxu0 0.0
    %1091 = vmatpush.msra.mxu0 0.0
    %1092 = vmatpush.msra.mxu0 0.0
    %1093 = vmatpush.msra.mxu0 0.0
    %1094 = vmatpush.msra.mxu0 0.0
    %1095 = vmatpush.msra.mxu0 0.0
    %1096 = vmatpush.msra.mxu0 0.0
    %1097 = vmatpush.msra.mxu0 0.0
    %1098 = vmatpush.msra.mxu0 0.0
    %1099 = vmatpush.msra.mxu0 0.0
    %1100 = vmatpush.msra.mxu0 0.0
    %1101 = vmatpush.msra.mxu0 0.0
    %1102 = vmatpush.msra.mxu0 0.0
    %1103 = vmatpush.msra.mxu0 %v1086
    %1104 = vmatmul.f32.gmra.mxu0 %v834
    %v1105 = vpop.f32.mrf.mxu0
    %v1106 = vadd.f32 0.0, %v1105
    %1107 = vdwg.mxu0
    %vm1108 = vcmask 31744
    %v1109 = vsel %vm1108, %v1106, -inf
    %1110 = vmax.xlane.f32.xlu0 %v1109
    %v1111 = vpop.xlane.xlu0 %1110
    %v1112 = vsub.f32 %v1106, %v1111
    %v1113 = vmul.f32 %v1112, 1.442695
    %v1114 = vpow.pop %v1113
    %v1115 = vsel %vm1108, %v1114, 0.0
    %1116 = vadd.xlane.f32.xlu0 %v1115
    %v1117 = vpop.xlane.xlu0 %1116
    %v1118 = vrcp.pop %v1117
    %v1119 = vmul.f32 %v1114, %v1118
    %v1120 = vld [vmem:[%s57] sm:$0xff]
    %v1121 = vld [vmem:[%s57 + $0x8] sm:$0xff]
    %v1122 = vld [vmem:[%s57 + $0x10] sm:$0xff]
    %v1123 = vld [vmem:[%s57 + $0x18] sm:$0xff]
    %v1124 = vld [vmem:[%s59] sm:$0xf]
    %v1126 = vsel %vm1108, %v1119, 0
    %vm1128 = vcmask 1043456
    %v1130 = vsel %vm1128, %v1124, 0
    %1132 = vmatpush.msra.mxu0 0.0
    %1133 = vmatpush.msra.mxu0 0.0
    %1134 = vmatpush.msra.mxu0 0.0
    %1135 = vmatpush.msra.mxu0 0.0
    %1136 = vmatpush.msra.mxu0 0.0
    %1137 = vmatpush.msra.mxu0 0.0
    %1138 = vmatpush.msra.mxu0 0.0
    %1139 = vmatpush.msra.mxu0 0.0
    %1140 = vmatpush.msra.mxu0 0.0
    %1141 = vmatpush.msra.mxu0 0.0
    %1142 = vmatpush.msra.mxu0 0.0
    %1143 = vmatpush.msra.mxu0 0.0
    %1144 = vmatpush.msra.mxu0 0.0
    %1145 = vmatpush.msra.mxu0 0.0
    %1146 = vmatpush.msra.mxu0 0.0
    %1147 = vmatpush.msra.mxu0 %v1130
    %1148 = vmatmul.f32.gmra.mxu0 %v1126
    %v1149 = vpop.f32.mrf.mxu0
    %v1150 = vadd.f32 0.0, %v1149
    %1151 = vdwg.mxu0
    %1152 = vmatpush.msra.mxu0 0.0
    %1153 = vmatpush.msra.mxu0 0.0
    %1154 = vmatpush.msra.mxu0 0.0
    %1155 = vmatpush.msra.mxu0 0.0
    %1156 = vmatpush.msra.mxu0 0.0
    %1157 = vmatpush.msra.mxu0 0.0
    %1158 = vmatpush.msra.mxu0 0.0
    %1159 = vmatpush.msra.mxu0 0.0
    %1160 = vmatpush.msra.mxu0 0.0
    %1161 = vmatpush.msra.mxu0 0.0
    %1162 = vmatpush.msra.mxu0 0.0
    %1163 = vmatpush.msra.mxu0 0.0
    %1164 = vmatpush.msra.mxu0 %v1123
    %1165 = vmatpush.msra.mxu0 %v1122
    %1166 = vmatpush.msra.mxu0 %v1121
    %1167 = vmatpush.msra.mxu0 %v1120
    %1168 = vmatmul.f32.gmra.mxu0 %v264
    %v1169 = vpop.f32.mrf.mxu0
    %v1170 = vadd.f32 %v1150, %v1169
    %1171 = vdwg.mxu0
    %v1172 = vld [vmem:[%s61] sm:$0x1]
    %v1174 = vperm.slane %v1172, 0
    %v1176 = vadd.f32 %v1170, %v1174
    %vm1177 = vcmp.ge.f32.partialorder %v1176, 0.0
    %v1178 = vmul.f32 %v1176, 0.01
    %v1179 = vsel %vm1177, %v1176, %v1178
    %v1180 = vld [vmem:[%s63] sm:$0xff]
    %v1181 = vld [vmem:[%s63 + $0x8] sm:$0xff]
    %v1182 = vld [vmem:[%s63 + $0x10] sm:$0xff]
    %v1183 = vld [vmem:[%s63 + $0x18] sm:$0xff]
    %v1184 = vld [vmem:[%s65] sm:$0x1]
    %v1186 = vperm.slane %v1184, 0
    %v1189 = vsel %vm262, %v1179, 0
    %1191 = vmatpush.msra.mxu0 0.0
    %1192 = vmatpush.msra.mxu0 0.0
    %1193 = vmatpush.msra.mxu0 0.0
    %1194 = vmatpush.msra.mxu0 0.0
    %1195 = vmatpush.msra.mxu0 0.0
    %1196 = vmatpush.msra.mxu0 0.0
    %1197 = vmatpush.msra.mxu0 0.0
    %1198 = vmatpush.msra.mxu0 0.0
    %1199 = vmatpush.msra.mxu0 0.0
    %1200 = vmatpush.msra.mxu0 0.0
    %1201 = vmatpush.msra.mxu0 0.0
    %1202 = vmatpush.msra.mxu0 0.0
    %1203 = vmatpush.msra.mxu0 %v1183
    %1204 = vmatpush.msra.mxu0 %v1182
    %1205 = vmatpush.msra.mxu0 %v1181
    %1206 = vmatpush.msra.mxu0 %v1180
    %1207 = vmatmul.f32.gmra.mxu0 %v1189
    %v1208 = vpop.f32.mrf.mxu0
    %v1209 = vadd.f32 %v1186, %v1208
    %1210 = vdwg.mxu0
    %vm1211 = vcmp.ge.f32.partialorder %v1209, 0.0
    %v1212 = vmul.f32 %v1209, 0.01
    %v1213 = vsel %vm1211, %v1209, %v1212
    %v1214 = vld [vmem:[%s67] sm:$0xff]
    %v1215 = vld [vmem:[%s67 + $0x8] sm:$0xff]
    %v1216 = vld [vmem:[%s67 + $0x10] sm:$0xff]
    %v1217 = vld [vmem:[%s67 + $0x18] sm:$0xff]
    %v1218 = vld [vmem:[%s69] sm:$0x1]
    %v1219 = vld [vmem:[%s71] sm:$0xff]
    %v1220 = vld [vmem:[%s71 + $0x8] sm:$0xff]
    %v1221 = vld [vmem:[%s71 + $0x10] sm:$0xff]
    %v1222 = vld [vmem:[%s71 + $0x18] sm:$0xff]
    %v1223 = vld [vmem:[%s73] sm:$0x1]
    %v1224 = vld [vmem:[%s75] sm:$0xff]
    %v1225 = vld [vmem:[%s75 + $0x8] sm:$0xff]
    %v1226 = vld [vmem:[#allocation3] sm:$0x1]
    %v1228 = vperm.slane %v1218, 0
    %v1231 = vsel %vm262, %v1213, 0
    %1233 = vmatpush.msra.mxu0 0.0
    %1234 = vmatpush.msra.mxu0 0.0
    %1235 = vmatpush.msra.mxu0 0.0
    %1236 = vmatpush.msra.mxu0 0.0
    %1237 = vmatpush.msra.mxu0 0.0
    %1238 = vmatpush.msra.mxu0 0.0
    %1239 = vmatpush.msra.mxu0 0.0
    %1240 = vmatpush.msra.mxu0 0.0
    %1241 = vmatpush.msra.mxu0 0.0
    %1242 = vmatpush.msra.mxu0 0.0
    %1243 = vmatpush.msra.mxu0 0.0
    %1244 = vmatpush.msra.mxu0 0.0
    %1245 = vmatpush.msra.mxu0 %v1217
    %1246 = vmatpush.msra.mxu0 %v1216
    %1247 = vmatpush.msra.mxu0 %v1215
    %1248 = vmatpush.msra.mxu0 %v1214
    %1249 = vmatmul.f32.gmra.mxu0 %v1231
    %v1250 = vpop.f32.mrf.mxu0
    %v1251 = vadd.f32 %v1228, %v1250
    %1252 = vdwg.mxu0
    %v1253 = vtanh.pop %v1251
    %v1255 = vperm.slane %v1223, 0
    %1257 = vmatpush.msra.mxu0 0.0
    %1258 = vmatpush.msra.mxu0 0.0
    %1259 = vmatpush.msra.mxu0 0.0
    %1260 = vmatpush.msra.mxu0 0.0
    %1261 = vmatpush.msra.mxu0 0.0
    %1262 = vmatpush.msra.mxu0 0.0
    %1263 = vmatpush.msra.mxu0 0.0
    %1264 = vmatpush.msra.mxu0 0.0
    %1265 = vmatpush.msra.mxu0 0.0
    %1266 = vmatpush.msra.mxu0 0.0
    %1267 = vmatpush.msra.mxu0 0.0
    %1268 = vmatpush.msra.mxu0 0.0
    %1269 = vmatpush.msra.mxu0 %v1222
    %1270 = vmatpush.msra.mxu0 %v1221
    %1271 = vmatpush.msra.mxu0 %v1220
    %1272 = vmatpush.msra.mxu0 %v1219
    %1273 = vmatmul.f32.gmra.mxu0 %v1231
    %v1274 = vpop.f32.mrf.mxu0
    %v1275 = vadd.f32 %v1255, %v1274
    %1276 = vdwg.mxu0
    %vm1277 = vcmp.ge.f32.partialorder %v1275, 0.0
    %v1278 = vmul.f32 %v1275, 0.01
    %v1279 = vsel %vm1277, %v1275, %v1278
    %v1280 = vmul.f32 %v1253, %v1279
    %v1282 = vperm.slane %v1226, 0
    %v1285 = vsel %vm344, %v1280, 0
    %1287 = vmatpush.msra.mxu0 0.0
    %1288 = vmatpush.msra.mxu0 0.0
    %1289 = vmatpush.msra.mxu0 0.0
    %1290 = vmatpush.msra.mxu0 0.0
    %1291 = vmatpush.msra.mxu0 0.0
    %1292 = vmatpush.msra.mxu0 0.0
    %1293 = vmatpush.msra.mxu0 0.0
    %1294 = vmatpush.msra.mxu0 0.0
    %1295 = vmatpush.msra.mxu0 0.0
    %1296 = vmatpush.msra.mxu0 0.0
    %1297 = vmatpush.msra.mxu0 0.0
    %1298 = vmatpush.msra.mxu0 0.0
    %1299 = vmatpush.msra.mxu0 0.0
    %1300 = vmatpush.msra.mxu0 0.0
    %1301 = vmatpush.msra.mxu0 %v1225
    %1302 = vmatpush.msra.mxu0 %v1224
    %1303 = vmatmul.f32.gmra.mxu0 %v1285
    %v1304 = vpop.f32.mrf.mxu0
    %v1305 = vadd.f32 %v1282, %v1304
    %1306 = vdwg.mxu0
    %vm1307 = vcmp.ge.f32.partialorder %v1305, 0.0
    %v1308 = vmul.f32 %v1305, 0.01
    %v1309 = vsel %vm1307, %v1305, %v1308
    %vm1310 = vcmask 7168
    %v1311 = vsel %vm1310, %v1309, -inf
    %v1312 = vrot.slane %v1311, 4
    %v1313 = vmax.f32 %v1311, %v1312
    %v1314 = vrot.slane %v1313, 2
    %v1315 = vmax.f32 %v1313, %v1314
    %v1316 = vrot.slane %v1315, 1
    %v1317 = vmax.f32 %v1315, %v1316
    %v1318 = vsub.f32 %v1309, %v1317
    %v1319 = vmul.f32 %v1318, 1.442695
    %v1320 = vpow.pop %v1319
    %v1321 = vsel %vm1310, %v1320, 0.0
    %v1322 = vrot.slane %v1321, 4
    %v1323 = vadd.f32 %v1321, %v1322
    %v1324 = vrot.slane %v1323, 2
    %v1325 = vadd.f32 %v1323, %v1324
    %v1326 = vrot.slane %v1325, 1
    %v1327 = vadd.f32 %v1325, %v1326
    %v1328 = vrcp.pop %v1327
    %v1329 = vmul.f32 %v1320, %v1328
    %1330 = vxpose.xlu0.b32.start [1/16] %v1329, 128
    %1331 = vxpose.xlu0.b32.cont [2/16] 0.0, 128
    %1332 = vxpose.xlu0.b32.cont [3/16] 0.0, 128
    %1333 = vxpose.xlu0.b32.cont [4/16] 0.0, 128
    %1334 = vxpose.xlu0.b32.cont [5/16] 0.0, 128
    %1335 = vxpose.xlu0.b32.cont [6/16] 0.0, 128
    %1336 = vxpose.xlu0.b32.cont [7/16] 0.0, 128
    %1337 = vxpose.xlu0.b32.cont [8/16] 0.0, 128
    %1338 = vxpose.xlu0.b32.cont [9/16] 0.0, 128
    %1339 = vxpose.xlu0.b32.cont [10/16] 0.0, 128
    %1340 = vxpose.xlu0.b32.cont [11/16] 0.0, 128
    %1341 = vxpose.xlu0.b32.cont [12/16] 0.0, 128
    %1342 = vxpose.xlu0.b32.cont [13/16] 0.0, 128
    %1343 = vxpose.xlu0.b32.cont [14/16] 0.0, 128
    %1344 = vxpose.xlu0.b32.cont [15/16] 0.0, 128
    %1345 = vxpose.xlu0.b32.end [16/16] 0.0, 128
    %v1346 = vpop.trf.xlu0
    %v1347 = vpop.trf.xlu0
    %v1348 = vpop.trf.xlu0
    %v1349 = vpop.trf.xlu0
    %v1350 = vpop.trf.xlu0
    %v1351 = vpop.trf.xlu0
    %v1352 = vpop.trf.xlu0
    %v1353 = vpop.trf.xlu0
    %v1354 = vpop.trf.xlu0
    %v1355 = vpop.trf.xlu0
    %v1356 = vpop.trf.xlu0
    %v1357 = vpop.trf.xlu0
    %v1358 = vpop.trf.xlu0
    %v1359 = vpop.trf.xlu0
    %v1360 = vpop.trf.xlu0
    %v1361 = vpop.trf.xlu0
    %v1363 = vsel %vm371, %v1346, 0
    %1365 = vmatpush.msra.mxu0 0.0
    %1366 = vmatpush.msra.mxu0 0.0
    %1367 = vmatpush.msra.mxu0 0.0
    %1368 = vmatpush.msra.mxu0 0.0
    %1369 = vmatpush.msra.mxu0 0.0
    %1370 = vmatpush.msra.mxu0 0.0
    %1371 = vmatpush.msra.mxu0 0.0
    %1372 = vmatpush.msra.mxu0 0.0
    %1373 = vmatpush.msra.mxu0 0.0
    %1374 = vmatpush.msra.mxu0 0.0
    %1375 = vmatpush.msra.mxu0 0.0
    %1376 = vmatpush.msra.mxu0 0.0
    %1377 = vmatpush.msra.mxu0 0.0
    %1378 = vmatpush.msra.mxu0 0.0
    %1379 = vmatpush.msra.mxu0 0.0
    %1380 = vmatpush.msra.mxu0 %v1213
    %1381 = vmatmul.f32.gmra.mxu0 %v1363
    %v1382 = vpop.f32.mrf.mxu0
    %v1383 = vadd.f32 0.0, %v1382
    %1384 = vdwg.mxu0
    %v1385 = vld [vmem:[%s79] sm:$0xff]
    %v1386 = vld [vmem:[%s79 + $0x8] sm:$0xff]
    %v1387 = vld [vmem:[%s79 + $0x10] sm:$0xff]
    %v1388 = vld [vmem:[%s79 + $0x18] sm:$0xff]
    %v1389 = vld [vmem:[%s81] sm:$0x1]
    %v1391 = vsel %vm262, %v1383, 0
    %1393 = vmatpush.msra.mxu0 0.0
    %1394 = vmatpush.msra.mxu0 0.0
    %1395 = vmatpush.msra.mxu0 0.0
    %1396 = vmatpush.msra.mxu0 0.0
    %1397 = vmatpush.msra.mxu0 0.0
    %1398 = vmatpush.msra.mxu0 0.0
    %1399 = vmatpush.msra.mxu0 0.0
    %1400 = vmatpush.msra.mxu0 0.0
    %1401 = vmatpush.msra.mxu0 0.0
    %1402 = vmatpush.msra.mxu0 0.0
    %1403 = vmatpush.msra.mxu0 0.0
    %1404 = vmatpush.msra.mxu0 0.0
    %1405 = vmatpush.msra.mxu0 %v1388
    %1406 = vmatpush.msra.mxu0 %v1387
    %1407 = vmatpush.msra.mxu0 %v1386
    %1408 = vmatpush.msra.mxu0 %v1385
    %1409 = vmatmul.f32.gmra.mxu0 %v1391
    %v1410 = vpop.f32.mrf.mxu0
    %v1411 = vadd.f32 %v1389, %v1410
    %1412 = vdwg.mxu0
    %vm1413 = vcmp.ge.f32.partialorder %v1411, 0.0
    %v1414 = vmul.f32 %v1411, 0.01
    %v1415 = vsel %vm1413, %v1411, %v1414
    %v1416 = vld [vmem:[%s83] sm:$0xff]
    %v1417 = vld [vmem:[%s83 + $0x8] sm:$0xff]
    %v1418 = vld [vmem:[%s83 + $0x10] sm:$0xff]
    %v1419 = vld [vmem:[%s83 + $0x18] sm:$0xff]
    %v1420 = vld [vmem:[%s85] sm:$0xff]
    %v1421 = vld [vmem:[%s85 + $0x8] sm:$0xff]
    %v1422 = vld [vmem:[%s85 + $0x10] sm:$0xff]
    %v1423 = vld [vmem:[%s85 + $0x18] sm:$0xff]
    %v1425 = vsel %vm262, %v1415, 0
    %1427 = vmatpush.msra.mxu0 0.0
    %1428 = vmatpush.msra.mxu0 0.0
    %1429 = vmatpush.msra.mxu0 0.0
    %1430 = vmatpush.msra.mxu0 0.0
    %1431 = vmatpush.msra.mxu0 0.0
    %1432 = vmatpush.msra.mxu0 0.0
    %1433 = vmatpush.msra.mxu0 0.0
    %1434 = vmatpush.msra.mxu0 0.0
    %1435 = vmatpush.msra.mxu0 0.0
    %1436 = vmatpush.msra.mxu0 0.0
    %1437 = vmatpush.msra.mxu0 0.0
    %1438 = vmatpush.msra.mxu0 0.0
    %1439 = vmatpush.msra.mxu0 %v1423
    %1440 = vmatpush.msra.mxu0 %v1422
    %1441 = vmatpush.msra.mxu0 %v1421
    %1442 = vmatpush.msra.mxu0 %v1420
    %1443 = vmatmul.f32.gmra.mxu0 %v1425
    %v1444 = vpop.f32.mrf.mxu0
    %v1445 = vadd.f32 0.0, %v1444
    %1446 = vdwg.mxu0
    %v1447 = vperm.slane %v1445, 0
    %1448 = vmatpush.msra.mxu0 0.0
    %1449 = vmatpush.msra.mxu0 0.0
    %1450 = vmatpush.msra.mxu0 0.0
    %1451 = vmatpush.msra.mxu0 0.0
    %1452 = vmatpush.msra.mxu0 0.0
    %1453 = vmatpush.msra.mxu0 0.0
    %1454 = vmatpush.msra.mxu0 0.0
    %1455 = vmatpush.msra.mxu0 0.0
    %1456 = vmatpush.msra.mxu0 0.0
    %1457 = vmatpush.msra.mxu0 0.0
    %1458 = vmatpush.msra.mxu0 0.0
    %1459 = vmatpush.msra.mxu0 0.0
    %1460 = vmatpush.msra.mxu0 %v1419
    %1461 = vmatpush.msra.mxu0 %v1418
    %1462 = vmatpush.msra.mxu0 %v1417
    %1463 = vmatpush.msra.mxu0 %v1416
    %1464 = vmatmul.f32.gmra.mxu0 %v1189
    %v1465 = vpop.f32.mrf.mxu0
    %v1466 = vadd.f32 %v1447, %v1465
    %1467 = vdwg.mxu0
    %v1468 = vld [vmem:[%s87] sm:$0x1]
    %v1470 = vperm.slane %v1468, 0
    %v1472 = vadd.f32 %v1466, %v1470
    %vm1473 = vcmp.ge.f32.partialorder %v1472, 0.0
    %v1474 = vmul.f32 %v1472, 0.01
    %v1475 = vsel %vm1473, %v1472, %v1474
    %v1476 = vld [vmem:[%s89] sm:$0xff]
    %v1477 = vld [vmem:[%s89 + $0x8] sm:$0xff]
    %v1478 = vld [vmem:[%s89 + $0x10] sm:$0xff]
    %v1479 = vld [vmem:[%s89 + $0x18] sm:$0xff]
    %v1480 = vld [vmem:[%s91] sm:$0x1]
    %v1481 = vld [vmem:[%s93] sm:$0xff]
    %v1482 = vld [vmem:[%s93 + $0x8] sm:$0xff]
    %v1483 = vld [vmem:[%s93 + $0x10] sm:$0xff]
    %v1484 = vld [vmem:[%s93 + $0x18] sm:$0xff]
    %v1485 = vld [vmem:[%s95] sm:$0x1]
    %v1486 = vld [vmem:[%s97] sm:$0xff]
    %v1487 = vld [vmem:[%s97 + $0x8] sm:$0xff]
    %v1488 = vld [vmem:[#allocation4] sm:$0x1]
    %v1490 = vperm.slane %v1480, 0
    %v1493 = vsel %vm262, %v1475, 0
    %1495 = vmatpush.msra.mxu0 0.0
    %1496 = vmatpush.msra.mxu0 0.0
    %1497 = vmatpush.msra.mxu0 0.0
    %1498 = vmatpush.msra.mxu0 0.0
    %1499 = vmatpush.msra.mxu0 0.0
    %1500 = vmatpush.msra.mxu0 0.0
    %1501 = vmatpush.msra.mxu0 0.0
    %1502 = vmatpush.msra.mxu0 0.0
    %1503 = vmatpush.msra.mxu0 0.0
    %1504 = vmatpush.msra.mxu0 0.0
    %1505 = vmatpush.msra.mxu0 0.0
    %1506 = vmatpush.msra.mxu0 0.0
    %1507 = vmatpush.msra.mxu0 %v1479
    %1508 = vmatpush.msra.mxu0 %v1478
    %1509 = vmatpush.msra.mxu0 %v1477
    %1510 = vmatpush.msra.mxu0 %v1476
    %1511 = vmatmul.f32.gmra.mxu0 %v1493
    %v1512 = vpop.f32.mrf.mxu0
    %v1513 = vadd.f32 %v1490, %v1512
    %1514 = vdwg.mxu0
    %v1515 = vtanh.pop %v1513
    %v1517 = vperm.slane %v1485, 0
    %1519 = vmatpush.msra.mxu0 0.0
    %1520 = vmatpush.msra.mxu0 0.0
    %1521 = vmatpush.msra.mxu0 0.0
    %1522 = vmatpush.msra.mxu0 0.0
    %1523 = vmatpush.msra.mxu0 0.0
    %1524 = vmatpush.msra.mxu0 0.0
    %1525 = vmatpush.msra.mxu0 0.0
    %1526 = vmatpush.msra.mxu0 0.0
    %1527 = vmatpush.msra.mxu0 0.0
    %1528 = vmatpush.msra.mxu0 0.0
    %1529 = vmatpush.msra.mxu0 0.0
    %1530 = vmatpush.msra.mxu0 0.0
    %1531 = vmatpush.msra.mxu0 %v1484
    %1532 = vmatpush.msra.mxu0 %v1483
    %1533 = vmatpush.msra.mxu0 %v1482
    %1534 = vmatpush.msra.mxu0 %v1481
    %1535 = vmatmul.f32.gmra.mxu0 %v1493
    %v1536 = vpop.f32.mrf.mxu0
    %v1537 = vadd.f32 %v1517, %v1536
    %1538 = vdwg.mxu0
    %vm1539 = vcmp.ge.f32.partialorder %v1537, 0.0
    %v1540 = vmul.f32 %v1537, 0.01
    %v1541 = vsel %vm1539, %v1537, %v1540
    %v1542 = vmul.f32 %v1515, %v1541
    %v1544 = vperm.slane %v1488, 0
    %v1547 = vsel %vm344, %v1542, 0
    %1549 = vmatpush.msra.mxu0 0.0
    %1550 = vmatpush.msra.mxu0 0.0
    %1551 = vmatpush.msra.mxu0 0.0
    %1552 = vmatpush.msra.mxu0 0.0
    %1553 = vmatpush.msra.mxu0 0.0
    %1554 = vmatpush.msra.mxu0 0.0
    %1555 = vmatpush.msra.mxu0 0.0
    %1556 = vmatpush.msra.mxu0 0.0
    %1557 = vmatpush.msra.mxu0 0.0
    %1558 = vmatpush.msra.mxu0 0.0
    %1559 = vmatpush.msra.mxu0 0.0
    %1560 = vmatpush.msra.mxu0 0.0
    %1561 = vmatpush.msra.mxu0 0.0
    %1562 = vmatpush.msra.mxu0 0.0
    %1563 = vmatpush.msra.mxu0 %v1487
    %1564 = vmatpush.msra.mxu0 %v1486
    %1565 = vmatmul.f32.gmra.mxu0 %v1547
    %v1566 = vpop.f32.mrf.mxu0
    %v1567 = vadd.f32 %v1544, %v1566
    %1568 = vdwg.mxu0
    %vm1569 = vcmp.ge.f32.partialorder %v1567, 0.0
    %v1570 = vmul.f32 %v1567, 0.01
    %v1571 = vsel %vm1569, %v1567, %v1570
    %v1572 = vsel %vm1310, %v1571, -inf
    %v1573 = vrot.slane %v1572, 4
    %v1574 = vmax.f32 %v1572, %v1573
    %v1575 = vrot.slane %v1574, 2
    %v1576 = vmax.f32 %v1574, %v1575
    %v1577 = vrot.slane %v1576, 1
    %v1578 = vmax.f32 %v1576, %v1577
    %v1579 = vsub.f32 %v1571, %v1578
    %v1580 = vmul.f32 %v1579, 1.442695
    %v1581 = vpow.pop %v1580
    %v1582 = vsel %vm1310, %v1581, 0.0
    %v1583 = vrot.slane %v1582, 4
    %v1584 = vadd.f32 %v1582, %v1583
    %v1585 = vrot.slane %v1584, 2
    %v1586 = vadd.f32 %v1584, %v1585
    %v1587 = vrot.slane %v1586, 1
    %v1588 = vadd.f32 %v1586, %v1587
    %v1589 = vrcp.pop %v1588
    %v1590 = vmul.f32 %v1581, %v1589
    %1591 = vxpose.xlu0.b32.start [1/16] %v1590, 128
    %1592 = vxpose.xlu0.b32.cont [2/16] 0.0, 128
    %1593 = vxpose.xlu0.b32.cont [3/16] 0.0, 128
    %1594 = vxpose.xlu0.b32.cont [4/16] 0.0, 128
    %1595 = vxpose.xlu0.b32.cont [5/16] 0.0, 128
    %1596 = vxpose.xlu0.b32.cont [6/16] 0.0, 128
    %1597 = vxpose.xlu0.b32.cont [7/16] 0.0, 128
    %1598 = vxpose.xlu0.b32.cont [8/16] 0.0, 128
    %1599 = vxpose.xlu0.b32.cont [9/16] 0.0, 128
    %1600 = vxpose.xlu0.b32.cont [10/16] 0.0, 128
    %1601 = vxpose.xlu0.b32.cont [11/16] 0.0, 128
    %1602 = vxpose.xlu0.b32.cont [12/16] 0.0, 128
    %1603 = vxpose.xlu0.b32.cont [13/16] 0.0, 128
    %1604 = vxpose.xlu0.b32.cont [14/16] 0.0, 128
    %1605 = vxpose.xlu0.b32.cont [15/16] 0.0, 128
    %1606 = vxpose.xlu0.b32.end [16/16] 0.0, 128
    %v1607 = vpop.trf.xlu0
    %v1608 = vpop.trf.xlu0
    %v1609 = vpop.trf.xlu0
    %v1610 = vpop.trf.xlu0
    %v1611 = vpop.trf.xlu0
    %v1612 = vpop.trf.xlu0
    %v1613 = vpop.trf.xlu0
    %v1614 = vpop.trf.xlu0
    %v1615 = vpop.trf.xlu0
    %v1616 = vpop.trf.xlu0
    %v1617 = vpop.trf.xlu0
    %v1618 = vpop.trf.xlu0
    %v1619 = vpop.trf.xlu0
    %v1620 = vpop.trf.xlu0
    %v1621 = vpop.trf.xlu0
    %v1622 = vpop.trf.xlu0
    %v1624 = vsel %vm371, %v1607, 0
    %1626 = vmatpush.msra.mxu0 0.0
    %1627 = vmatpush.msra.mxu0 0.0
    %1628 = vmatpush.msra.mxu0 0.0
    %1629 = vmatpush.msra.mxu0 0.0
    %1630 = vmatpush.msra.mxu0 0.0
    %1631 = vmatpush.msra.mxu0 0.0
    %1632 = vmatpush.msra.mxu0 0.0
    %1633 = vmatpush.msra.mxu0 0.0
    %1634 = vmatpush.msra.mxu0 0.0
    %1635 = vmatpush.msra.mxu0 0.0
    %1636 = vmatpush.msra.mxu0 0.0
    %1637 = vmatpush.msra.mxu0 0.0
    %1638 = vmatpush.msra.mxu0 0.0
    %1639 = vmatpush.msra.mxu0 0.0
    %1640 = vmatpush.msra.mxu0 0.0
    %1641 = vmatpush.msra.mxu0 %v1475
    %1642 = vmatmul.f32.gmra.mxu0 %v1624
    %v1643 = vpop.f32.mrf.mxu0
    %v1644 = vadd.f32 0.0, %v1643
    %1645 = vdwg.mxu0
    %v1646 = vld [vmem:[%s101] sm:$0xff]
    %v1647 = vld [vmem:[%s101 + $0x8] sm:$0xff]
    %v1648 = vld [vmem:[%s101 + $0x10] sm:$0xff]
    %v1649 = vld [vmem:[%s101 + $0x18] sm:$0xff]
    %v1650 = vld [vmem:[%s103] sm:$0x1]
    %v1652 = vsel %vm262, %v1644, 0
    %1654 = vmatpush.msra.mxu0 0.0
    %1655 = vmatpush.msra.mxu0 0.0
    %1656 = vmatpush.msra.mxu0 0.0
    %1657 = vmatpush.msra.mxu0 0.0
    %1658 = vmatpush.msra.mxu0 0.0
    %1659 = vmatpush.msra.mxu0 0.0
    %1660 = vmatpush.msra.mxu0 0.0
    %1661 = vmatpush.msra.mxu0 0.0
    %1662 = vmatpush.msra.mxu0 0.0
    %1663 = vmatpush.msra.mxu0 0.0
    %1664 = vmatpush.msra.mxu0 0.0
    %1665 = vmatpush.msra.mxu0 0.0
    %1666 = vmatpush.msra.mxu0 %v1649
    %1667 = vmatpush.msra.mxu0 %v1648
    %1668 = vmatpush.msra.mxu0 %v1647
    %1669 = vmatpush.msra.mxu0 %v1646
    %1670 = vmatmul.f32.gmra.mxu0 %v1652
    %v1671 = vpop.f32.mrf.mxu0
    %v1672 = vadd.f32 %v1650, %v1671
    %1673 = vdwg.mxu0
    %vm1674 = vcmp.ge.f32.partialorder %v1672, 0.0
    %v1675 = vmul.f32 %v1672, 0.01
    %v1676 = vsel %vm1674, %v1672, %v1675
    %v1677 = vld [vmem:[%s105] sm:$0xff]
    %v1678 = vld [vmem:[%s105 + $0x8] sm:$0xff]
    %v1679 = vld [vmem:[%s105 + $0x10] sm:$0xff]
    %v1680 = vld [vmem:[%s105 + $0x18] sm:$0xff]
    %v1681 = vld [vmem:[%s105 + $0x20] sm:$0xff]
    %v1682 = vld [vmem:[%s105 + $0x28] sm:$0xff]
    %v1683 = vld [vmem:[%s105 + $0x30] sm:$0xff]
    %v1684 = vld [vmem:[%s105 + $0x38] sm:$0xff]
    %v1685 = vld [vmem:[%s107] sm:$0x1]
    %vm1686 = vcmask 523264
    %v1688 = vsel %vm1686, %v1676, 0
    %1690 = vmatpush.msra.mxu0 0.0
    %1691 = vmatpush.msra.mxu0 0.0
    %1692 = vmatpush.msra.mxu0 0.0
    %1693 = vmatpush.msra.mxu0 0.0
    %1694 = vmatpush.msra.mxu0 0.0
    %1695 = vmatpush.msra.mxu0 0.0
    %1696 = vmatpush.msra.mxu0 0.0
    %1697 = vmatpush.msra.mxu0 0.0
    %1698 = vmatpush.msra.mxu0 %v1684
    %1699 = vmatpush.msra.mxu0 %v1683
    %1700 = vmatpush.msra.mxu0 %v1682
    %1701 = vmatpush.msra.mxu0 %v1681
    %1702 = vmatpush.msra.mxu0 %v1680
    %1703 = vmatpush.msra.mxu0 %v1679
    %1704 = vmatpush.msra.mxu0 %v1678
    %1705 = vmatpush.msra.mxu0 %v1677
    %1706 = vmatmul.f32.gmra.mxu0 %v1688
    %v1707 = vpop.f32.mrf.mxu0
    %v1708 = vadd.f32 %v1685, %v1707
    %1709 = vdwg.mxu0
    %vm1710 = vcmp.ge.f32.partialorder %v1708, 0.0
    %v1711 = vmul.f32 %v1708, 0.01
    %v1712 = vsel %vm1710, %v1708, %v1711
    %v1713 = vld [vmem:[%s109] sm:$0xff]
    %v1714 = vld [vmem:[%s109 + $0x8] sm:$0xff]
    %v1715 = vld [vmem:[%s109 + $0x10] sm:$0xff]
    %v1716 = vld [vmem:[%s109 + $0x18] sm:$0xff]
    %v1717 = vld [vmem:[#allocation5] sm:$0x1]
    %v1719 = vsel %vm262, %v1712, 0
    %1721 = vmatpush.msra.mxu0 0.0
    %1722 = vmatpush.msra.mxu0 0.0
    %1723 = vmatpush.msra.mxu0 0.0
    %1724 = vmatpush.msra.mxu0 0.0
    %1725 = vmatpush.msra.mxu0 0.0
    %1726 = vmatpush.msra.mxu0 0.0
    %1727 = vmatpush.msra.mxu0 0.0
    %1728 = vmatpush.msra.mxu0 0.0
    %1729 = vmatpush.msra.mxu0 0.0
    %1730 = vmatpush.msra.mxu0 0.0
    %1731 = vmatpush.msra.mxu0 0.0
    %1732 = vmatpush.msra.mxu0 0.0
    %1733 = vmatpush.msra.mxu0 %v1716
    %1734 = vmatpush.msra.mxu0 %v1715
    %1735 = vmatpush.msra.mxu0 %v1714
    %1736 = vmatpush.msra.mxu0 %v1713
    %1737 = vmatmul.f32.gmra.mxu0 %v1719
    %v1738 = vpop.f32.mrf.mxu0
    %v1739 = vadd.f32 %v1717, %v1738
    %1740 = vdwg.mxu0
    %v1741 = vand.u32 2147483647, %v1739
    %v1742 = vsub.f32 0.0, %v1741
    %v1743 = vmul.f32 %v1742, 1.442695
    %v1744 = vpow.pop %v1743
    %vm1745 = vcmp.ge.f32.partialorder %v1739, 0.0
    %v1746 = vsel %vm1745, 1.0, %v1744
    %v1747 = vadd.f32 %v1744, 1.0
    %v1748 = vrcp.pop %v1747
    %v1749 = vmul.f32 %v1747, %v1748
    %v1750 = vsub.f32 1.0, %v1749
    %v1751 = vmul.f32 %v1748, %v1750
    %v1752 = vadd.f32 %v1748, %v1751
    %vm1753 = vweird.f32 %v1747
    %vm1754 = vweird.f32 %v1748
    %vm1755 = vmor %vm1753, %vm1754
    %v1756 = vsel %vm1755, %v1748, %v1752
    %v1757 = vand.u32 2147483647, %v1747
    %vm1758 = vcmp.eq.f32.partialorder %v1757, 8.507059e+37
    %v1759 = vand.u32 %v1747, 2147483648
    %v1760 = vor.u32 1.1754944e-38, %v1759
    %v1761 = vsel %vm1758, %v1760, %v1756
    %v1762 = vmul.f32 %v1746, %v1761
    %v1763 = vmax.f32 %v1762, 1e-05
    %v1764 = vmin.f32 %v1763, 0.99999
    %vm1765 = vcmask 0
    %1766 = vst.msk [vmem:[#allocation6] sm:$0x1] %vm1765, %v1764
    %1767 = vst.msk [vmem:[%s115] sm:$0xff] %vm1310, %v1590
    // Predicated region
    $region226: #{dkmil_forward.5} parent=1 // pred_check
      _
    $region227: #{dkmil_forward.5} parent=1 // pred_check_branch
      %1769 = sbr.rel (0) target = $region229
    $region228: #{dkmil_forward.5} parent=1 // pred_region
      %1771 = vsyncadd [#allocation7], 0
      %s1773 = sshll.u32 [#allocation6], 4
      %s1774 = int_to_ptr.vmem [resolvable:$true] %s1773
      %s1775 = sshll.u32 %s113, 4
      %s1776 = int_to_ptr.hbm [resolvable:$true] %s1775
      %1778 = dma.vmem_to_hbm [thread:$0]  %s1774, 16, %s1776, [#allocation7]
    $region229: #{dkmil_forward.5} parent=1 // pred_fallthru
      _
    // Predicated region
    $region230: #{dkmil_forward.5} parent=1 // pred_check
      _
    $region231: #{dkmil_forward.5} parent=1 // pred_check_branch
      %1780 = sbr.rel (0) target = $region233
    $region232: #{dkmil_forward.5} parent=1 // pred_region
      _
    $region233: #{dkmil_forward.5} parent=1 // pred_fallthru
      _
    // Predicated region
    $region234: #{dkmil_forward.5} parent=1 // pred_check
      _
    $region235: #{dkmil_forward.5} parent=1 // pred_check_branch
      %1782 = sbr.rel (0) target = $region237
    $region236: #{dkmil_forward.5} parent=1 // pred_region
      %1784 = dma.done [#allocation7], 16
    $region237: #{dkmil_forward.5} parent=1 // pred_fallthru
      _
    // Predicated region
    $region238: #{dkmil_forward.5} parent=1 // pred_check
      _
    $region239: #{dkmil_forward.5} parent=1 // pred_check_branch
      %1786 = sbr.rel (0) target = $region241
    $region240: #{dkmil_forward.5} parent=1 // pred_region
      _
    $region241: #{dkmil_forward.5} parent=1 // pred_fallthru
      _
    %1787 = vsyncpa [#allocation7], 1

</llo_original>
